<compile_context>
chip_gen: v7x
topology: tpu7x:2x2x1
jax: 0.10.0
libtpu: 0.0.40
codegen_flags: <defaults>
</compile_context>

<pallas_src>
import functools

import numpy as np
import jax
import jax.numpy as jnp
from jax.experimental import pallas as pl
from jax.experimental.pallas import tpu as pltpu

_SLACK = 8                 # zero lanes past each activation (taps read <= 2 past end)
_MAX_IMAGES_PER_STEP = 8   # bound per-step VMEM (grows ~linearly with this)


# --------------------------------------------------------------------- in-kernel helpers

def _conv3x3_relu(xp, w_mat, b_col, w0, h):
    """3x3 valid conv as one im2col MXU matmul.

    xp    : (R, >= h*w0 + 2) CHW-flat activation (value or VMEM ref) carrying at
            least 2 zero/slack lanes past h*w0.  R = images_per_step * Cin_pad,
            row index = image*Cin_pad + ci.
    w_mat : (R_out, 9*R) block-diagonal-over-images weight, column index
            (dh*3 + dw)*R + row.
    Returns (R_out, (h-2)*w0); columns whose spatial w is past the valid width
    are garbage (finite, never consumed by valid outputs downstream)."""
    n = (h - 2) * w0
    taps = []
    for dh in range(3):
        for dw in range(3):
            s = dh * w0 + dw
            taps.append(xp[:, s:s + n])
    patches = jnp.concatenate(taps, axis=0)                       # (9*R, n)
    acc = jnp.dot(w_mat, patches, preferred_element_type=jnp.float32)
    return jnp.maximum(acc + b_col, 0.0)


def _maxpool3(xp, sel, w0, h):
    """3x3 / stride-3 max pool.  Separable window max (lane max over 3 shifts,
    then row max over 3 row shifts), then a 0/1 selection matmul that keeps only
    the stride-3 anchors and drops the garbage columns."""
    ll = h * w0
    n = (h - 2) * w0
    r = jnp.maximum(jnp.maximum(xp[:, 0:ll], xp[:, 1:ll + 1]), xp[:, 2:ll + 2])
    m = jnp.maximum(jnp.maximum(r[:, 0:n], r[:, w0:w0 + n]),
                    r[:, 2 * w0:2 * w0 + n])
    return jnp.dot(m, sel, preferred_element_type=jnp.float32)


# --------------------------------------------------------------------- fused kernel

def _cnn_fused_kernel(x_ref, w1_ref, b1_ref, w2_ref, b2_ref, wm_ref, bm_ref,
                      w3_ref, b3_ref, mask_ref, s1_ref, s2_ref,
                      wwide_ref, mdiag_ref, selsum_ref, onesblk_ref, blin_ref,
                      o_ref, pad_ref, *, H, W, num_middle):
    zcache = {}

    def with_slack(x):   # hoisted slack zeros: one per distinct sublane count
        c = x.shape[0]
        if c not in zcache:
            zcache[c] = jnp.zeros((c, _SLACK), jnp.float32)
        return jnp.concatenate([x, zcache[c]], axis=1)

    a = x_ref[0]                                                   # (Bi*C0p, H*W)
    a = _conv3x3_relu(with_slack(a), w1_ref[...], b1_ref[...], W, H)
    a = _conv3x3_relu(with_slack(a), w2_ref[...], b2_ref[...], W, H - 2)

    if num_middle > 0:                                             # padding=1 convs
        ln = (H - 4) * W          # middle-conv activation length
        lo = W + 1                # content offset inside the padded scratch
        rows, total = pad_ref.shape
        # zero the never-written borders of the persistent padded scratch
        pad_ref[:, :lo] = jnp.zeros((rows, lo), jnp.float32)
        pad_ref[:, lo + ln:] = jnp.zeros((rows, total - (lo + ln)), jnp.float32)
        for li in range(num_middle):
            pad_ref[:, lo:lo + ln] = a * mask_ref[...]
            a = _conv3x3_relu(pad_ref, wm_ref[li], bm_ref[li], W, H - 2)

    a = _maxpool3(with_slack(a), s1_ref[...], W, H - 4)            # (Bi*Cp, Hp1*Wp1)
    hp1, wp1 = (H - 4) // 3, (W - 4) // 3
    a = _conv3x3_relu(with_slack(a), w3_ref[...], b3_ref[...], wp1, hp1)
    a = _maxpool3(with_slack(a), s2_ref[...], wp1, hp1 - 2)        # (Bi*C3p, S)

    # flatten (PyTorch (C,H,W) order) + Linear, done entirely with matmuls:
    #   g[b*C3+c, c'*O+o] = sum_s a[b*C3+c, s] * Wlin[o, c'*S+s]
    #   out[b, o]         = sum_c g[b*C3+c, c*O+o]   (diag mask + block row sum
    #                                                 + selection column sum)
    g = jnp.dot(a, wwide_ref[...], preferred_element_type=jnp.float32)
    y = jnp.dot(onesblk_ref[...], g * mdiag_ref[...],
                preferred_element_type=jnp.float32)
    o_ref[0] = (jnp.dot(y, selsum_ref[...], preferred_element_type=jnp.float32)
                + blin_ref[...])


# --------------------------------------------------------------------- host-side packing

def _pad8(c):
    return ((c + 7) // 8) * 8


def _conv_w_block_diag(w_oihw, cin_p, cout_p, bi):
    """PyTorch OIHW conv weight -> block-diagonal-over-images im2col matrix
    (bi*cout_p, 9*bi*cin_p); per-image channels zero-padded to cin_p/cout_p so
    every 9-tap sublane group is 8-aligned."""
    w = np.asarray(w_oihw, np.float32)
    cout, cin, kh, kw = w.shape
    per = np.zeros((cout_p, kh * kw, cin_p), np.float32)
    per[:cout, :, :cin] = np.transpose(w, (0, 2, 3, 1)).reshape(cout, kh * kw, cin)
    bd = np.zeros((bi * cout_p, kh * kw, bi * cin_p), np.float32)
    for b in range(bi):
        bd[b * cout_p:(b + 1) * cout_p, :, b * cin_p:(b + 1) * cin_p] = per
    return jnp.asarray(bd.reshape(bi * cout_p, kh * kw * bi * cin_p))


def _bias_col(b_vec, cout_p, bi):
    b = np.asarray(b_vec, np.float32)
    per = np.zeros((cout_p,), np.float32)
    per[:b.shape[0]] = b
    return jnp.asarray(np.tile(per, bi).reshape(bi * cout_p, 1))


def _pool_select(h, w0, w_valid):
    """0/1 selection matrix ((h-2)*w0, Hp*Wp) picking stride-3 pooling anchors."""
    hp, wp = h // 3, w_valid // 3
    n = (h - 2) * w0
    s = np.zeros((n, hp * wp), np.float32)
    for a in range(hp):
        for b in range(wp):
            s[3 * a * w0 + 3 * b, a * wp + b] = 1.0
    return jnp.asarray(s)


def _garbage_mask(h, w0, w_valid):
    m = np.zeros((h, w0), np.float32)
    m[:, :w_valid] = 1.0
    return jnp.asarray(m.reshape(1, h * w0))


def _linear_consts(w_lin, b_lin, c3, c3_p, s_sp, bi):
    """Constants for the matmul-only flatten + Linear."""
    w = np.asarray(w_lin, np.float32)                  # (O, c3*s_sp), PyTorch layout
    o = w.shape[0]
    w3d = w.reshape(o, c3, s_sp)
    wwide = np.zeros((s_sp, c3_p * o), np.float32)     # [s, c*O+j] = Wlin[j, c*S+s]
    for c in range(c3):
        wwide[:, c * o:(c + 1) * o] = w3d[:, c, :].T
    mdiag = np.kron(np.eye(c3_p, dtype=np.float32), np.ones((1, o), np.float32))
    mdiag = np.tile(mdiag, (bi, 1))                    # (bi*c3_p, c3_p*O)
    selsum = np.tile(np.eye(o, dtype=np.float32), (c3_p, 1))        # (c3_p*O, O)
    onesblk = np.kron(np.eye(bi, dtype=np.float32),
                      np.ones((1, c3_p), np.float32))               # (bi, bi*c3_p)
    blin = np.asarray(b_lin, np.float32).reshape(1, o)
    return (jnp.asarray(wwide), jnp.asarray(mdiag), jnp.asarray(selsum),
            jnp.asarray(onesblk), jnp.asarray(blin))


def pack_params(tp, *, H, W, depth, width, in_channels, num_outputs,
                images_per_step):
    bi = images_per_step
    num_middle = depth - 3
    c0p, c1p = _pad8(in_channels), _pad8(width // 2)
    c2p, c3p = _pad8(width), _pad8(2 * width)
    hp1, wp1 = (H - 4) // 3, (W - 4) // 3
    hp2, wp2 = (hp1 - 2) // 3, (wp1 - 2) // 3
    assert tp["w_lin"].shape == (num_outputs, 2 * width * hp2 * wp2)

    if num_middle > 0:
        wm = jnp.stack([_conv_w_block_diag(w, c2p, c2p, bi) for w in tp["wm"]])
        bm = jnp.stack([_bias_col(b, c2p, bi) for b in tp["bm"]])
    else:   # dummies, never read by the kernel
        wm = jnp.zeros((1, bi * c2p, 9 * bi * c2p), jnp.float32)
        bm = jnp.zeros((1, bi * c2p, 1), jnp.float32)

    wwide, mdiag, selsum, onesblk, blin = _linear_consts(
        tp["w_lin"], tp["b_lin"], 2 * width, c3p, hp2 * wp2, bi)

    return (
        _conv_w_block_diag(tp["w1"], c0p, c1p, bi), _bias_col(tp["b1"], c1p, bi),
        _conv_w_block_diag(tp["w2"], c1p, c2p, bi), _bias_col(tp["b2"], c2p, bi),
        wm, bm,
        _conv_w_block_diag(tp["w3"], c2p, c3p, bi), _bias_col(tp["b3"], c3p, bi),
        _garbage_mask(H - 4, W, W - 4),
        _pool_select(H - 4, W, W - 4),
        _pool_select(hp1 - 2, wp1, wp1 - 2),
        wwide, mdiag, selsum, onesblk, blin,
    )


def pick_images_per_step(batch):
    """Whole batch per grid step on single-TensorCore chips (v5e/v6e); split the
    batch across the two TensorCores on v7x-class chips.  Bounded so per-step
    VMEM stays small for large batches."""
    try:
        kind = jax.devices()[0].device_kind.lower()
    except Exception:
        kind = ""
    n_tc = 2 if "7" in kind else 1
    hi = min(max(batch // n_tc, 1), _MAX_IMAGES_PER_STEP)
    for bi in range(hi, 0, -1):
        if batch % bi == 0:
            return bi
    return 1


# --------------------------------------------------------------------- pallas wrapper

@functools.partial(jax.jit, static_argnames=("depth", "images_per_step"))
def cnn_forward_pallas(x_nchw, consts, depth, images_per_step):
    B, Cin, H, W = x_nchw.shape
    bi = images_per_step
    assert B % bi == 0
    n_steps = B // bi
    (w1, b1, w2, b2, wm, bm, w3, b3, mask, s1, s2,
     wwide, mdiag, selsum, onesblk, blin) = consts
    c0p = w1.shape[1] // (9 * bi)        # padded per-image input channels
    num_outputs = blin.shape[1]

    # layout plumbing (host side): pad channels to c0p and stack `bi` images per
    # grid step along the sublane axis (image-major, channel-minor rows).
    x_flat = x_nchw.reshape(B, Cin, H * W)
    x_flat = jnp.pad(x_flat, ((0, 0), (0, c0p - Cin), (0, 0)))
    x_flat = x_flat.reshape(n_steps, bi * c0p, H * W)

    in_specs = [pl.BlockSpec((1, bi * c0p, H * W), lambda i: (i, 0, 0))]
    for c in consts:   # full-array, constant-index -> DMA'd once, kept in VMEM
        in_specs.append(pl.BlockSpec(c.shape, lambda i, z=(0,) * c.ndim: z))

    pad_cols = (H - 2) * W + _SLACK if depth > 3 else _SLACK
    out = pl.pallas_call(
        functools.partial(_cnn_fused_kernel, H=H, W=W, num_middle=depth - 3),
        out_shape=jax.ShapeDtypeStruct((n_steps, bi, num_outputs), jnp.float32),
        grid=(n_steps,),
        in_specs=in_specs,
        out_specs=pl.BlockSpec((1, bi, num_outputs), lambda i: (i, 0, 0)),
        scratch_shapes=[pltpu.VMEM((w2.shape[0], pad_cols), jnp.float32)],
        compiler_params=pltpu.CompilerParams(
            dimension_semantics=("parallel",)),   # v7x: one image group per core
    )(x_flat, *consts)
    return out.reshape(B, num_outputs)


# --------------------------------------------------------------------- pure JAX reference

def _conv_ref(x, w_oihw, b, padding):
    out = jax.lax.conv_general_dilated(
        x, w_oihw, window_strides=(1, 1),
        padding=[(padding, padding), (padding, padding)],
        dimension_numbers=("NCHW", "OIHW", "NCHW"),
        precision=jax.lax.Precision.HIGHEST)
    return jax.nn.relu(out + b[None, :, None, None])


def _pool_ref(x):
    return jax.lax.reduce_window(x, -jnp.inf, jax.lax.max,
                                 (1, 1, 3, 3), (1, 1, 3, 3), "VALID")


def cnn_forward_reference(x_nchw, tp, depth):
    x = _conv_ref(x_nchw, tp["w1"], tp["b1"], 0)
    x = _conv_ref(x, tp["w2"], tp["b2"], 0)
    for li in range(depth - 3):
        x = _conv_ref(x, tp["wm"][li], tp["bm"][li], 1)
    x = _pool_ref(x)
    x = _conv_ref(x, tp["w3"], tp["b3"], 0)
    x = _pool_ref(x)
    flat = x.reshape(x.shape[0], -1)                          # (C, H, W) order
    return jnp.dot(flat, tp["w_lin"].T,
                   precision=jax.lax.Precision.HIGHEST) + tp["b_lin"]


# --------------------------------------------------------------------- main

if __name__ == "__main__":
    # module hyper-params: Linear(8*width) after two MaxPool(3) forces 28x28 input
    num_outputs, width, depth, in_channels = 10, 8, 4, 3
    B, H, W = 2, 28, 28

    key = jax.random.PRNGKey(0)
    ks = jax.random.split(key, 11)
    normal = lambda k, s: (0.1 * jax.random.normal(k, s)).astype(jnp.float32)

    torch_params = {
        "w1": normal(ks[0], (width // 2, in_channels, 3, 3)),
        "b1": normal(ks[1], (width // 2,)),
        "w2": normal(ks[2], (width, width // 2, 3, 3)),
        "b2": normal(ks[3], (width,)),
        "wm": [normal(ks[4], (width, width, 3, 3))],
        "bm": [normal(ks[5], (width,))],
        "w3": normal(ks[6], (2 * width, width, 3, 3)),
        "b3": normal(ks[7], (2 * width,)),
        "w_lin": normal(ks[8], (num_outputs, 8 * width)),
        "b_lin": normal(ks[9], (num_outputs,)),
    }

    images_per_step = pick_images_per_step(B)
    consts = pack_params(torch_params, H=H, W=W, depth=depth, width=width,
                         in_channels=in_channels, num_outputs=num_outputs,
                         images_per_step=images_per_step)
    x = jax.random.normal(ks[10], (B, in_channels, H, W), dtype=jnp.float32)

    out = jax.block_until_ready(
        cnn_forward_pallas(x, consts, depth, images_per_step))
    assert out.shape == (B, num_outputs), out.shape

    ref = jax.block_until_ready(cnn_forward_reference(x, torch_params, depth))
    max_err = float(jnp.max(jnp.abs(out - ref)))
    assert jnp.allclose(out, ref, atol=5e-4, rtol=5e-4), ("mismatch", max_err)

    print("KERNEL_OK")
</pallas_src>

<mosaic_0001>
module attributes {stable_mosaic.version = 11 : i64} {
  func.func @_cnn_fused_kernel(%arg0: i32, %arg1: memref<1x16x784xf32, #tpu.memory_space<vmem>>, %arg2: memref<16x144xf32, #tpu.memory_space<vmem>>, %arg3: memref<16x1xf32, #tpu.memory_space<vmem>>, %arg4: memref<16x144xf32, #tpu.memory_space<vmem>>, %arg5: memref<16x1xf32, #tpu.memory_space<vmem>>, %arg6: memref<1x16x144xf32, #tpu.memory_space<vmem>>, %arg7: memref<1x16x1xf32, #tpu.memory_space<vmem>>, %arg8: memref<32x144xf32, #tpu.memory_space<vmem>>, %arg9: memref<32x1xf32, #tpu.memory_space<vmem>>, %arg10: memref<1x672xf32, #tpu.memory_space<vmem>>, %arg11: memref<616x64xf32, #tpu.memory_space<vmem>>, %arg12: memref<32x4xf32, #tpu.memory_space<vmem>>, %arg13: memref<4x160xf32, #tpu.memory_space<vmem>>, %arg14: memref<32x160xf32, #tpu.memory_space<vmem>>, %arg15: memref<160x10xf32, #tpu.memory_space<vmem>>, %arg16: memref<2x32xf32, #tpu.memory_space<vmem>>, %arg17: memref<1x10xf32, #tpu.memory_space<vmem>>, %arg18: memref<1x2x10xf32, #tpu.memory_space<vmem>>, %arg19: memref<16x736xf32, #tpu.memory_space<vmem>>) attributes {dimension_semantics = [#tpu.dimension_semantics<parallel>], iteration_bounds = array<i64: 1>, scalar_prefetch = 0 : i64, scratch_operands = 1 : i64, tpu.core_type = #tpu.core_type<tc>, window_params = [{transform_indices = @transform_0, window_bounds = array<i64: 1, 16, 784>}, {pipeline_mode = #tpu.pipeline_mode<synchronous>, transform_indices = @transform_1, window_bounds = array<i64: 16, 144>}, {pipeline_mode = #tpu.pipeline_mode<synchronous>, transform_indices = @transform_2, window_bounds = array<i64: 16, 1>}, {pipeline_mode = #tpu.pipeline_mode<synchronous>, transform_indices = @transform_3, window_bounds = array<i64: 16, 144>}, {pipeline_mode = #tpu.pipeline_mode<synchronous>, transform_indices = @transform_4, window_bounds = array<i64: 16, 1>}, {pipeline_mode = #tpu.pipeline_mode<synchronous>, transform_indices = @transform_5, window_bounds = array<i64: 1, 16, 144>}, {pipeline_mode = #tpu.pipeline_mode<synchronous>, transform_indices = @transform_6, window_bounds = array<i64: 1, 16, 1>}, {pipeline_mode = #tpu.pipeline_mode<synchronous>, transform_indices = @transform_7, window_bounds = array<i64: 32, 144>}, {pipeline_mode = #tpu.pipeline_mode<synchronous>, transform_indices = @transform_8, window_bounds = array<i64: 32, 1>}, {pipeline_mode = #tpu.pipeline_mode<synchronous>, transform_indices = @transform_9, window_bounds = array<i64: 1, 672>}, {pipeline_mode = #tpu.pipeline_mode<synchronous>, transform_indices = @transform_10, window_bounds = array<i64: 616, 64>}, {pipeline_mode = #tpu.pipeline_mode<synchronous>, transform_indices = @transform_11, window_bounds = array<i64: 32, 4>}, {pipeline_mode = #tpu.pipeline_mode<synchronous>, transform_indices = @transform_12, window_bounds = array<i64: 4, 160>}, {pipeline_mode = #tpu.pipeline_mode<synchronous>, transform_indices = @transform_13, window_bounds = array<i64: 32, 160>}, {pipeline_mode = #tpu.pipeline_mode<synchronous>, transform_indices = @transform_14, window_bounds = array<i64: 160, 10>}, {pipeline_mode = #tpu.pipeline_mode<synchronous>, transform_indices = @transform_15, window_bounds = array<i64: 2, 32>}, {pipeline_mode = #tpu.pipeline_mode<synchronous>, transform_indices = @transform_16, window_bounds = array<i64: 1, 10>}, {transform_indices = @transform_17, window_bounds = array<i64: 1, 2, 10>}]} {
    %c0 = arith.constant 0 : index
    %c0_0 = arith.constant 0 : index
    %c0_1 = arith.constant 0 : index
    %0 = vector.load %arg1[%c0, %c0_0, %c0_1] : memref<1x16x784xf32, #tpu.memory_space<vmem>>, vector<1x16x784xf32>
    %1 = vector.shape_cast %0 : vector<1x16x784xf32> to vector<16x784xf32>
    %cst = arith.constant 0.000000e+00 : f32
    %2 = vector.broadcast %cst : f32 to vector<16x8xf32>
    %3 = tpu.concatenate %1, %2 in 1 : vector<16x784xf32>, vector<16x8xf32> -> vector<16x792xf32>
    %c0_2 = arith.constant 0 : index
    %c0_3 = arith.constant 0 : index
    %4 = vector.load %arg2[%c0_2, %c0_3] : memref<16x144xf32, #tpu.memory_space<vmem>>, vector<16x144xf32>
    %c0_4 = arith.constant 0 : index
    %c0_5 = arith.constant 0 : index
    %5 = vector.load %arg3[%c0_4, %c0_5] : memref<16x1xf32, #tpu.memory_space<vmem>>, vector<16x1xf32>
    %6 = vector.extract_strided_slice %3 {offsets = [0, 0], sizes = [16, 728], strides = [1, 1]} : vector<16x792xf32> to vector<16x728xf32>
    %7 = vector.extract_strided_slice %3 {offsets = [0, 1], sizes = [16, 728], strides = [1, 1]} : vector<16x792xf32> to vector<16x728xf32>
    %8 = vector.extract_strided_slice %3 {offsets = [0, 2], sizes = [16, 728], strides = [1, 1]} : vector<16x792xf32> to vector<16x728xf32>
    %9 = vector.extract_strided_slice %3 {offsets = [0, 28], sizes = [16, 728], strides = [1, 1]} : vector<16x792xf32> to vector<16x728xf32>
    %10 = vector.extract_strided_slice %3 {offsets = [0, 29], sizes = [16, 728], strides = [1, 1]} : vector<16x792xf32> to vector<16x728xf32>
    %11 = vector.extract_strided_slice %3 {offsets = [0, 30], sizes = [16, 728], strides = [1, 1]} : vector<16x792xf32> to vector<16x728xf32>
    %12 = vector.extract_strided_slice %3 {offsets = [0, 56], sizes = [16, 728], strides = [1, 1]} : vector<16x792xf32> to vector<16x728xf32>
    %13 = vector.extract_strided_slice %3 {offsets = [0, 57], sizes = [16, 728], strides = [1, 1]} : vector<16x792xf32> to vector<16x728xf32>
    %14 = vector.extract_strided_slice %3 {offsets = [0, 58], sizes = [16, 728], strides = [1, 1]} : vector<16x792xf32> to vector<16x728xf32>
    %15 = tpu.concatenate %6, %7, %8, %9, %10, %11, %12, %13, %14 in 0 : vector<16x728xf32>, vector<16x728xf32>, vector<16x728xf32>, vector<16x728xf32>, vector<16x728xf32>, vector<16x728xf32>, vector<16x728xf32>, vector<16x728xf32>, vector<16x728xf32> -> vector<144x728xf32>
    %cst_6 = arith.constant dense<0.000000e+00> : vector<16x728xf32>
    %16 = tpu.matmul %4, %15, %cst_6 {dimension_numbers = #tpu.dot_dimension_numbers<[1], [0], [0], [1], [0, 0, 1, 1], [], []>} : vector<16x144xf32>, vector<144x728xf32>, vector<16x728xf32> -> vector<16x728xf32>
    %17 = vector.broadcast %5 : vector<16x1xf32> to vector<16x728xf32>
    %18 = arith.addf %16, %17 : vector<16x728xf32>
    %cst_7 = arith.constant 0.000000e+00 : f32
    %19 = vector.broadcast %cst_7 : f32 to vector<16x728xf32>
    %20 = arith.maximumf %18, %19 : vector<16x728xf32>
    %21 = tpu.concatenate %20, %2 in 1 : vector<16x728xf32>, vector<16x8xf32> -> vector<16x736xf32>
    %c0_8 = arith.constant 0 : index
    %c0_9 = arith.constant 0 : index
    %22 = vector.load %arg4[%c0_8, %c0_9] : memref<16x144xf32, #tpu.memory_space<vmem>>, vector<16x144xf32>
    %c0_10 = arith.constant 0 : index
    %c0_11 = arith.constant 0 : index
    %23 = vector.load %arg5[%c0_10, %c0_11] : memref<16x1xf32, #tpu.memory_space<vmem>>, vector<16x1xf32>
    %24 = vector.extract_strided_slice %21 {offsets = [0, 0], sizes = [16, 672], strides = [1, 1]} : vector<16x736xf32> to vector<16x672xf32>
    %25 = vector.extract_strided_slice %21 {offsets = [0, 1], sizes = [16, 672], strides = [1, 1]} : vector<16x736xf32> to vector<16x672xf32>
    %26 = vector.extract_strided_slice %21 {offsets = [0, 2], sizes = [16, 672], strides = [1, 1]} : vector<16x736xf32> to vector<16x672xf32>
    %27 = vector.extract_strided_slice %21 {offsets = [0, 28], sizes = [16, 672], strides = [1, 1]} : vector<16x736xf32> to vector<16x672xf32>
    %28 = vector.extract_strided_slice %21 {offsets = [0, 29], sizes = [16, 672], strides = [1, 1]} : vector<16x736xf32> to vector<16x672xf32>
    %29 = vector.extract_strided_slice %21 {offsets = [0, 30], sizes = [16, 672], strides = [1, 1]} : vector<16x736xf32> to vector<16x672xf32>
    %30 = vector.extract_strided_slice %21 {offsets = [0, 56], sizes = [16, 672], strides = [1, 1]} : vector<16x736xf32> to vector<16x672xf32>
    %31 = vector.extract_strided_slice %21 {offsets = [0, 57], sizes = [16, 672], strides = [1, 1]} : vector<16x736xf32> to vector<16x672xf32>
    %32 = vector.extract_strided_slice %21 {offsets = [0, 58], sizes = [16, 672], strides = [1, 1]} : vector<16x736xf32> to vector<16x672xf32>
    %33 = tpu.concatenate %24, %25, %26, %27, %28, %29, %30, %31, %32 in 0 : vector<16x672xf32>, vector<16x672xf32>, vector<16x672xf32>, vector<16x672xf32>, vector<16x672xf32>, vector<16x672xf32>, vector<16x672xf32>, vector<16x672xf32>, vector<16x672xf32> -> vector<144x672xf32>
    %cst_12 = arith.constant dense<0.000000e+00> : vector<16x672xf32>
    %34 = tpu.matmul %22, %33, %cst_12 {dimension_numbers = #tpu.dot_dimension_numbers<[1], [0], [0], [1], [0, 0, 1, 1], [], []>} : vector<16x144xf32>, vector<144x672xf32>, vector<16x672xf32> -> vector<16x672xf32>
    %35 = vector.broadcast %23 : vector<16x1xf32> to vector<16x672xf32>
    %36 = arith.addf %34, %35 : vector<16x672xf32>
    %cst_13 = arith.constant 0.000000e+00 : f32
    %37 = vector.broadcast %cst_13 : f32 to vector<16x672xf32>
    %38 = arith.maximumf %36, %37 : vector<16x672xf32>
    %cst_14 = arith.constant 0.000000e+00 : f32
    %39 = vector.broadcast %cst_14 : f32 to vector<16x29xf32>
    %c0_15 = arith.constant 0 : index
    %c0_16 = arith.constant 0 : index
    %40 = vector.load %arg19[%c0_15, %c0_16] : memref<16x736xf32, #tpu.memory_space<vmem>>, vector<16x29xf32>
    tpu.vector_store %arg19[%c0_15, %c0_16], %39 {strides = array<i32>} : memref<16x736xf32, #tpu.memory_space<vmem>>, vector<16x29xf32>,
    %cst_17 = arith.constant 0.000000e+00 : f32
    %41 = vector.broadcast %cst_17 : f32 to vector<16x35xf32>
    %c0_18 = arith.constant 0 : index
    %c701 = arith.constant 701 : index
    %42 = vector.load %arg19[%c0_18, %c701] : memref<16x736xf32, #tpu.memory_space<vmem>>, vector<16x35xf32>
    tpu.vector_store %arg19[%c0_18, %c701], %41 {strides = array<i32>} : memref<16x736xf32, #tpu.memory_space<vmem>>, vector<16x35xf32>,
    %c0_19 = arith.constant 0 : index
    %c0_20 = arith.constant 0 : index
    %43 = vector.load %arg10[%c0_19, %c0_20] : memref<1x672xf32, #tpu.memory_space<vmem>>, vector<1x672xf32>
    %44 = vector.broadcast %43 : vector<1x672xf32> to vector<16x672xf32>
    %45 = arith.mulf %38, %44 : vector<16x672xf32>
    %c0_21 = arith.constant 0 : index
    %c29 = arith.constant 29 : index
    %46 = vector.load %arg19[%c0_21, %c29] : memref<16x736xf32, #tpu.memory_space<vmem>>, vector<16x672xf32>
    tpu.vector_store %arg19[%c0_21, %c29], %45 {strides = array<i32>} : memref<16x736xf32, #tpu.memory_space<vmem>>, vector<16x672xf32>,
    %c0_22 = arith.constant 0 : index
    %c0_23 = arith.constant 0 : index
    %c0_24 = arith.constant 0 : index
    %47 = vector.load %arg6[%c0_22, %c0_23, %c0_24] : memref<1x16x144xf32, #tpu.memory_space<vmem>>, vector<1x16x144xf32>
    %48 = vector.shape_cast %47 : vector<1x16x144xf32> to vector<16x144xf32>
    %c0_25 = arith.constant 0 : index
    %c0_26 = arith.constant 0 : index
    %c0_27 = arith.constant 0 : index
    %49 = vector.load %arg7[%c0_25, %c0_26, %c0_27] : memref<1x16x1xf32, #tpu.memory_space<vmem>>, vector<1x16x1xf32>
    %50 = vector.shape_cast %49 : vector<1x16x1xf32> to vector<16x1xf32>
    %c0_28 = arith.constant 0 : index
    %c0_29 = arith.constant 0 : index
    %51 = vector.load %arg19[%c0_28, %c0_29] : memref<16x736xf32, #tpu.memory_space<vmem>>, vector<16x672xf32>
    %c0_30 = arith.constant 0 : index
    %c1 = arith.constant 1 : index
    %52 = vector.load %arg19[%c0_30, %c1] : memref<16x736xf32, #tpu.memory_space<vmem>>, vector<16x672xf32>
    %c0_31 = arith.constant 0 : index
    %c2 = arith.constant 2 : index
    %53 = vector.load %arg19[%c0_31, %c2] : memref<16x736xf32, #tpu.memory_space<vmem>>, vector<16x672xf32>
    %c0_32 = arith.constant 0 : index
    %c28 = arith.constant 28 : index
    %54 = vector.load %arg19[%c0_32, %c28] : memref<16x736xf32, #tpu.memory_space<vmem>>, vector<16x672xf32>
    %c0_33 = arith.constant 0 : index
    %c29_34 = arith.constant 29 : index
    %55 = vector.load %arg19[%c0_33, %c29_34] : memref<16x736xf32, #tpu.memory_space<vmem>>, vector<16x672xf32>
    %c0_35 = arith.constant 0 : index
    %c30 = arith.constant 30 : index
    %56 = vector.load %arg19[%c0_35, %c30] : memref<16x736xf32, #tpu.memory_space<vmem>>, vector<16x672xf32>
    %c0_36 = arith.constant 0 : index
    %c56 = arith.constant 56 : index
    %57 = vector.load %arg19[%c0_36, %c56] : memref<16x736xf32, #tpu.memory_space<vmem>>, vector<16x672xf32>
    %c0_37 = arith.constant 0 : index
    %c57 = arith.constant 57 : index
    %58 = vector.load %arg19[%c0_37, %c57] : memref<16x736xf32, #tpu.memory_space<vmem>>, vector<16x672xf32>
    %c0_38 = arith.constant 0 : index
    %c58 = arith.constant 58 : index
    %59 = vector.load %arg19[%c0_38, %c58] : memref<16x736xf32, #tpu.memory_space<vmem>>, vector<16x672xf32>
    %60 = tpu.concatenate %51, %52, %53, %54, %55, %56, %57, %58, %59 in 0 : vector<16x672xf32>, vector<16x672xf32>, vector<16x672xf32>, vector<16x672xf32>, vector<16x672xf32>, vector<16x672xf32>, vector<16x672xf32>, vector<16x672xf32>, vector<16x672xf32> -> vector<144x672xf32>
    %cst_39 = arith.constant dense<0.000000e+00> : vector<16x672xf32>
    %61 = tpu.matmul %48, %60, %cst_39 {dimension_numbers = #tpu.dot_dimension_numbers<[1], [0], [0], [1], [0, 0, 1, 1], [], []>} : vector<16x144xf32>, vector<144x672xf32>, vector<16x672xf32> -> vector<16x672xf32>
    %62 = vector.broadcast %50 : vector<16x1xf32> to vector<16x672xf32>
    %63 = arith.addf %61, %62 : vector<16x672xf32>
    %cst_40 = arith.constant 0.000000e+00 : f32
    %64 = vector.broadcast %cst_40 : f32 to vector<16x672xf32>
    %65 = arith.maximumf %63, %64 : vector<16x672xf32>
    %66 = tpu.concatenate %65, %2 in 1 : vector<16x672xf32>, vector<16x8xf32> -> vector<16x680xf32>
    %c0_41 = arith.constant 0 : index
    %c0_42 = arith.constant 0 : index
    %67 = vector.load %arg11[%c0_41, %c0_42] : memref<616x64xf32, #tpu.memory_space<vmem>>, vector<616x64xf32>
    %68 = vector.extract_strided_slice %66 {offsets = [0, 0], sizes = [16, 672], strides = [1, 1]} : vector<16x680xf32> to vector<16x672xf32>
    %69 = vector.extract_strided_slice %66 {offsets = [0, 1], sizes = [16, 672], strides = [1, 1]} : vector<16x680xf32> to vector<16x672xf32>
    %70 = arith.maximumf %68, %69 : vector<16x672xf32>
    %71 = vector.extract_strided_slice %66 {offsets = [0, 2], sizes = [16, 672], strides = [1, 1]} : vector<16x680xf32> to vector<16x672xf32>
    %72 = arith.maximumf %70, %71 : vector<16x672xf32>
    %73 = vector.extract_strided_slice %72 {offsets = [0, 0], sizes = [16, 616], strides = [1, 1]} : vector<16x672xf32> to vector<16x616xf32>
    %74 = vector.extract_strided_slice %72 {offsets = [0, 28], sizes = [16, 616], strides = [1, 1]} : vector<16x672xf32> to vector<16x616xf32>
    %75 = arith.maximumf %73, %74 : vector<16x616xf32>
    %76 = vector.extract_strided_slice %72 {offsets = [0, 56], sizes = [16, 616], strides = [1, 1]} : vector<16x672xf32> to vector<16x616xf32>
    %77 = arith.maximumf %75, %76 : vector<16x616xf32>
    %cst_43 = arith.constant dense<0.000000e+00> : vector<16x64xf32>
    %78 = tpu.matmul %77, %67, %cst_43 {dimension_numbers = #tpu.dot_dimension_numbers<[1], [0], [0], [1], [0, 0, 1, 1], [], []>} : vector<16x616xf32>, vector<616x64xf32>, vector<16x64xf32> -> vector<16x64xf32>
    %79 = tpu.concatenate %78, %2 in 1 : vector<16x64xf32>, vector<16x8xf32> -> vector<16x72xf32>
    %c0_44 = arith.constant 0 : index
    %c0_45 = arith.constant 0 : index
    %80 = vector.load %arg8[%c0_44, %c0_45] : memref<32x144xf32, #tpu.memory_space<vmem>>, vector<32x144xf32>
    %c0_46 = arith.constant 0 : index
    %c0_47 = arith.constant 0 : index
    %81 = vector.load %arg9[%c0_46, %c0_47] : memref<32x1xf32, #tpu.memory_space<vmem>>, vector<32x1xf32>
    %82 = vector.extract_strided_slice %79 {offsets = [0, 0], sizes = [16, 48], strides = [1, 1]} : vector<16x72xf32> to vector<16x48xf32>
    %83 = vector.extract_strided_slice %79 {offsets = [0, 1], sizes = [16, 48], strides = [1, 1]} : vector<16x72xf32> to vector<16x48xf32>
    %84 = vector.extract_strided_slice %79 {offsets = [0, 2], sizes = [16, 48], strides = [1, 1]} : vector<16x72xf32> to vector<16x48xf32>
    %85 = vector.extract_strided_slice %79 {offsets = [0, 8], sizes = [16, 48], strides = [1, 1]} : vector<16x72xf32> to vector<16x48xf32>
    %86 = vector.extract_strided_slice %79 {offsets = [0, 9], sizes = [16, 48], strides = [1, 1]} : vector<16x72xf32> to vector<16x48xf32>
    %87 = vector.extract_strided_slice %79 {offsets = [0, 10], sizes = [16, 48], strides = [1, 1]} : vector<16x72xf32> to vector<16x48xf32>
    %88 = vector.extract_strided_slice %79 {offsets = [0, 16], sizes = [16, 48], strides = [1, 1]} : vector<16x72xf32> to vector<16x48xf32>
    %89 = vector.extract_strided_slice %79 {offsets = [0, 17], sizes = [16, 48], strides = [1, 1]} : vector<16x72xf32> to vector<16x48xf32>
    %90 = vector.extract_strided_slice %79 {offsets = [0, 18], sizes = [16, 48], strides = [1, 1]} : vector<16x72xf32> to vector<16x48xf32>
    %91 = tpu.concatenate %82, %83, %84, %85, %86, %87, %88, %89, %90 in 0 : vector<16x48xf32>, vector<16x48xf32>, vector<16x48xf32>, vector<16x48xf32>, vector<16x48xf32>, vector<16x48xf32>, vector<16x48xf32>, vector<16x48xf32>, vector<16x48xf32> -> vector<144x48xf32>
    %cst_48 = arith.constant dense<0.000000e+00> : vector<32x48xf32>
    %92 = tpu.matmul %80, %91, %cst_48 {dimension_numbers = #tpu.dot_dimension_numbers<[1], [0], [0], [1], [0, 0, 1, 1], [], []>} : vector<32x144xf32>, vector<144x48xf32>, vector<32x48xf32> -> vector<32x48xf32>
    %93 = vector.broadcast %81 : vector<32x1xf32> to vector<32x48xf32>
    %94 = arith.addf %92, %93 : vector<32x48xf32>
    %cst_49 = arith.constant 0.000000e+00 : f32
    %95 = vector.broadcast %cst_49 : f32 to vector<32x48xf32>
    %96 = arith.maximumf %94, %95 : vector<32x48xf32>
    %cst_50 = arith.constant 0.000000e+00 : f32
    %97 = vector.broadcast %cst_50 : f32 to vector<32x8xf32>
    %98 = tpu.concatenate %96, %97 in 1 : vector<32x48xf32>, vector<32x8xf32> -> vector<32x56xf32>
    %c0_51 = arith.constant 0 : index
    %c0_52 = arith.constant 0 : index
    %99 = vector.load %arg12[%c0_51, %c0_52] : memref<32x4xf32, #tpu.memory_space<vmem>>, vector<32x4xf32>
    %100 = vector.extract_strided_slice %98 {offsets = [0, 0], sizes = [32, 48], strides = [1, 1]} : vector<32x56xf32> to vector<32x48xf32>
    %101 = vector.extract_strided_slice %98 {offsets = [0, 1], sizes = [32, 48], strides = [1, 1]} : vector<32x56xf32> to vector<32x48xf32>
    %102 = arith.maximumf %100, %101 : vector<32x48xf32>
    %103 = vector.extract_strided_slice %98 {offsets = [0, 2], sizes = [32, 48], strides = [1, 1]} : vector<32x56xf32> to vector<32x48xf32>
    %104 = arith.maximumf %102, %103 : vector<32x48xf32>
    %105 = vector.extract_strided_slice %104 {offsets = [0, 0], sizes = [32, 32], strides = [1, 1]} : vector<32x48xf32> to vector<32x32xf32>
    %106 = vector.extract_strided_slice %104 {offsets = [0, 8], sizes = [32, 32], strides = [1, 1]} : vector<32x48xf32> to vector<32x32xf32>
    %107 = arith.maximumf %105, %106 : vector<32x32xf32>
    %108 = vector.extract_strided_slice %104 {offsets = [0, 16], sizes = [32, 32], strides = [1, 1]} : vector<32x48xf32> to vector<32x32xf32>
    %109 = arith.maximumf %107, %108 : vector<32x32xf32>
    %cst_53 = arith.constant dense<0.000000e+00> : vector<32x4xf32>
    %110 = tpu.matmul %109, %99, %cst_53 {dimension_numbers = #tpu.dot_dimension_numbers<[1], [0], [0], [1], [0, 0, 1, 1], [], []>} : vector<32x32xf32>, vector<32x4xf32>, vector<32x4xf32> -> vector<32x4xf32>
    %c0_54 = arith.constant 0 : index
    %c0_55 = arith.constant 0 : index
    %111 = vector.load %arg13[%c0_54, %c0_55] : memref<4x160xf32, #tpu.memory_space<vmem>>, vector<4x160xf32>
    %cst_56 = arith.constant dense<0.000000e+00> : vector<32x160xf32>
    %112 = tpu.matmul %110, %111, %cst_56 {dimension_numbers = #tpu.dot_dimension_numbers<[1], [0], [0], [1], [0, 0, 1, 1], [], []>} : vector<32x4xf32>, vector<4x160xf32>, vector<32x160xf32> -> vector<32x160xf32>
    %c0_57 = arith.constant 0 : index
    %c0_58 = arith.constant 0 : index
    %113 = vector.load %arg16[%c0_57, %c0_58] : memref<2x32xf32, #tpu.memory_space<vmem>>, vector<2x32xf32>
    %c0_59 = arith.constant 0 : index
    %c0_60 = arith.constant 0 : index
    %114 = vector.load %arg14[%c0_59, %c0_60] : memref<32x160xf32, #tpu.memory_space<vmem>>, vector<32x160xf32>
    %115 = arith.mulf %112, %114 : vector<32x160xf32>
    %cst_61 = arith.constant dense<0.000000e+00> : vector<2x160xf32>
    %116 = tpu.matmul %113, %115, %cst_61 {dimension_numbers = #tpu.dot_dimension_numbers<[1], [0], [0], [1], [0, 0, 1, 1], [], []>} : vector<2x32xf32>, vector<32x160xf32>, vector<2x160xf32> -> vector<2x160xf32>
    %c0_62 = arith.constant 0 : index
    %c0_63 = arith.constant 0 : index
    %117 = vector.load %arg15[%c0_62, %c0_63] : memref<160x10xf32, #tpu.memory_space<vmem>>, vector<160x10xf32>
    %cst_64 = arith.constant dense<0.000000e+00> : vector<2x10xf32>
    %118 = tpu.matmul %116, %117, %cst_64 {dimension_numbers = #tpu.dot_dimension_numbers<[1], [0], [0], [1], [0, 0, 1, 1], [], []>} : vector<2x160xf32>, vector<160x10xf32>, vector<2x10xf32> -> vector<2x10xf32>
    %c0_65 = arith.constant 0 : index
    %c0_66 = arith.constant 0 : index
    %119 = vector.load %arg17[%c0_65, %c0_66] : memref<1x10xf32, #tpu.memory_space<vmem>>, vector<1x10xf32>
    %120 = vector.broadcast %119 : vector<1x10xf32> to vector<2x10xf32>
    %121 = arith.addf %118, %120 : vector<2x10xf32>
    %c0_67 = arith.constant 0 : index
    %c0_68 = arith.constant 0 : index
    %c0_69 = arith.constant 0 : index
    %122 = vector.load %arg18[%c0_67, %c0_68, %c0_69] : memref<1x2x10xf32, #tpu.memory_space<vmem>>, vector<1x2x10xf32>
    %123 = vector.shape_cast %122 : vector<1x2x10xf32> to vector<2x10xf32>
    %124 = vector.shape_cast %121 : vector<2x10xf32> to vector<1x2x10xf32>
    tpu.vector_store %arg18[%c0_67, %c0_68, %c0_69], %124 {strides = array<i32>} : memref<1x2x10xf32, #tpu.memory_space<vmem>>, vector<1x2x10xf32>,
    return
  }
  func.func @transform_0(%arg0: i32) -> (i32, i32, i32) {
    %c0_i32 = arith.constant 0 : i32
    %c0_i32_0 = arith.constant 0 : i32
    %c0_i32_1 = arith.constant 0 : i32
    return %arg0, %c0_i32, %c0_i32_0 : i32, i32, i32
  }
  func.func @transform_1(%arg0: i32) -> (i32, i32) {
    %c0_i32 = arith.constant 0 : i32
    %c0_i32_0 = arith.constant 0 : i32
    %c0_i32_1 = arith.constant 0 : i32
    return %c0_i32, %c0_i32_0 : i32, i32
  }
  func.func @transform_2(%arg0: i32) -> (i32, i32) {
    %c0_i32 = arith.constant 0 : i32
    %c0_i32_0 = arith.constant 0 : i32
    %c0_i32_1 = arith.constant 0 : i32
    return %c0_i32, %c0_i32_0 : i32, i32
  }
  func.func @transform_3(%arg0: i32) -> (i32, i32) {
    %c0_i32 = arith.constant 0 : i32
    %c0_i32_0 = arith.constant 0 : i32
    %c0_i32_1 = arith.constant 0 : i32
    return %c0_i32, %c0_i32_0 : i32, i32
  }
  func.func @transform_4(%arg0: i32) -> (i32, i32) {
    %c0_i32 = arith.constant 0 : i32
    %c0_i32_0 = arith.constant 0 : i32
    %c0_i32_1 = arith.constant 0 : i32
    return %c0_i32, %c0_i32_0 : i32, i32
  }
  func.func @transform_5(%arg0: i32) -> (i32, i32, i32) {
    %c0_i32 = arith.constant 0 : i32
    %c0_i32_0 = arith.constant 0 : i32
    %c0_i32_1 = arith.constant 0 : i32
    %c0_i32_2 = arith.constant 0 : i32
    return %c0_i32, %c0_i32_0, %c0_i32_1 : i32, i32, i32
  }
  func.func @transform_6(%arg0: i32) -> (i32, i32, i32) {
    %c0_i32 = arith.constant 0 : i32
    %c0_i32_0 = arith.constant 0 : i32
    %c0_i32_1 = arith.constant 0 : i32
    %c0_i32_2 = arith.constant 0 : i32
    return %c0_i32, %c0_i32_0, %c0_i32_1 : i32, i32, i32
  }
  func.func @transform_7(%arg0: i32) -> (i32, i32) {
    %c0_i32 = arith.constant 0 : i32
    %c0_i32_0 = arith.constant 0 : i32
    %c0_i32_1 = arith.constant 0 : i32
    return %c0_i32, %c0_i32_0 : i32, i32
  }
  func.func @transform_8(%arg0: i32) -> (i32, i32) {
    %c0_i32 = arith.constant 0 : i32
    %c0_i32_0 = arith.constant 0 : i32
    %c0_i32_1 = arith.constant 0 : i32
    return %c0_i32, %c0_i32_0 : i32, i32
  }
  func.func @transform_9(%arg0: i32) -> (i32, i32) {
    %c0_i32 = arith.constant 0 : i32
    %c0_i32_0 = arith.constant 0 : i32
    %c0_i32_1 = arith.constant 0 : i32
    return %c0_i32, %c0_i32_0 : i32, i32
  }
  func.func @transform_10(%arg0: i32) -> (i32, i32) {
    %c0_i32 = arith.constant 0 : i32
    %c0_i32_0 = arith.constant 0 : i32
    %c0_i32_1 = arith.constant 0 : i32
    return %c0_i32, %c0_i32_0 : i32, i32
  }
  func.func @transform_11(%arg0: i32) -> (i32, i32) {
    %c0_i32 = arith.constant 0 : i32
    %c0_i32_0 = arith.constant 0 : i32
    %c0_i32_1 = arith.constant 0 : i32
    return %c0_i32, %c0_i32_0 : i32, i32
  }
  func.func @transform_12(%arg0: i32) -> (i32, i32) {
    %c0_i32 = arith.constant 0 : i32
    %c0_i32_0 = arith.constant 0 : i32
    %c0_i32_1 = arith.constant 0 : i32
    return %c0_i32, %c0_i32_0 : i32, i32
  }
  func.func @transform_13(%arg0: i32) -> (i32, i32) {
    %c0_i32 = arith.constant 0 : i32
    %c0_i32_0 = arith.constant 0 : i32
    %c0_i32_1 = arith.constant 0 : i32
    return %c0_i32, %c0_i32_0 : i32, i32
  }
  func.func @transform_14(%arg0: i32) -> (i32, i32) {
    %c0_i32 = arith.constant 0 : i32
    %c0_i32_0 = arith.constant 0 : i32
    %c0_i32_1 = arith.constant 0 : i32
    return %c0_i32, %c0_i32_0 : i32, i32
  }
  func.func @transform_15(%arg0: i32) -> (i32, i32) {
    %c0_i32 = arith.constant 0 : i32
    %c0_i32_0 = arith.constant 0 : i32
    %c0_i32_1 = arith.constant 0 : i32
    return %c0_i32, %c0_i32_0 : i32, i32
  }
  func.func @transform_16(%arg0: i32) -> (i32, i32) {
    %c0_i32 = arith.constant 0 : i32
    %c0_i32_0 = arith.constant 0 : i32
    %c0_i32_1 = arith.constant 0 : i32
    return %c0_i32, %c0_i32_0 : i32, i32
  }
  func.func @transform_17(%arg0: i32) -> (i32, i32, i32) {
    %c0_i32 = arith.constant 0 : i32
    %c0_i32_0 = arith.constant 0 : i32
    %c0_i32_1 = arith.constant 0 : i32
    return %arg0, %c0_i32, %c0_i32_0 : i32, i32, i32
  }
}

</mosaic_0001>

<llo_original>
// kernel: cnn_forward_pallas.1
$region0: #{cnn_forward_pallas.1}
  #allocation0 [shape = 'u32[]', space=smem, size = 0x4, offset = 0x4, fixed_abs, tag = 'smem constant byte address 0x4 - core index']
  #allocation1 [shape = 'u32[144,128]{1,0:T(1,128)}', space=vmem, size = 0x12000, scoped, tag = 'internal scratch']
  #allocation2 [shape = 'f32[16,736]{1,0:T(8,128)}', space=vmem, size = 0xc000, scoped, tag = 'scratch operand']
  %s0 = inlined_call_operand.vmem [shape: f32[1,16,784], index: 0, kind: input, shape index: {}]
  %s1 = inlined_call_operand.vmem [shape: f32[16,144], index: 1, kind: input, shape index: {}]
  %s2 = inlined_call_operand.vmem [shape: f32[16,1], index: 2, kind: input, shape index: {}]
  %s3 = inlined_call_operand.vmem [shape: f32[16,144], index: 3, kind: input, shape index: {}]
  %s4 = inlined_call_operand.vmem [shape: f32[16,1], index: 4, kind: input, shape index: {}]
  %s5 = inlined_call_operand.vmem [shape: f32[1,16,144], index: 5, kind: input, shape index: {}]
  %s6 = inlined_call_operand.vmem [shape: f32[1,16,1], index: 6, kind: input, shape index: {}]
  %s7 = inlined_call_operand.vmem [shape: f32[32,144], index: 7, kind: input, shape index: {}]
  %s8 = inlined_call_operand.vmem [shape: f32[32,1], index: 8, kind: input, shape index: {}]
  %s9 = inlined_call_operand.vmem [shape: f32[1,672], index: 9, kind: input, shape index: {}]
  %s10 = inlined_call_operand.vmem [shape: f32[616,64], index: 10, kind: input, shape index: {}]
  %s11 = inlined_call_operand.vmem [shape: f32[32,4], index: 11, kind: input, shape index: {}]
  %s12 = inlined_call_operand.vmem [shape: f32[4,160], index: 12, kind: input, shape index: {}]
  %s13 = inlined_call_operand.vmem [shape: f32[32,160], index: 13, kind: input, shape index: {}]
  %s14 = inlined_call_operand.vmem [shape: f32[160,10], index: 14, kind: input, shape index: {}]
  %s15 = inlined_call_operand.vmem [shape: f32[2,32], index: 15, kind: input, shape index: {}]
  %s16 = inlined_call_operand.vmem [shape: f32[1,10], index: 16, kind: input, shape index: {}]
  %s17 = inlined_call_operand.hbm [shape: f32[1,2,10], index: 17, kind: output, shape index: {}]
  %s18 = sld [smem:[#allocation0]]
  $region78: #{cnn_forward_pallas.1} parent=0
    _
  %s20 = ssub.s32 1, %s18
  %s21 = scalar_select 0, %s20, %s18
  $region1: #{cnn_forward_pallas.1} parent=0
    #allocation3 [shape = 'u8[1024]{0}', space=vmem, size = 0x400, scoped, tag = 'output window, operand 0, single buffered']
    #allocation4 [shape = 's32[1]{0}', space=sflag, size = 0x4, scoped, tag = 'scoped memory for cnn_forward_pallas.1']
    %22 = vsyncpa [#allocation4], 0
    // Predicated region
    $region2: #{cnn_forward_pallas.1} parent=1 // pred_check
      _
    $region3: #{cnn_forward_pallas.1} parent=1 // pred_check_branch
      %24 = sbr.rel (0) target = $region5
    $region4: #{cnn_forward_pallas.1} parent=1 // pred_region
      _
    $region5: #{cnn_forward_pallas.1} parent=1 // pred_fallthru
      _
    // Predicated region
    $region6: #{cnn_forward_pallas.1} parent=1 // pred_check
      _
    $region7: #{cnn_forward_pallas.1} parent=1 // pred_check_branch
      %26 = sbr.rel (0) target = $region9
    $region8: #{cnn_forward_pallas.1} parent=1 // pred_region
      _
    $region9: #{cnn_forward_pallas.1} parent=1 // pred_fallthru
      _
    // Predicated region
    $region10: #{cnn_forward_pallas.1} parent=1 // pred_check
      _
    $region11: #{cnn_forward_pallas.1} parent=1 // pred_check_branch
      %28 = sbr.rel (0) target = $region13
    $region12: #{cnn_forward_pallas.1} parent=1 // pred_region
      _
    $region13: #{cnn_forward_pallas.1} parent=1 // pred_fallthru
      _
    // Predicated region
    $region14: #{cnn_forward_pallas.1} parent=1 // pred_check
      _
    $region15: #{cnn_forward_pallas.1} parent=1 // pred_check_branch
      %30 = sbr.rel (0) target = $region17
    $region16: #{cnn_forward_pallas.1} parent=1 // pred_region
      _
    $region17: #{cnn_forward_pallas.1} parent=1 // pred_fallthru
      _
    // Predicated region
    $region18: #{cnn_forward_pallas.1} parent=1 // pred_check
      _
    $region19: #{cnn_forward_pallas.1} parent=1 // pred_check_branch
      %32 = sbr.rel (0) target = $region21
    $region20: #{cnn_forward_pallas.1} parent=1 // pred_region
      _
    $region21: #{cnn_forward_pallas.1} parent=1 // pred_fallthru
      _
    // Predicated region
    $region22: #{cnn_forward_pallas.1} parent=1 // pred_check
      _
    $region23: #{cnn_forward_pallas.1} parent=1 // pred_check_branch
      %34 = sbr.rel (0) target = $region25
    $region24: #{cnn_forward_pallas.1} parent=1 // pred_region
      _
    $region25: #{cnn_forward_pallas.1} parent=1 // pred_fallthru
      _
    // Predicated region
    $region26: #{cnn_forward_pallas.1} parent=1 // pred_check
      _
    $region27: #{cnn_forward_pallas.1} parent=1 // pred_check_branch
      %36 = sbr.rel (0) target = $region29
    $region28: #{cnn_forward_pallas.1} parent=1 // pred_region
      _
    $region29: #{cnn_forward_pallas.1} parent=1 // pred_fallthru
      _
    // Predicated region
    $region30: #{cnn_forward_pallas.1} parent=1 // pred_check
      _
    $region31: #{cnn_forward_pallas.1} parent=1 // pred_check_branch
      %38 = sbr.rel (0) target = $region33
    $region32: #{cnn_forward_pallas.1} parent=1 // pred_region
      _
    $region33: #{cnn_forward_pallas.1} parent=1 // pred_fallthru
      _
    // Predicated region
    $region34: #{cnn_forward_pallas.1} parent=1 // pred_check
      _
    $region35: #{cnn_forward_pallas.1} parent=1 // pred_check_branch
      %40 = sbr.rel (0) target = $region37
    $region36: #{cnn_forward_pallas.1} parent=1 // pred_region
      _
    $region37: #{cnn_forward_pallas.1} parent=1 // pred_fallthru
      _
    // Predicated region
    $region38: #{cnn_forward_pallas.1} parent=1 // pred_check
      _
    $region39: #{cnn_forward_pallas.1} parent=1 // pred_check_branch
      %42 = sbr.rel (0) target = $region41
    $region40: #{cnn_forward_pallas.1} parent=1 // pred_region
      _
    $region41: #{cnn_forward_pallas.1} parent=1 // pred_fallthru
      _
    // Predicated region
    $region42: #{cnn_forward_pallas.1} parent=1 // pred_check
      _
    $region43: #{cnn_forward_pallas.1} parent=1 // pred_check_branch
      %44 = sbr.rel (0) target = $region45
    $region44: #{cnn_forward_pallas.1} parent=1 // pred_region
      _
    $region45: #{cnn_forward_pallas.1} parent=1 // pred_fallthru
      _
    // Predicated region
    $region46: #{cnn_forward_pallas.1} parent=1 // pred_check
      _
    $region47: #{cnn_forward_pallas.1} parent=1 // pred_check_branch
      %46 = sbr.rel (0) target = $region49
    $region48: #{cnn_forward_pallas.1} parent=1 // pred_region
      _
    $region49: #{cnn_forward_pallas.1} parent=1 // pred_fallthru
      _
    // Predicated region
    $region50: #{cnn_forward_pallas.1} parent=1 // pred_check
      _
    $region51: #{cnn_forward_pallas.1} parent=1 // pred_check_branch
      %48 = sbr.rel (0) target = $region53
    $region52: #{cnn_forward_pallas.1} parent=1 // pred_region
      _
    $region53: #{cnn_forward_pallas.1} parent=1 // pred_fallthru
      _
    // Predicated region
    $region54: #{cnn_forward_pallas.1} parent=1 // pred_check
      _
    $region55: #{cnn_forward_pallas.1} parent=1 // pred_check_branch
      %50 = sbr.rel (0) target = $region57
    $region56: #{cnn_forward_pallas.1} parent=1 // pred_region
      _
    $region57: #{cnn_forward_pallas.1} parent=1 // pred_fallthru
      _
    // Predicated region
    $region58: #{cnn_forward_pallas.1} parent=1 // pred_check
      _
    $region59: #{cnn_forward_pallas.1} parent=1 // pred_check_branch
      %52 = sbr.rel (0) target = $region61
    $region60: #{cnn_forward_pallas.1} parent=1 // pred_region
      _
    $region61: #{cnn_forward_pallas.1} parent=1 // pred_fallthru
      _
    // Predicated region
    $region62: #{cnn_forward_pallas.1} parent=1 // pred_check
      _
    $region63: #{cnn_forward_pallas.1} parent=1 // pred_check_branch
      %54 = sbr.rel (0) target = $region65
    $region64: #{cnn_forward_pallas.1} parent=1 // pred_region
      _
    $region65: #{cnn_forward_pallas.1} parent=1 // pred_fallthru
      _
    // Predicated region
    $region66: #{cnn_forward_pallas.1} parent=1 // pred_check
      _
    $region67: #{cnn_forward_pallas.1} parent=1 // pred_check_branch
      %56 = sbr.rel (0) target = $region69
    $region68: #{cnn_forward_pallas.1} parent=1 // pred_region
      _
    $region69: #{cnn_forward_pallas.1} parent=1 // pred_fallthru
      _
    %v57 = vld [vmem:[%s0] sm:$0xff]
    %v58 = vld [vmem:[%s0 + $0x8] sm:$0xff]
    %v59 = vld [vmem:[%s0 + $0x10] sm:$0xff]
    %v60 = vld [vmem:[%s0 + $0x18] sm:$0xff]
    %v61 = vld [vmem:[%s0 + $0x20] sm:$0xff]
    %v62 = vld [vmem:[%s0 + $0x28] sm:$0xff]
    %v63 = vld [vmem:[%s0 + $0x30] sm:$0xff]
    %v64 = vld [vmem:[%s0 + $0x38] sm:$0xff]
    %v65 = vld [vmem:[%s0 + $0x40] sm:$0xff]
    %v66 = vld [vmem:[%s0 + $0x48] sm:$0xff]
    %v67 = vld [vmem:[%s0 + $0x50] sm:$0xff]
    %v68 = vld [vmem:[%s0 + $0x58] sm:$0xff]
    %v69 = vld [vmem:[%s0 + $0x60] sm:$0xff]
    %v70 = vld [vmem:[%s0 + $0x68] sm:$0xff]
    %vm71 = vcmask 130048
    %v72 = vsel %vm71, %v63, 0.0
    %v73 = vsel %vm71, %v70, 0.0
    %v74 = vld [vmem:[%s1] sm:$0xff]
    %v75 = vld [vmem:[%s1 + $0x8] sm:$0xff]
    %v76 = vld [vmem:[%s1 + $0x10] sm:$0xff]
    %v77 = vld [vmem:[%s1 + $0x18] sm:$0xff]
    %v78 = vld [vmem:[%s2] sm:$0xff]
    %v79 = vld [vmem:[%s2 + $0x8] sm:$0xff]
    %92 = vrot.lane.b32.xlu0 %v57, 127
    %v93 = vpop.permute.xlu0 %92
    %94 = vrot.lane.b32.xlu0 %v58, 127
    %v95 = vpop.permute.xlu0 %94
    %96 = vrot.lane.b32.xlu0 %v59, 127
    %v97 = vpop.permute.xlu0 %96
    %98 = vrot.lane.b32.xlu0 %v60, 127
    %v99 = vpop.permute.xlu0 %98
    %100 = vrot.lane.b32.xlu0 %v61, 127
    %v101 = vpop.permute.xlu0 %100
    %102 = vrot.lane.b32.xlu0 %v62, 127
    %v103 = vpop.permute.xlu0 %102
    %104 = vrot.lane.b32.xlu0 %v64, 127
    %v105 = vpop.permute.xlu0 %104
    %106 = vrot.lane.b32.xlu0 %v65, 127
    %v107 = vpop.permute.xlu0 %106
    %108 = vrot.lane.b32.xlu0 %v66, 127
    %v109 = vpop.permute.xlu0 %108
    %110 = vrot.lane.b32.xlu0 %v67, 127
    %v111 = vpop.permute.xlu0 %110
    %112 = vrot.lane.b32.xlu0 %v68, 127
    %v113 = vpop.permute.xlu0 %112
    %114 = vrot.lane.b32.xlu0 %v69, 127
    %v115 = vpop.permute.xlu0 %114
    %vm116 = vcmask 1039360
    %v117 = vsel %vm116, %v93, %v95
    %v118 = vsel %vm116, %v95, %v97
    %v119 = vsel %vm116, %v97, %v99
    %v120 = vsel %vm116, %v99, %v101
    %v121 = vsel %vm116, %v101, %v103
    %v122 = vsel %vm116, %v105, %v107
    %v123 = vsel %vm116, %v107, %v109
    %v124 = vsel %vm116, %v109, %v111
    %v125 = vsel %vm116, %v111, %v113
    %v126 = vsel %vm116, %v113, %v115
    %139 = vrot.lane.b32.xlu0 %v57, 126
    %v140 = vpop.permute.xlu0 %139
    %141 = vrot.lane.b32.xlu0 %v58, 126
    %v142 = vpop.permute.xlu0 %141
    %143 = vrot.lane.b32.xlu0 %v59, 126
    %v144 = vpop.permute.xlu0 %143
    %145 = vrot.lane.b32.xlu0 %v60, 126
    %v146 = vpop.permute.xlu0 %145
    %147 = vrot.lane.b32.xlu0 %v61, 126
    %v148 = vpop.permute.xlu0 %147
    %149 = vrot.lane.b32.xlu0 %v62, 126
    %v150 = vpop.permute.xlu0 %149
    %151 = vrot.lane.b32.xlu0 %v64, 126
    %v152 = vpop.permute.xlu0 %151
    %153 = vrot.lane.b32.xlu0 %v65, 126
    %v154 = vpop.permute.xlu0 %153
    %155 = vrot.lane.b32.xlu0 %v66, 126
    %v156 = vpop.permute.xlu0 %155
    %157 = vrot.lane.b32.xlu0 %v67, 126
    %v158 = vpop.permute.xlu0 %157
    %159 = vrot.lane.b32.xlu0 %v68, 126
    %v160 = vpop.permute.xlu0 %159
    %161 = vrot.lane.b32.xlu0 %v69, 126
    %v162 = vpop.permute.xlu0 %161
    %vm163 = vcmask 1031168
    %v164 = vsel %vm163, %v140, %v142
    %v165 = vsel %vm163, %v142, %v144
    %v166 = vsel %vm163, %v144, %v146
    %v167 = vsel %vm163, %v146, %v148
    %v168 = vsel %vm163, %v148, %v150
    %v169 = vsel %vm163, %v152, %v154
    %v170 = vsel %vm163, %v154, %v156
    %v171 = vsel %vm163, %v156, %v158
    %v172 = vsel %vm163, %v158, %v160
    %v173 = vsel %vm163, %v160, %v162
    %186 = vrot.lane.b32.xlu0 %v57, 100
    %v187 = vpop.permute.xlu0 %186
    %188 = vrot.lane.b32.xlu0 %v58, 100
    %v189 = vpop.permute.xlu0 %188
    %190 = vrot.lane.b32.xlu0 %v59, 100
    %v191 = vpop.permute.xlu0 %190
    %192 = vrot.lane.b32.xlu0 %v60, 100
    %v193 = vpop.permute.xlu0 %192
    %194 = vrot.lane.b32.xlu0 %v61, 100
    %v195 = vpop.permute.xlu0 %194
    %196 = vrot.lane.b32.xlu0 %v62, 100
    %v197 = vpop.permute.xlu0 %196
    %198 = vrot.lane.b32.xlu0 %v64, 100
    %v199 = vpop.permute.xlu0 %198
    %200 = vrot.lane.b32.xlu0 %v65, 100
    %v201 = vpop.permute.xlu0 %200
    %202 = vrot.lane.b32.xlu0 %v66, 100
    %v203 = vpop.permute.xlu0 %202
    %204 = vrot.lane.b32.xlu0 %v67, 100
    %v205 = vpop.permute.xlu0 %204
    %206 = vrot.lane.b32.xlu0 %v68, 100
    %v207 = vpop.permute.xlu0 %206
    %208 = vrot.lane.b32.xlu0 %v69, 100
    %v209 = vpop.permute.xlu0 %208
    %vm210 = vcmask 818176
    %v211 = vsel %vm210, %v187, %v189
    %v212 = vsel %vm210, %v189, %v191
    %v213 = vsel %vm210, %v191, %v193
    %v214 = vsel %vm210, %v193, %v195
    %v215 = vsel %vm210, %v195, %v197
    %v216 = vsel %vm210, %v199, %v201
    %v217 = vsel %vm210, %v201, %v203
    %v218 = vsel %vm210, %v203, %v205
    %v219 = vsel %vm210, %v205, %v207
    %v220 = vsel %vm210, %v207, %v209
    %233 = vrot.lane.b32.xlu0 %v57, 99
    %v234 = vpop.permute.xlu0 %233
    %235 = vrot.lane.b32.xlu0 %v58, 99
    %v236 = vpop.permute.xlu0 %235
    %237 = vrot.lane.b32.xlu0 %v59, 99
    %v238 = vpop.permute.xlu0 %237
    %239 = vrot.lane.b32.xlu0 %v60, 99
    %v240 = vpop.permute.xlu0 %239
    %241 = vrot.lane.b32.xlu0 %v61, 99
    %v242 = vpop.permute.xlu0 %241
    %243 = vrot.lane.b32.xlu0 %v62, 99
    %v244 = vpop.permute.xlu0 %243
    %245 = vrot.lane.b32.xlu0 %v64, 99
    %v246 = vpop.permute.xlu0 %245
    %247 = vrot.lane.b32.xlu0 %v65, 99
    %v248 = vpop.permute.xlu0 %247
    %249 = vrot.lane.b32.xlu0 %v66, 99
    %v250 = vpop.permute.xlu0 %249
    %251 = vrot.lane.b32.xlu0 %v67, 99
    %v252 = vpop.permute.xlu0 %251
    %253 = vrot.lane.b32.xlu0 %v68, 99
    %v254 = vpop.permute.xlu0 %253
    %255 = vrot.lane.b32.xlu0 %v69, 99
    %v256 = vpop.permute.xlu0 %255
    %vm257 = vcmask 809984
    %v258 = vsel %vm257, %v234, %v236
    %v259 = vsel %vm257, %v236, %v238
    %v260 = vsel %vm257, %v238, %v240
    %v261 = vsel %vm257, %v240, %v242
    %v262 = vsel %vm257, %v242, %v244
    %v263 = vsel %vm257, %v246, %v248
    %v264 = vsel %vm257, %v248, %v250
    %v265 = vsel %vm257, %v250, %v252
    %v266 = vsel %vm257, %v252, %v254
    %v267 = vsel %vm257, %v254, %v256
    %280 = vrot.lane.b32.xlu0 %v57, 98
    %v281 = vpop.permute.xlu0 %280
    %282 = vrot.lane.b32.xlu0 %v58, 98
    %v283 = vpop.permute.xlu0 %282
    %284 = vrot.lane.b32.xlu0 %v59, 98
    %v285 = vpop.permute.xlu0 %284
    %286 = vrot.lane.b32.xlu0 %v60, 98
    %v287 = vpop.permute.xlu0 %286
    %288 = vrot.lane.b32.xlu0 %v61, 98
    %v289 = vpop.permute.xlu0 %288
    %290 = vrot.lane.b32.xlu0 %v62, 98
    %v291 = vpop.permute.xlu0 %290
    %292 = vrot.lane.b32.xlu0 %v64, 98
    %v293 = vpop.permute.xlu0 %292
    %294 = vrot.lane.b32.xlu0 %v65, 98
    %v295 = vpop.permute.xlu0 %294
    %296 = vrot.lane.b32.xlu0 %v66, 98
    %v297 = vpop.permute.xlu0 %296
    %298 = vrot.lane.b32.xlu0 %v67, 98
    %v299 = vpop.permute.xlu0 %298
    %300 = vrot.lane.b32.xlu0 %v68, 98
    %v301 = vpop.permute.xlu0 %300
    %302 = vrot.lane.b32.xlu0 %v69, 98
    %v303 = vpop.permute.xlu0 %302
    %vm304 = vcmask 801792
    %v305 = vsel %vm304, %v281, %v283
    %v306 = vsel %vm304, %v283, %v285
    %v307 = vsel %vm304, %v285, %v287
    %v308 = vsel %vm304, %v287, %v289
    %v309 = vsel %vm304, %v289, %v291
    %v310 = vsel %vm304, %v293, %v295
    %v311 = vsel %vm304, %v295, %v297
    %v312 = vsel %vm304, %v297, %v299
    %v313 = vsel %vm304, %v299, %v301
    %v314 = vsel %vm304, %v301, %v303
    %329 = vrot.lane.b32.xlu0 %v57, 72
    %v330 = vpop.permute.xlu0 %329
    %331 = vrot.lane.b32.xlu0 %v58, 72
    %v332 = vpop.permute.xlu0 %331
    %333 = vrot.lane.b32.xlu0 %v59, 72
    %v334 = vpop.permute.xlu0 %333
    %335 = vrot.lane.b32.xlu0 %v60, 72
    %v336 = vpop.permute.xlu0 %335
    %337 = vrot.lane.b32.xlu0 %v61, 72
    %v338 = vpop.permute.xlu0 %337
    %339 = vrot.lane.b32.xlu0 %v62, 72
    %v340 = vpop.permute.xlu0 %339
    %341 = vrot.lane.b32.xlu0 %v72, 72
    %v342 = vpop.permute.xlu0 %341
    %343 = vrot.lane.b32.xlu0 %v64, 72
    %v344 = vpop.permute.xlu0 %343
    %345 = vrot.lane.b32.xlu0 %v65, 72
    %v346 = vpop.permute.xlu0 %345
    %347 = vrot.lane.b32.xlu0 %v66, 72
    %v348 = vpop.permute.xlu0 %347
    %349 = vrot.lane.b32.xlu0 %v67, 72
    %v350 = vpop.permute.xlu0 %349
    %351 = vrot.lane.b32.xlu0 %v68, 72
    %v352 = vpop.permute.xlu0 %351
    %353 = vrot.lane.b32.xlu0 %v69, 72
    %v354 = vpop.permute.xlu0 %353
    %355 = vrot.lane.b32.xlu0 %v73, 72
    %v356 = vpop.permute.xlu0 %355
    %vm357 = vcmask 588800
    %v358 = vsel %vm357, %v330, %v332
    %v359 = vsel %vm357, %v332, %v334
    %v360 = vsel %vm357, %v334, %v336
    %v361 = vsel %vm357, %v336, %v338
    %v362 = vsel %vm357, %v338, %v340
    %v363 = vsel %vm357, %v340, %v342
    %v364 = vsel %vm357, %v344, %v346
    %v365 = vsel %vm357, %v346, %v348
    %v366 = vsel %vm357, %v348, %v350
    %v367 = vsel %vm357, %v350, %v352
    %v368 = vsel %vm357, %v352, %v354
    %v369 = vsel %vm357, %v354, %v356
    %382 = vrot.lane.b32.xlu0 %v57, 71
    %v383 = vpop.permute.xlu0 %382
    %384 = vrot.lane.b32.xlu0 %v58, 71
    %v385 = vpop.permute.xlu0 %384
    %386 = vrot.lane.b32.xlu0 %v59, 71
    %v387 = vpop.permute.xlu0 %386
    %388 = vrot.lane.b32.xlu0 %v60, 71
    %v389 = vpop.permute.xlu0 %388
    %390 = vrot.lane.b32.xlu0 %v61, 71
    %v391 = vpop.permute.xlu0 %390
    %392 = vrot.lane.b32.xlu0 %v62, 71
    %v393 = vpop.permute.xlu0 %392
    %394 = vrot.lane.b32.xlu0 %v72, 71
    %v395 = vpop.permute.xlu0 %394
    %396 = vrot.lane.b32.xlu0 %v64, 71
    %v397 = vpop.permute.xlu0 %396
    %398 = vrot.lane.b32.xlu0 %v65, 71
    %v399 = vpop.permute.xlu0 %398
    %400 = vrot.lane.b32.xlu0 %v66, 71
    %v401 = vpop.permute.xlu0 %400
    %402 = vrot.lane.b32.xlu0 %v67, 71
    %v403 = vpop.permute.xlu0 %402
    %404 = vrot.lane.b32.xlu0 %v68, 71
    %v405 = vpop.permute.xlu0 %404
    %406 = vrot.lane.b32.xlu0 %v69, 71
    %v407 = vpop.permute.xlu0 %406
    %408 = vrot.lane.b32.xlu0 %v73, 71
    %v409 = vpop.permute.xlu0 %408
    %vm410 = vcmask 580608
    %v411 = vsel %vm410, %v383, %v385
    %v412 = vsel %vm410, %v385, %v387
    %v413 = vsel %vm410, %v387, %v389
    %v414 = vsel %vm410, %v389, %v391
    %v415 = vsel %vm410, %v391, %v393
    %v416 = vsel %vm410, %v393, %v395
    %v417 = vsel %vm410, %v397, %v399
    %v418 = vsel %vm410, %v399, %v401
    %v419 = vsel %vm410, %v401, %v403
    %v420 = vsel %vm410, %v403, %v405
    %v421 = vsel %vm410, %v405, %v407
    %v422 = vsel %vm410, %v407, %v409
    %435 = vrot.lane.b32.xlu0 %v57, 70
    %v436 = vpop.permute.xlu0 %435
    %437 = vrot.lane.b32.xlu0 %v58, 70
    %v438 = vpop.permute.xlu0 %437
    %439 = vrot.lane.b32.xlu0 %v59, 70
    %v440 = vpop.permute.xlu0 %439
    %441 = vrot.lane.b32.xlu0 %v60, 70
    %v442 = vpop.permute.xlu0 %441
    %443 = vrot.lane.b32.xlu0 %v61, 70
    %v444 = vpop.permute.xlu0 %443
    %445 = vrot.lane.b32.xlu0 %v62, 70
    %v446 = vpop.permute.xlu0 %445
    %447 = vrot.lane.b32.xlu0 %v72, 70
    %v448 = vpop.permute.xlu0 %447
    %449 = vrot.lane.b32.xlu0 %v64, 70
    %v450 = vpop.permute.xlu0 %449
    %451 = vrot.lane.b32.xlu0 %v65, 70
    %v452 = vpop.permute.xlu0 %451
    %453 = vrot.lane.b32.xlu0 %v66, 70
    %v454 = vpop.permute.xlu0 %453
    %455 = vrot.lane.b32.xlu0 %v67, 70
    %v456 = vpop.permute.xlu0 %455
    %457 = vrot.lane.b32.xlu0 %v68, 70
    %v458 = vpop.permute.xlu0 %457
    %459 = vrot.lane.b32.xlu0 %v69, 70
    %v460 = vpop.permute.xlu0 %459
    %461 = vrot.lane.b32.xlu0 %v73, 70
    %v462 = vpop.permute.xlu0 %461
    %vm463 = vcmask 572416
    %v464 = vsel %vm463, %v436, %v438
    %v465 = vsel %vm463, %v438, %v440
    %v466 = vsel %vm463, %v440, %v442
    %v467 = vsel %vm463, %v442, %v444
    %v468 = vsel %vm463, %v444, %v446
    %v469 = vsel %vm463, %v446, %v448
    %v470 = vsel %vm463, %v450, %v452
    %v471 = vsel %vm463, %v452, %v454
    %v472 = vsel %vm463, %v454, %v456
    %v473 = vsel %vm463, %v456, %v458
    %v474 = vsel %vm463, %v458, %v460
    %v475 = vsel %vm463, %v460, %v462
    %489 = vset.pattern.permute.xlu0 0
    %490 = vperm.xlu0 %489, %v78
    %v491 = vpop.permute.xlu0 %490
    %494 = vset.pattern.permute.xlu0 0
    %495 = vperm.xlu0 %494, %v79
    %v496 = vpop.permute.xlu0 %495
    %v499 = vsel %vm71, %v75, 0
    %v502 = vsel %vm71, %v77, 0
    %504 = vmatprep.subr.mxu0 %v58
    %505 = vmatpush1.msra.mxu0 %v57
    %506 = vmatprep.subr.mxu0 %v65
    %507 = vmatpush1.msra.mxu0 %v64
    %508 = vmatprep.subr.mxu0 %v118
    %509 = vmatpush1.msra.mxu0 %v117
    %510 = vmatprep.subr.mxu0 %v123
    %511 = vmatpush1.msra.mxu0 %v122
    %512 = vmatprep.subr.mxu0 %v165
    %513 = vmatpush1.msra.mxu0 %v164
    %514 = vmatprep.subr.mxu0 %v170
    %515 = vmatpush1.msra.mxu0 %v169
    %516 = vmatprep.subr.mxu0 %v212
    %517 = vmatpush1.msra.mxu0 %v211
    %518 = vmatprep.subr.mxu0 %v217
    %519 = vmatpush1.msra.mxu0 %v216
    %520 = vmatprep.subr.mxu0 %v259
    %521 = vmatpush1.msra.mxu0 %v258
    %522 = vmatprep.subr.mxu0 %v264
    %523 = vmatpush1.msra.mxu0 %v263
    %524 = vmatprep.subr.mxu0 %v306
    %525 = vmatpush1.msra.mxu0 %v305
    %526 = vmatprep.subr.mxu0 %v311
    %527 = vmatpush1.msra.mxu0 %v310
    %528 = vmatprep.subr.mxu0 %v359
    %529 = vmatpush1.msra.mxu0 %v358
    %530 = vmatprep.subr.mxu0 %v365
    %531 = vmatpush1.msra.mxu0 %v364
    %532 = vmatprep.subr.mxu0 %v412
    %533 = vmatpush1.msra.mxu0 %v411
    %534 = vmatprep.subr.mxu0 %v418
    %535 = vmatpush1.msra.mxu0 %v417
    %536 = vmatprep.subr.mxu0 %v465
    %537 = vmatpush1.msra.mxu0 %v464
    %538 = vmatprep.subr.mxu0 %v471
    %539 = vmatpush1.msra.mxu0 %v470
    %540 = vmatprep.subr.mxu0 0.0
    %541 = vmatpush1.msra.mxu0 0.0
    %542 = vmatprep.subr.mxu0 0.0
    %543 = vmatpush1.msra.mxu0 0.0
    %544 = vmatprep.subr.mxu0 0.0
    %545 = vmatpush1.msra.mxu0 0.0
    %546 = vmatprep.subr.mxu0 0.0
    %547 = vmatpush1.msra.mxu0 0.0
    %548 = vmatprep.subr.mxu0 0.0
    %549 = vmatpush1.msra.mxu0 0.0
    %550 = vmatprep.subr.mxu0 0.0
    %551 = vmatpush1.msra.mxu0 0.0
    %552 = vmatprep.subr.mxu0 0.0
    %553 = vmatpush1.msra.mxu0 0.0
    %554 = vmatprep.subr.mxu0 0.0
    %555 = vmatpush1.msra.mxu0 0.0
    %556 = vmatprep.subr.mxu0 0.0
    %557 = vmatpush1.msra.mxu0 0.0
    %558 = vmatprep.subr.mxu0 0.0
    %559 = vmatpush1.msra.mxu0 0.0
    %560 = vmatprep.subr.mxu0 0.0
    %561 = vmatpush1.msra.mxu0 0.0
    %562 = vmatprep.subr.mxu0 0.0
    %563 = vmatpush1.msra.mxu0 0.0
    %564 = vmatprep.subr.mxu0 0.0
    %565 = vmatpush1.msra.mxu0 0.0
    %566 = vmatprep.subr.mxu0 0.0
    %567 = vmatpush1.msra.mxu0 0.0
    %568 = vmatprep.mubr.f32.mxu0 %v499
    %569 = vmatmul.mubr.f32.gmra.mrb[0].mxu0 %v74
    %v570 = vpop.f32.mrb[0].mxu0
    %v571 = vadd.f32 %v491, %v570
    %v572 = vpop.f32.mrb[0].mxu0
    %v573 = vadd.f32 %v491, %v572
    %574 = vmatprep.mubr.f32.mxu0 %v502
    %575 = vmatmul.mubr.f32.gmra.mrb[0].mxu0 %v76
    %v576 = vpop.f32.mrb[0].mxu0
    %v577 = vadd.f32 %v496, %v576
    %v578 = vpop.f32.mrb[0].mxu0
    %v579 = vadd.f32 %v496, %v578
    %580 = vdwg.mxu0
    %581 = vmatprep.subr.mxu0 %v60
    %582 = vmatpush1.msra.mxu0 %v59
    %583 = vmatprep.subr.mxu0 %v67
    %584 = vmatpush1.msra.mxu0 %v66
    %585 = vmatprep.subr.mxu0 %v120
    %586 = vmatpush1.msra.mxu0 %v119
    %587 = vmatprep.subr.mxu0 %v125
    %588 = vmatpush1.msra.mxu0 %v124
    %589 = vmatprep.subr.mxu0 %v167
    %590 = vmatpush1.msra.mxu0 %v166
    %591 = vmatprep.subr.mxu0 %v172
    %592 = vmatpush1.msra.mxu0 %v171
    %593 = vmatprep.subr.mxu0 %v214
    %594 = vmatpush1.msra.mxu0 %v213
    %595 = vmatprep.subr.mxu0 %v219
    %596 = vmatpush1.msra.mxu0 %v218
    %597 = vmatprep.subr.mxu0 %v261
    %598 = vmatpush1.msra.mxu0 %v260
    %599 = vmatprep.subr.mxu0 %v266
    %600 = vmatpush1.msra.mxu0 %v265
    %601 = vmatprep.subr.mxu0 %v308
    %602 = vmatpush1.msra.mxu0 %v307
    %603 = vmatprep.subr.mxu0 %v313
    %604 = vmatpush1.msra.mxu0 %v312
    %605 = vmatprep.subr.mxu0 %v361
    %606 = vmatpush1.msra.mxu0 %v360
    %607 = vmatprep.subr.mxu0 %v367
    %608 = vmatpush1.msra.mxu0 %v366
    %609 = vmatprep.subr.mxu0 %v414
    %610 = vmatpush1.msra.mxu0 %v413
    %611 = vmatprep.subr.mxu0 %v420
    %612 = vmatpush1.msra.mxu0 %v419
    %613 = vmatprep.subr.mxu0 %v467
    %614 = vmatpush1.msra.mxu0 %v466
    %615 = vmatprep.subr.mxu0 %v473
    %616 = vmatpush1.msra.mxu0 %v472
    %617 = vmatprep.subr.mxu0 0.0
    %618 = vmatpush1.msra.mxu0 0.0
    %619 = vmatprep.subr.mxu0 0.0
    %620 = vmatpush1.msra.mxu0 0.0
    %621 = vmatprep.subr.mxu0 0.0
    %622 = vmatpush1.msra.mxu0 0.0
    %623 = vmatprep.subr.mxu0 0.0
    %624 = vmatpush1.msra.mxu0 0.0
    %625 = vmatprep.subr.mxu0 0.0
    %626 = vmatpush1.msra.mxu0 0.0
    %627 = vmatprep.subr.mxu0 0.0
    %628 = vmatpush1.msra.mxu0 0.0
    %629 = vmatprep.subr.mxu0 0.0
    %630 = vmatpush1.msra.mxu0 0.0
    %631 = vmatprep.subr.mxu0 0.0
    %632 = vmatpush1.msra.mxu0 0.0
    %633 = vmatprep.subr.mxu0 0.0
    %634 = vmatpush1.msra.mxu0 0.0
    %635 = vmatprep.subr.mxu0 0.0
    %636 = vmatpush1.msra.mxu0 0.0
    %637 = vmatprep.subr.mxu0 0.0
    %638 = vmatpush1.msra.mxu0 0.0
    %639 = vmatprep.subr.mxu0 0.0
    %640 = vmatpush1.msra.mxu0 0.0
    %641 = vmatprep.subr.mxu0 0.0
    %642 = vmatpush1.msra.mxu0 0.0
    %643 = vmatprep.subr.mxu0 0.0
    %644 = vmatpush1.msra.mxu0 0.0
    %645 = vmatprep.mubr.f32.mxu0 %v499
    %646 = vmatmul.mubr.f32.gmra.mrb[0].mxu0 %v74
    %v647 = vpop.f32.mrb[0].mxu0
    %v648 = vadd.f32 %v491, %v647
    %v649 = vpop.f32.mrb[0].mxu0
    %v650 = vadd.f32 %v491, %v649
    %651 = vmatprep.mubr.f32.mxu0 %v502
    %652 = vmatmul.mubr.f32.gmra.mrb[0].mxu0 %v76
    %v653 = vpop.f32.mrb[0].mxu0
    %v654 = vadd.f32 %v496, %v653
    %v655 = vpop.f32.mrb[0].mxu0
    %v656 = vadd.f32 %v496, %v655
    %657 = vdwg.mxu0
    %658 = vmatprep.subr.mxu0 %v62
    %659 = vmatpush1.msra.mxu0 %v61
    %660 = vmatprep.subr.mxu0 %v69
    %661 = vmatpush1.msra.mxu0 %v68
    %662 = vmatprep.subr.mxu0 %v103
    %663 = vmatpush1.msra.mxu0 %v121
    %664 = vmatprep.subr.mxu0 %v115
    %665 = vmatpush1.msra.mxu0 %v126
    %666 = vmatprep.subr.mxu0 %v150
    %667 = vmatpush1.msra.mxu0 %v168
    %668 = vmatprep.subr.mxu0 %v162
    %669 = vmatpush1.msra.mxu0 %v173
    %670 = vmatprep.subr.mxu0 %v197
    %671 = vmatpush1.msra.mxu0 %v215
    %672 = vmatprep.subr.mxu0 %v209
    %673 = vmatpush1.msra.mxu0 %v220
    %674 = vmatprep.subr.mxu0 %v244
    %675 = vmatpush1.msra.mxu0 %v262
    %676 = vmatprep.subr.mxu0 %v256
    %677 = vmatpush1.msra.mxu0 %v267
    %678 = vmatprep.subr.mxu0 %v291
    %679 = vmatpush1.msra.mxu0 %v309
    %680 = vmatprep.subr.mxu0 %v303
    %681 = vmatpush1.msra.mxu0 %v314
    %682 = vmatprep.subr.mxu0 %v363
    %683 = vmatpush1.msra.mxu0 %v362
    %684 = vmatprep.subr.mxu0 %v369
    %685 = vmatpush1.msra.mxu0 %v368
    %686 = vmatprep.subr.mxu0 %v416
    %687 = vmatpush1.msra.mxu0 %v415
    %688 = vmatprep.subr.mxu0 %v422
    %689 = vmatpush1.msra.mxu0 %v421
    %690 = vmatprep.subr.mxu0 %v469
    %691 = vmatpush1.msra.mxu0 %v468
    %692 = vmatprep.subr.mxu0 %v475
    %693 = vmatpush1.msra.mxu0 %v474
    %694 = vmatprep.subr.mxu0 0.0
    %695 = vmatpush1.msra.mxu0 0.0
    %696 = vmatprep.subr.mxu0 0.0
    %697 = vmatpush1.msra.mxu0 0.0
    %698 = vmatprep.subr.mxu0 0.0
    %699 = vmatpush1.msra.mxu0 0.0
    %700 = vmatprep.subr.mxu0 0.0
    %701 = vmatpush1.msra.mxu0 0.0
    %702 = vmatprep.subr.mxu0 0.0
    %703 = vmatpush1.msra.mxu0 0.0
    %704 = vmatprep.subr.mxu0 0.0
    %705 = vmatpush1.msra.mxu0 0.0
    %706 = vmatprep.subr.mxu0 0.0
    %707 = vmatpush1.msra.mxu0 0.0
    %708 = vmatprep.subr.mxu0 0.0
    %709 = vmatpush1.msra.mxu0 0.0
    %710 = vmatprep.subr.mxu0 0.0
    %711 = vmatpush1.msra.mxu0 0.0
    %712 = vmatprep.subr.mxu0 0.0
    %713 = vmatpush1.msra.mxu0 0.0
    %714 = vmatprep.subr.mxu0 0.0
    %715 = vmatpush1.msra.mxu0 0.0
    %716 = vmatprep.subr.mxu0 0.0
    %717 = vmatpush1.msra.mxu0 0.0
    %718 = vmatprep.subr.mxu0 0.0
    %719 = vmatpush1.msra.mxu0 0.0
    %720 = vmatprep.subr.mxu0 0.0
    %721 = vmatpush1.msra.mxu0 0.0
    %722 = vmatprep.mubr.f32.mxu0 %v499
    %723 = vmatmul.mubr.f32.gmra.mrb[0].mxu0 %v74
    %v724 = vpop.f32.mrb[0].mxu0
    %v725 = vadd.f32 %v491, %v724
    %v726 = vpop.f32.mrb[0].mxu0
    %v727 = vadd.f32 %v491, %v726
    %728 = vmatprep.mubr.f32.mxu0 %v502
    %729 = vmatmul.mubr.f32.gmra.mrb[0].mxu0 %v76
    %v730 = vpop.f32.mrb[0].mxu0
    %v731 = vadd.f32 %v496, %v730
    %v732 = vpop.f32.mrb[0].mxu0
    %v733 = vadd.f32 %v496, %v732
    %734 = vdwg.mxu0
    %v735 = vmax.f32 %v571, 0.0
    %v736 = vmax.f32 %v573, 0.0
    %v737 = vmax.f32 %v648, 0.0
    %v738 = vmax.f32 %v650, 0.0
    %v739 = vmax.f32 %v725, 0.0
    %v740 = vmax.f32 %v727, 0.0
    %v741 = vmax.f32 %v577, 0.0
    %v742 = vmax.f32 %v579, 0.0
    %v743 = vmax.f32 %v654, 0.0
    %v744 = vmax.f32 %v656, 0.0
    %v745 = vmax.f32 %v731, 0.0
    %v746 = vmax.f32 %v733, 0.0
    %vm747 = vcmask 719872
    %v748 = vsel %vm747, %v740, 0.0
    %v749 = vsel %vm747, %v746, 0.0
    %v750 = vld [vmem:[%s3] sm:$0xff]
    %v751 = vld [vmem:[%s3 + $0x8] sm:$0xff]
    %v752 = vld [vmem:[%s3 + $0x10] sm:$0xff]
    %v753 = vld [vmem:[%s3 + $0x18] sm:$0xff]
    %v754 = vld [vmem:[%s4] sm:$0xff]
    %v755 = vld [vmem:[%s4 + $0x8] sm:$0xff]
    %768 = vrot.lane.b32.xlu0 %v735, 127
    %v769 = vpop.permute.xlu0 %768
    %770 = vrot.lane.b32.xlu0 %v736, 127
    %v771 = vpop.permute.xlu0 %770
    %772 = vrot.lane.b32.xlu0 %v737, 127
    %v773 = vpop.permute.xlu0 %772
    %774 = vrot.lane.b32.xlu0 %v738, 127
    %v775 = vpop.permute.xlu0 %774
    %776 = vrot.lane.b32.xlu0 %v739, 127
    %v777 = vpop.permute.xlu0 %776
    %778 = vrot.lane.b32.xlu0 %v748, 127
    %v779 = vpop.permute.xlu0 %778
    %780 = vrot.lane.b32.xlu0 %v741, 127
    %v781 = vpop.permute.xlu0 %780
    %782 = vrot.lane.b32.xlu0 %v742, 127
    %v783 = vpop.permute.xlu0 %782
    %784 = vrot.lane.b32.xlu0 %v743, 127
    %v785 = vpop.permute.xlu0 %784
    %786 = vrot.lane.b32.xlu0 %v744, 127
    %v787 = vpop.permute.xlu0 %786
    %788 = vrot.lane.b32.xlu0 %v745, 127
    %v789 = vpop.permute.xlu0 %788
    %790 = vrot.lane.b32.xlu0 %v749, 127
    %v791 = vpop.permute.xlu0 %790
    %v792 = vsel %vm116, %v769, %v771
    %v793 = vsel %vm116, %v771, %v773
    %v794 = vsel %vm116, %v773, %v775
    %v795 = vsel %vm116, %v775, %v777
    %v796 = vsel %vm116, %v777, %v779
    %v797 = vsel %vm116, %v781, %v783
    %v798 = vsel %vm116, %v783, %v785
    %v799 = vsel %vm116, %v785, %v787
    %v800 = vsel %vm116, %v787, %v789
    %v801 = vsel %vm116, %v789, %v791
    %814 = vrot.lane.b32.xlu0 %v735, 126
    %v815 = vpop.permute.xlu0 %814
    %816 = vrot.lane.b32.xlu0 %v736, 126
    %v817 = vpop.permute.xlu0 %816
    %818 = vrot.lane.b32.xlu0 %v737, 126
    %v819 = vpop.permute.xlu0 %818
    %820 = vrot.lane.b32.xlu0 %v738, 126
    %v821 = vpop.permute.xlu0 %820
    %822 = vrot.lane.b32.xlu0 %v739, 126
    %v823 = vpop.permute.xlu0 %822
    %824 = vrot.lane.b32.xlu0 %v748, 126
    %v825 = vpop.permute.xlu0 %824
    %826 = vrot.lane.b32.xlu0 %v741, 126
    %v827 = vpop.permute.xlu0 %826
    %828 = vrot.lane.b32.xlu0 %v742, 126
    %v829 = vpop.permute.xlu0 %828
    %830 = vrot.lane.b32.xlu0 %v743, 126
    %v831 = vpop.permute.xlu0 %830
    %832 = vrot.lane.b32.xlu0 %v744, 126
    %v833 = vpop.permute.xlu0 %832
    %834 = vrot.lane.b32.xlu0 %v745, 126
    %v835 = vpop.permute.xlu0 %834
    %836 = vrot.lane.b32.xlu0 %v749, 126
    %v837 = vpop.permute.xlu0 %836
    %v838 = vsel %vm163, %v815, %v817
    %v839 = vsel %vm163, %v817, %v819
    %v840 = vsel %vm163, %v819, %v821
    %v841 = vsel %vm163, %v821, %v823
    %v842 = vsel %vm163, %v823, %v825
    %v843 = vsel %vm163, %v827, %v829
    %v844 = vsel %vm163, %v829, %v831
    %v845 = vsel %vm163, %v831, %v833
    %v846 = vsel %vm163, %v833, %v835
    %v847 = vsel %vm163, %v835, %v837
    %860 = vrot.lane.b32.xlu0 %v735, 100
    %v861 = vpop.permute.xlu0 %860
    %862 = vrot.lane.b32.xlu0 %v736, 100
    %v863 = vpop.permute.xlu0 %862
    %864 = vrot.lane.b32.xlu0 %v737, 100
    %v865 = vpop.permute.xlu0 %864
    %866 = vrot.lane.b32.xlu0 %v738, 100
    %v867 = vpop.permute.xlu0 %866
    %868 = vrot.lane.b32.xlu0 %v739, 100
    %v869 = vpop.permute.xlu0 %868
    %870 = vrot.lane.b32.xlu0 %v748, 100
    %v871 = vpop.permute.xlu0 %870
    %872 = vrot.lane.b32.xlu0 %v741, 100
    %v873 = vpop.permute.xlu0 %872
    %874 = vrot.lane.b32.xlu0 %v742, 100
    %v875 = vpop.permute.xlu0 %874
    %876 = vrot.lane.b32.xlu0 %v743, 100
    %v877 = vpop.permute.xlu0 %876
    %878 = vrot.lane.b32.xlu0 %v744, 100
    %v879 = vpop.permute.xlu0 %878
    %880 = vrot.lane.b32.xlu0 %v745, 100
    %v881 = vpop.permute.xlu0 %880
    %882 = vrot.lane.b32.xlu0 %v749, 100
    %v883 = vpop.permute.xlu0 %882
    %v884 = vsel %vm210, %v861, %v863
    %v885 = vsel %vm210, %v863, %v865
    %v886 = vsel %vm210, %v865, %v867
    %v887 = vsel %vm210, %v867, %v869
    %v888 = vsel %vm210, %v869, %v871
    %v889 = vsel %vm210, %v873, %v875
    %v890 = vsel %vm210, %v875, %v877
    %v891 = vsel %vm210, %v877, %v879
    %v892 = vsel %vm210, %v879, %v881
    %v893 = vsel %vm210, %v881, %v883
    %906 = vrot.lane.b32.xlu0 %v735, 99
    %v907 = vpop.permute.xlu0 %906
    %908 = vrot.lane.b32.xlu0 %v736, 99
    %v909 = vpop.permute.xlu0 %908
    %910 = vrot.lane.b32.xlu0 %v737, 99
    %v911 = vpop.permute.xlu0 %910
    %912 = vrot.lane.b32.xlu0 %v738, 99
    %v913 = vpop.permute.xlu0 %912
    %914 = vrot.lane.b32.xlu0 %v739, 99
    %v915 = vpop.permute.xlu0 %914
    %916 = vrot.lane.b32.xlu0 %v748, 99
    %v917 = vpop.permute.xlu0 %916
    %918 = vrot.lane.b32.xlu0 %v741, 99
    %v919 = vpop.permute.xlu0 %918
    %920 = vrot.lane.b32.xlu0 %v742, 99
    %v921 = vpop.permute.xlu0 %920
    %922 = vrot.lane.b32.xlu0 %v743, 99
    %v923 = vpop.permute.xlu0 %922
    %924 = vrot.lane.b32.xlu0 %v744, 99
    %v925 = vpop.permute.xlu0 %924
    %926 = vrot.lane.b32.xlu0 %v745, 99
    %v927 = vpop.permute.xlu0 %926
    %928 = vrot.lane.b32.xlu0 %v749, 99
    %v929 = vpop.permute.xlu0 %928
    %v930 = vsel %vm257, %v907, %v909
    %v931 = vsel %vm257, %v909, %v911
    %v932 = vsel %vm257, %v911, %v913
    %v933 = vsel %vm257, %v913, %v915
    %v934 = vsel %vm257, %v915, %v917
    %v935 = vsel %vm257, %v919, %v921
    %v936 = vsel %vm257, %v921, %v923
    %v937 = vsel %vm257, %v923, %v925
    %v938 = vsel %vm257, %v925, %v927
    %v939 = vsel %vm257, %v927, %v929
    %952 = vrot.lane.b32.xlu0 %v735, 98
    %v953 = vpop.permute.xlu0 %952
    %954 = vrot.lane.b32.xlu0 %v736, 98
    %v955 = vpop.permute.xlu0 %954
    %956 = vrot.lane.b32.xlu0 %v737, 98
    %v957 = vpop.permute.xlu0 %956
    %958 = vrot.lane.b32.xlu0 %v738, 98
    %v959 = vpop.permute.xlu0 %958
    %960 = vrot.lane.b32.xlu0 %v739, 98
    %v961 = vpop.permute.xlu0 %960
    %962 = vrot.lane.b32.xlu0 %v748, 98
    %v963 = vpop.permute.xlu0 %962
    %964 = vrot.lane.b32.xlu0 %v741, 98
    %v965 = vpop.permute.xlu0 %964
    %966 = vrot.lane.b32.xlu0 %v742, 98
    %v967 = vpop.permute.xlu0 %966
    %968 = vrot.lane.b32.xlu0 %v743, 98
    %v969 = vpop.permute.xlu0 %968
    %970 = vrot.lane.b32.xlu0 %v744, 98
    %v971 = vpop.permute.xlu0 %970
    %972 = vrot.lane.b32.xlu0 %v745, 98
    %v973 = vpop.permute.xlu0 %972
    %974 = vrot.lane.b32.xlu0 %v749, 98
    %v975 = vpop.permute.xlu0 %974
    %v976 = vsel %vm304, %v953, %v955
    %v977 = vsel %vm304, %v955, %v957
    %v978 = vsel %vm304, %v957, %v959
    %v979 = vsel %vm304, %v959, %v961
    %v980 = vsel %vm304, %v961, %v963
    %v981 = vsel %vm304, %v965, %v967
    %v982 = vsel %vm304, %v967, %v969
    %v983 = vsel %vm304, %v969, %v971
    %v984 = vsel %vm304, %v971, %v973
    %v985 = vsel %vm304, %v973, %v975
    %998 = vrot.lane.b32.xlu0 %v735, 72
    %v999 = vpop.permute.xlu0 %998
    %1000 = vrot.lane.b32.xlu0 %v736, 72
    %v1001 = vpop.permute.xlu0 %1000
    %1002 = vrot.lane.b32.xlu0 %v737, 72
    %v1003 = vpop.permute.xlu0 %1002
    %1004 = vrot.lane.b32.xlu0 %v738, 72
    %v1005 = vpop.permute.xlu0 %1004
    %1006 = vrot.lane.b32.xlu0 %v739, 72
    %v1007 = vpop.permute.xlu0 %1006
    %1008 = vrot.lane.b32.xlu0 %v748, 72
    %v1009 = vpop.permute.xlu0 %1008
    %1010 = vrot.lane.b32.xlu0 %v741, 72
    %v1011 = vpop.permute.xlu0 %1010
    %1012 = vrot.lane.b32.xlu0 %v742, 72
    %v1013 = vpop.permute.xlu0 %1012
    %1014 = vrot.lane.b32.xlu0 %v743, 72
    %v1015 = vpop.permute.xlu0 %1014
    %1016 = vrot.lane.b32.xlu0 %v744, 72
    %v1017 = vpop.permute.xlu0 %1016
    %1018 = vrot.lane.b32.xlu0 %v745, 72
    %v1019 = vpop.permute.xlu0 %1018
    %1020 = vrot.lane.b32.xlu0 %v749, 72
    %v1021 = vpop.permute.xlu0 %1020
    %v1022 = vsel %vm357, %v999, %v1001
    %v1023 = vsel %vm357, %v1001, %v1003
    %v1024 = vsel %vm357, %v1003, %v1005
    %v1025 = vsel %vm357, %v1005, %v1007
    %v1026 = vsel %vm357, %v1007, %v1009
    %v1027 = vsel %vm357, %v1011, %v1013
    %v1028 = vsel %vm357, %v1013, %v1015
    %v1029 = vsel %vm357, %v1015, %v1017
    %v1030 = vsel %vm357, %v1017, %v1019
    %v1031 = vsel %vm357, %v1019, %v1021
    %1044 = vrot.lane.b32.xlu0 %v735, 71
    %v1045 = vpop.permute.xlu0 %1044
    %1046 = vrot.lane.b32.xlu0 %v736, 71
    %v1047 = vpop.permute.xlu0 %1046
    %1048 = vrot.lane.b32.xlu0 %v737, 71
    %v1049 = vpop.permute.xlu0 %1048
    %1050 = vrot.lane.b32.xlu0 %v738, 71
    %v1051 = vpop.permute.xlu0 %1050
    %1052 = vrot.lane.b32.xlu0 %v739, 71
    %v1053 = vpop.permute.xlu0 %1052
    %1054 = vrot.lane.b32.xlu0 %v748, 71
    %v1055 = vpop.permute.xlu0 %1054
    %1056 = vrot.lane.b32.xlu0 %v741, 71
    %v1057 = vpop.permute.xlu0 %1056
    %1058 = vrot.lane.b32.xlu0 %v742, 71
    %v1059 = vpop.permute.xlu0 %1058
    %1060 = vrot.lane.b32.xlu0 %v743, 71
    %v1061 = vpop.permute.xlu0 %1060
    %1062 = vrot.lane.b32.xlu0 %v744, 71
    %v1063 = vpop.permute.xlu0 %1062
    %1064 = vrot.lane.b32.xlu0 %v745, 71
    %v1065 = vpop.permute.xlu0 %1064
    %1066 = vrot.lane.b32.xlu0 %v749, 71
    %v1067 = vpop.permute.xlu0 %1066
    %v1068 = vsel %vm410, %v1045, %v1047
    %v1069 = vsel %vm410, %v1047, %v1049
    %v1070 = vsel %vm410, %v1049, %v1051
    %v1071 = vsel %vm410, %v1051, %v1053
    %v1072 = vsel %vm410, %v1053, %v1055
    %v1073 = vsel %vm410, %v1057, %v1059
    %v1074 = vsel %vm410, %v1059, %v1061
    %v1075 = vsel %vm410, %v1061, %v1063
    %v1076 = vsel %vm410, %v1063, %v1065
    %v1077 = vsel %vm410, %v1065, %v1067
    %1090 = vrot.lane.b32.xlu0 %v735, 70
    %v1091 = vpop.permute.xlu0 %1090
    %1092 = vrot.lane.b32.xlu0 %v736, 70
    %v1093 = vpop.permute.xlu0 %1092
    %1094 = vrot.lane.b32.xlu0 %v737, 70
    %v1095 = vpop.permute.xlu0 %1094
    %1096 = vrot.lane.b32.xlu0 %v738, 70
    %v1097 = vpop.permute.xlu0 %1096
    %1098 = vrot.lane.b32.xlu0 %v739, 70
    %v1099 = vpop.permute.xlu0 %1098
    %1100 = vrot.lane.b32.xlu0 %v748, 70
    %v1101 = vpop.permute.xlu0 %1100
    %1102 = vrot.lane.b32.xlu0 %v741, 70
    %v1103 = vpop.permute.xlu0 %1102
    %1104 = vrot.lane.b32.xlu0 %v742, 70
    %v1105 = vpop.permute.xlu0 %1104
    %1106 = vrot.lane.b32.xlu0 %v743, 70
    %v1107 = vpop.permute.xlu0 %1106
    %1108 = vrot.lane.b32.xlu0 %v744, 70
    %v1109 = vpop.permute.xlu0 %1108
    %1110 = vrot.lane.b32.xlu0 %v745, 70
    %v1111 = vpop.permute.xlu0 %1110
    %1112 = vrot.lane.b32.xlu0 %v749, 70
    %v1113 = vpop.permute.xlu0 %1112
    %v1114 = vsel %vm463, %v1091, %v1093
    %v1115 = vsel %vm463, %v1093, %v1095
    %v1116 = vsel %vm463, %v1095, %v1097
    %v1117 = vsel %vm463, %v1097, %v1099
    %v1118 = vsel %vm463, %v1099, %v1101
    %v1119 = vsel %vm463, %v1103, %v1105
    %v1120 = vsel %vm463, %v1105, %v1107
    %v1121 = vsel %vm463, %v1107, %v1109
    %v1122 = vsel %vm463, %v1109, %v1111
    %v1123 = vsel %vm463, %v1111, %v1113
    %1137 = vset.pattern.permute.xlu0 0
    %1138 = vperm.xlu0 %1137, %v754
    %v1139 = vpop.permute.xlu0 %1138
    %1142 = vset.pattern.permute.xlu0 0
    %1143 = vperm.xlu0 %1142, %v755
    %v1144 = vpop.permute.xlu0 %1143
    %v1147 = vsel %vm71, %v751, 0
    %v1150 = vsel %vm71, %v753, 0
    %1152 = vmatprep.subr.mxu0 %v736
    %1153 = vmatpush1.msra.mxu0 %v735
    %1154 = vmatprep.subr.mxu0 %v742
    %1155 = vmatpush1.msra.mxu0 %v741
    %1156 = vmatprep.subr.mxu0 %v793
    %1157 = vmatpush1.msra.mxu0 %v792
    %1158 = vmatprep.subr.mxu0 %v798
    %1159 = vmatpush1.msra.mxu0 %v797
    %1160 = vmatprep.subr.mxu0 %v839
    %1161 = vmatpush1.msra.mxu0 %v838
    %1162 = vmatprep.subr.mxu0 %v844
    %1163 = vmatpush1.msra.mxu0 %v843
    %1164 = vmatprep.subr.mxu0 %v885
    %1165 = vmatpush1.msra.mxu0 %v884
    %1166 = vmatprep.subr.mxu0 %v890
    %1167 = vmatpush1.msra.mxu0 %v889
    %1168 = vmatprep.subr.mxu0 %v931
    %1169 = vmatpush1.msra.mxu0 %v930
    %1170 = vmatprep.subr.mxu0 %v936
    %1171 = vmatpush1.msra.mxu0 %v935
    %1172 = vmatprep.subr.mxu0 %v977
    %1173 = vmatpush1.msra.mxu0 %v976
    %1174 = vmatprep.subr.mxu0 %v982
    %1175 = vmatpush1.msra.mxu0 %v981
    %1176 = vmatprep.subr.mxu0 %v1023
    %1177 = vmatpush1.msra.mxu0 %v1022
    %1178 = vmatprep.subr.mxu0 %v1028
    %1179 = vmatpush1.msra.mxu0 %v1027
    %1180 = vmatprep.subr.mxu0 %v1069
    %1181 = vmatpush1.msra.mxu0 %v1068
    %1182 = vmatprep.subr.mxu0 %v1074
    %1183 = vmatpush1.msra.mxu0 %v1073
    %1184 = vmatprep.subr.mxu0 %v1115
    %1185 = vmatpush1.msra.mxu0 %v1114
    %1186 = vmatprep.subr.mxu0 %v1120
    %1187 = vmatpush1.msra.mxu0 %v1119
    %1188 = vmatprep.subr.mxu0 0.0
    %1189 = vmatpush1.msra.mxu0 0.0
    %1190 = vmatprep.subr.mxu0 0.0
    %1191 = vmatpush1.msra.mxu0 0.0
    %1192 = vmatprep.subr.mxu0 0.0
    %1193 = vmatpush1.msra.mxu0 0.0
    %1194 = vmatprep.subr.mxu0 0.0
    %1195 = vmatpush1.msra.mxu0 0.0
    %1196 = vmatprep.subr.mxu0 0.0
    %1197 = vmatpush1.msra.mxu0 0.0
    %1198 = vmatprep.subr.mxu0 0.0
    %1199 = vmatpush1.msra.mxu0 0.0
    %1200 = vmatprep.subr.mxu0 0.0
    %1201 = vmatpush1.msra.mxu0 0.0
    %1202 = vmatprep.subr.mxu0 0.0
    %1203 = vmatpush1.msra.mxu0 0.0
    %1204 = vmatprep.subr.mxu0 0.0
    %1205 = vmatpush1.msra.mxu0 0.0
    %1206 = vmatprep.subr.mxu0 0.0
    %1207 = vmatpush1.msra.mxu0 0.0
    %1208 = vmatprep.subr.mxu0 0.0
    %1209 = vmatpush1.msra.mxu0 0.0
    %1210 = vmatprep.subr.mxu0 0.0
    %1211 = vmatpush1.msra.mxu0 0.0
    %1212 = vmatprep.subr.mxu0 0.0
    %1213 = vmatpush1.msra.mxu0 0.0
    %1214 = vmatprep.subr.mxu0 0.0
    %1215 = vmatpush1.msra.mxu0 0.0
    %1216 = vmatprep.mubr.f32.mxu0 %v1147
    %1217 = vmatmul.mubr.f32.gmra.mrb[0].mxu0 %v750
    %v1218 = vpop.f32.mrb[0].mxu0
    %v1219 = vadd.f32 %v1139, %v1218
    %v1220 = vpop.f32.mrb[0].mxu0
    %v1221 = vadd.f32 %v1139, %v1220
    %1222 = vmatprep.mubr.f32.mxu0 %v1150
    %1223 = vmatmul.mubr.f32.gmra.mrb[0].mxu0 %v752
    %v1224 = vpop.f32.mrb[0].mxu0
    %v1225 = vadd.f32 %v1144, %v1224
    %v1226 = vpop.f32.mrb[0].mxu0
    %v1227 = vadd.f32 %v1144, %v1226
    %1228 = vdwg.mxu0
    %1229 = vmatprep.subr.mxu0 %v738
    %1230 = vmatpush1.msra.mxu0 %v737
    %1231 = vmatprep.subr.mxu0 %v744
    %1232 = vmatpush1.msra.mxu0 %v743
    %1233 = vmatprep.subr.mxu0 %v795
    %1234 = vmatpush1.msra.mxu0 %v794
    %1235 = vmatprep.subr.mxu0 %v800
    %1236 = vmatpush1.msra.mxu0 %v799
    %1237 = vmatprep.subr.mxu0 %v841
    %1238 = vmatpush1.msra.mxu0 %v840
    %1239 = vmatprep.subr.mxu0 %v846
    %1240 = vmatpush1.msra.mxu0 %v845
    %1241 = vmatprep.subr.mxu0 %v887
    %1242 = vmatpush1.msra.mxu0 %v886
    %1243 = vmatprep.subr.mxu0 %v892
    %1244 = vmatpush1.msra.mxu0 %v891
    %1245 = vmatprep.subr.mxu0 %v933
    %1246 = vmatpush1.msra.mxu0 %v932
    %1247 = vmatprep.subr.mxu0 %v938
    %1248 = vmatpush1.msra.mxu0 %v937
    %1249 = vmatprep.subr.mxu0 %v979
    %1250 = vmatpush1.msra.mxu0 %v978
    %1251 = vmatprep.subr.mxu0 %v984
    %1252 = vmatpush1.msra.mxu0 %v983
    %1253 = vmatprep.subr.mxu0 %v1025
    %1254 = vmatpush1.msra.mxu0 %v1024
    %1255 = vmatprep.subr.mxu0 %v1030
    %1256 = vmatpush1.msra.mxu0 %v1029
    %1257 = vmatprep.subr.mxu0 %v1071
    %1258 = vmatpush1.msra.mxu0 %v1070
    %1259 = vmatprep.subr.mxu0 %v1076
    %1260 = vmatpush1.msra.mxu0 %v1075
    %1261 = vmatprep.subr.mxu0 %v1117
    %1262 = vmatpush1.msra.mxu0 %v1116
    %1263 = vmatprep.subr.mxu0 %v1122
    %1264 = vmatpush1.msra.mxu0 %v1121
    %1265 = vmatprep.subr.mxu0 0.0
    %1266 = vmatpush1.msra.mxu0 0.0
    %1267 = vmatprep.subr.mxu0 0.0
    %1268 = vmatpush1.msra.mxu0 0.0
    %1269 = vmatprep.subr.mxu0 0.0
    %1270 = vmatpush1.msra.mxu0 0.0
    %1271 = vmatprep.subr.mxu0 0.0
    %1272 = vmatpush1.msra.mxu0 0.0
    %1273 = vmatprep.subr.mxu0 0.0
    %1274 = vmatpush1.msra.mxu0 0.0
    %1275 = vmatprep.subr.mxu0 0.0
    %1276 = vmatpush1.msra.mxu0 0.0
    %1277 = vmatprep.subr.mxu0 0.0
    %1278 = vmatpush1.msra.mxu0 0.0
    %1279 = vmatprep.subr.mxu0 0.0
    %1280 = vmatpush1.msra.mxu0 0.0
    %1281 = vmatprep.subr.mxu0 0.0
    %1282 = vmatpush1.msra.mxu0 0.0
    %1283 = vmatprep.subr.mxu0 0.0
    %1284 = vmatpush1.msra.mxu0 0.0
    %1285 = vmatprep.subr.mxu0 0.0
    %1286 = vmatpush1.msra.mxu0 0.0
    %1287 = vmatprep.subr.mxu0 0.0
    %1288 = vmatpush1.msra.mxu0 0.0
    %1289 = vmatprep.subr.mxu0 0.0
    %1290 = vmatpush1.msra.mxu0 0.0
    %1291 = vmatprep.subr.mxu0 0.0
    %1292 = vmatpush1.msra.mxu0 0.0
    %1293 = vmatprep.mubr.f32.mxu0 %v1147
    %1294 = vmatmul.mubr.f32.gmra.mrb[0].mxu0 %v750
    %v1295 = vpop.f32.mrb[0].mxu0
    %v1296 = vadd.f32 %v1139, %v1295
    %v1297 = vpop.f32.mrb[0].mxu0
    %v1298 = vadd.f32 %v1139, %v1297
    %1299 = vmatprep.mubr.f32.mxu0 %v1150
    %1300 = vmatmul.mubr.f32.gmra.mrb[0].mxu0 %v752
    %v1301 = vpop.f32.mrb[0].mxu0
    %v1302 = vadd.f32 %v1144, %v1301
    %v1303 = vpop.f32.mrb[0].mxu0
    %v1304 = vadd.f32 %v1144, %v1303
    %1305 = vdwg.mxu0
    %1306 = vmatprep.subr.mxu0 %v748
    %1307 = vmatpush1.msra.mxu0 %v739
    %1308 = vmatprep.subr.mxu0 %v749
    %1309 = vmatpush1.msra.mxu0 %v745
    %1310 = vmatprep.subr.mxu0 %v779
    %1311 = vmatpush1.msra.mxu0 %v796
    %1312 = vmatprep.subr.mxu0 %v791
    %1313 = vmatpush1.msra.mxu0 %v801
    %1314 = vmatprep.subr.mxu0 %v825
    %1315 = vmatpush1.msra.mxu0 %v842
    %1316 = vmatprep.subr.mxu0 %v837
    %1317 = vmatpush1.msra.mxu0 %v847
    %1318 = vmatprep.subr.mxu0 %v871
    %1319 = vmatpush1.msra.mxu0 %v888
    %1320 = vmatprep.subr.mxu0 %v883
    %1321 = vmatpush1.msra.mxu0 %v893
    %1322 = vmatprep.subr.mxu0 %v917
    %1323 = vmatpush1.msra.mxu0 %v934
    %1324 = vmatprep.subr.mxu0 %v929
    %1325 = vmatpush1.msra.mxu0 %v939
    %1326 = vmatprep.subr.mxu0 %v963
    %1327 = vmatpush1.msra.mxu0 %v980
    %1328 = vmatprep.subr.mxu0 %v975
    %1329 = vmatpush1.msra.mxu0 %v985
    %1330 = vmatprep.subr.mxu0 %v1009
    %1331 = vmatpush1.msra.mxu0 %v1026
    %1332 = vmatprep.subr.mxu0 %v1021
    %1333 = vmatpush1.msra.mxu0 %v1031
    %1334 = vmatprep.subr.mxu0 %v1055
    %1335 = vmatpush1.msra.mxu0 %v1072
    %1336 = vmatprep.subr.mxu0 %v1067
    %1337 = vmatpush1.msra.mxu0 %v1077
    %1338 = vmatprep.subr.mxu0 %v1101
    %1339 = vmatpush1.msra.mxu0 %v1118
    %1340 = vmatprep.subr.mxu0 %v1113
    %1341 = vmatpush1.msra.mxu0 %v1123
    %1342 = vmatprep.subr.mxu0 0.0
    %1343 = vmatpush1.msra.mxu0 0.0
    %1344 = vmatprep.subr.mxu0 0.0
    %1345 = vmatpush1.msra.mxu0 0.0
    %1346 = vmatprep.subr.mxu0 0.0
    %1347 = vmatpush1.msra.mxu0 0.0
    %1348 = vmatprep.subr.mxu0 0.0
    %1349 = vmatpush1.msra.mxu0 0.0
    %1350 = vmatprep.subr.mxu0 0.0
    %1351 = vmatpush1.msra.mxu0 0.0
    %1352 = vmatprep.subr.mxu0 0.0
    %1353 = vmatpush1.msra.mxu0 0.0
    %1354 = vmatprep.subr.mxu0 0.0
    %1355 = vmatpush1.msra.mxu0 0.0
    %1356 = vmatprep.subr.mxu0 0.0
    %1357 = vmatpush1.msra.mxu0 0.0
    %1358 = vmatprep.subr.mxu0 0.0
    %1359 = vmatpush1.msra.mxu0 0.0
    %1360 = vmatprep.subr.mxu0 0.0
    %1361 = vmatpush1.msra.mxu0 0.0
    %1362 = vmatprep.subr.mxu0 0.0
    %1363 = vmatpush1.msra.mxu0 0.0
    %1364 = vmatprep.subr.mxu0 0.0
    %1365 = vmatpush1.msra.mxu0 0.0
    %1366 = vmatprep.subr.mxu0 0.0
    %1367 = vmatpush1.msra.mxu0 0.0
    %1368 = vmatprep.subr.mxu0 0.0
    %1369 = vmatpush1.msra.mxu0 0.0
    %1370 = vmatprep.mubr.f32.mxu0 %v1147
    %1371 = vmatmul.mubr.f32.gmra.mrb[0].mxu0 %v750
    %v1372 = vpop.f32.mrb[0].mxu0
    %v1373 = vadd.f32 %v1139, %v1372
    %v1374 = vpop.f32.mrb[0].mxu0
    %v1375 = vadd.f32 %v1139, %v1374
    %1376 = vmatprep.mubr.f32.mxu0 %v1150
    %1377 = vmatmul.mubr.f32.gmra.mrb[0].mxu0 %v752
    %v1378 = vpop.f32.mrb[0].mxu0
    %v1379 = vadd.f32 %v1144, %v1378
    %v1380 = vpop.f32.mrb[0].mxu0
    %v1381 = vadd.f32 %v1144, %v1380
    %1382 = vdwg.mxu0
    %v1383 = vmax.f32 %v1219, 0.0
    %v1384 = vmax.f32 %v1221, 0.0
    %v1385 = vmax.f32 %v1296, 0.0
    %v1386 = vmax.f32 %v1298, 0.0
    %v1387 = vmax.f32 %v1373, 0.0
    %v1388 = vmax.f32 %v1375, 0.0
    %v1389 = vmax.f32 %v1225, 0.0
    %v1390 = vmax.f32 %v1227, 0.0
    %v1391 = vmax.f32 %v1302, 0.0
    %v1392 = vmax.f32 %v1304, 0.0
    %v1393 = vmax.f32 %v1379, 0.0
    %v1394 = vmax.f32 %v1381, 0.0
    %vm1395 = vcmask 236544
    %1396 = vst.msk [vmem:[#allocation2] sm:$0xff] %vm1395, 0.0
    %1397 = vst.msk [vmem:[#allocation2 + $0x30] sm:$0xff] %vm1395, 0.0
    %vm1398 = vcmask 785896
    %1399 = vst.msk [vmem:[#allocation2 + $0x28] sm:$0xff] %vm1398, 0.0
    %1400 = vst.msk [vmem:[#allocation2 + $0x58] sm:$0xff] %vm1398, 0.0
    %v1401 = vld [vmem:[%s9] sm:$0x3f]
    %v1403 = vlaneseq
    %v1404 = vshrl.u32 %v1403, 7
    %v1405 = vsub.s32 0, %v1404
    %v1406 = vrot.slane %v1401, %v1405
    %v1407 = vlaneseq
    %v1408 = vshrl.u32 %v1407, 7
    %v1409 = vsub.s32 1, %v1408
    %v1410 = vrot.slane %v1401, %v1409
    %v1411 = vlaneseq
    %v1412 = vshrl.u32 %v1411, 7
    %v1413 = vsub.s32 2, %v1412
    %v1414 = vrot.slane %v1401, %v1413
    %v1415 = vlaneseq
    %v1416 = vshrl.u32 %v1415, 7
    %v1417 = vsub.s32 3, %v1416
    %v1418 = vrot.slane %v1401, %v1417
    %v1419 = vlaneseq
    %v1420 = vshrl.u32 %v1419, 7
    %v1421 = vsub.s32 4, %v1420
    %v1422 = vrot.slane %v1401, %v1421
    %v1423 = vlaneseq
    %v1424 = vshrl.u32 %v1423, 7
    %v1425 = vsub.s32 5, %v1424
    %v1426 = vrot.slane %v1401, %v1425
    %v1433 = vmul.f32 %v1383, %v1406
    %v1434 = vmul.f32 %v1384, %v1410
    %v1435 = vmul.f32 %v1385, %v1414
    %v1436 = vmul.f32 %v1386, %v1418
    %v1437 = vmul.f32 %v1387, %v1422
    %v1438 = vmul.f32 %v1388, %v1426
    %v1439 = vmul.f32 %v1389, %v1406
    %v1440 = vmul.f32 %v1390, %v1410
    %v1441 = vmul.f32 %v1391, %v1414
    %v1442 = vmul.f32 %v1392, %v1418
    %v1443 = vmul.f32 %v1393, %v1422
    %v1444 = vmul.f32 %v1394, %v1426
    %1457 = vrot.lane.b32.xlu0 %v1433, 29
    %v1458 = vpop.permute.xlu0 %1457
    %1459 = vrot.lane.b32.xlu0 %v1434, 29
    %v1460 = vpop.permute.xlu0 %1459
    %1461 = vrot.lane.b32.xlu0 %v1435, 29
    %v1462 = vpop.permute.xlu0 %1461
    %1463 = vrot.lane.b32.xlu0 %v1436, 29
    %v1464 = vpop.permute.xlu0 %1463
    %1465 = vrot.lane.b32.xlu0 %v1437, 29
    %v1466 = vpop.permute.xlu0 %1465
    %1467 = vrot.lane.b32.xlu0 %v1438, 29
    %v1468 = vpop.permute.xlu0 %1467
    %1469 = vrot.lane.b32.xlu0 %v1439, 29
    %v1470 = vpop.permute.xlu0 %1469
    %1471 = vrot.lane.b32.xlu0 %v1440, 29
    %v1472 = vpop.permute.xlu0 %1471
    %1473 = vrot.lane.b32.xlu0 %v1441, 29
    %v1474 = vpop.permute.xlu0 %1473
    %1475 = vrot.lane.b32.xlu0 %v1442, 29
    %v1476 = vpop.permute.xlu0 %1475
    %1477 = vrot.lane.b32.xlu0 %v1443, 29
    %v1478 = vpop.permute.xlu0 %1477
    %1479 = vrot.lane.b32.xlu0 %v1444, 29
    %v1480 = vpop.permute.xlu0 %1479
    %v1481 = vsel %vm1395, %v1458, %v1460
    %v1482 = vsel %vm1395, %v1460, %v1462
    %v1483 = vsel %vm1395, %v1462, %v1464
    %v1484 = vsel %vm1395, %v1464, %v1466
    %v1485 = vsel %vm1395, %v1466, %v1468
    %v1486 = vsel %vm1395, %v1470, %v1472
    %v1487 = vsel %vm1395, %v1472, %v1474
    %v1488 = vsel %vm1395, %v1474, %v1476
    %v1489 = vsel %vm1395, %v1476, %v1478
    %v1490 = vsel %vm1395, %v1478, %v1480
    %vm1503 = vcmask 1047784
    %1504 = vst.msk [vmem:[#allocation2] sm:$0xff] %vm1503, %v1458
    %1505 = vst [vmem:[#allocation2 + $0x8] sm:$0xff] %v1481
    %1506 = vst [vmem:[#allocation2 + $0x10] sm:$0xff] %v1482
    %1507 = vst [vmem:[#allocation2 + $0x18] sm:$0xff] %v1483
    %1508 = vst [vmem:[#allocation2 + $0x20] sm:$0xff] %v1484
    %vm1509 = vcmask 498688
    %1510 = vst.msk [vmem:[#allocation2 + $0x28] sm:$0xff] %vm1509, %v1485
    %1511 = vst.msk [vmem:[#allocation2 + $0x30] sm:$0xff] %vm1503, %v1470
    %1512 = vst [vmem:[#allocation2 + $0x38] sm:$0xff] %v1486
    %1513 = vst [vmem:[#allocation2 + $0x40] sm:$0xff] %v1487
    %1514 = vst [vmem:[#allocation2 + $0x48] sm:$0xff] %v1488
    %1515 = vst [vmem:[#allocation2 + $0x50] sm:$0xff] %v1489
    %1516 = vst.msk [vmem:[#allocation2 + $0x58] sm:$0xff] %vm1509, %v1490
    %v1517 = vld [vmem:[%s5] sm:$0xff]
    %v1518 = vld [vmem:[%s5 + $0x8] sm:$0xff]
    %v1519 = vld [vmem:[%s5 + $0x10] sm:$0xff]
    %v1520 = vld [vmem:[%s5 + $0x18] sm:$0xff]
    %v1521 = vld [vmem:[%s6] sm:$0xff]
    %v1522 = vld [vmem:[%s6 + $0x8] sm:$0xff]
    %v1523 = vld [vmem:[#allocation2] sm:$0xff]
    %v1524 = vld [vmem:[#allocation2 + $0x8] sm:$0xff]
    %v1525 = vld [vmem:[#allocation2 + $0x10] sm:$0xff]
    %v1526 = vld [vmem:[#allocation2 + $0x18] sm:$0xff]
    %v1527 = vld [vmem:[#allocation2 + $0x20] sm:$0xff]
    %v1528 = vld [vmem:[#allocation2 + $0x28] sm:$0xff]
    %v1529 = vld [vmem:[#allocation2 + $0x30] sm:$0xff]
    %v1530 = vld [vmem:[#allocation2 + $0x38] sm:$0xff]
    %v1531 = vld [vmem:[#allocation2 + $0x40] sm:$0xff]
    %v1532 = vld [vmem:[#allocation2 + $0x48] sm:$0xff]
    %v1533 = vld [vmem:[#allocation2 + $0x50] sm:$0xff]
    %v1534 = vld [vmem:[#allocation2 + $0x58] sm:$0xff]
    %1547 = vrot.lane.b32.xlu0 %v1523, 127
    %v1548 = vpop.permute.xlu0 %1547
    %1549 = vrot.lane.b32.xlu0 %v1524, 127
    %v1550 = vpop.permute.xlu0 %1549
    %1551 = vrot.lane.b32.xlu0 %v1525, 127
    %v1552 = vpop.permute.xlu0 %1551
    %1553 = vrot.lane.b32.xlu0 %v1526, 127
    %v1554 = vpop.permute.xlu0 %1553
    %1555 = vrot.lane.b32.xlu0 %v1527, 127
    %v1556 = vpop.permute.xlu0 %1555
    %1557 = vrot.lane.b32.xlu0 %v1528, 127
    %v1558 = vpop.permute.xlu0 %1557
    %1559 = vrot.lane.b32.xlu0 %v1529, 127
    %v1560 = vpop.permute.xlu0 %1559
    %1561 = vrot.lane.b32.xlu0 %v1530, 127
    %v1562 = vpop.permute.xlu0 %1561
    %1563 = vrot.lane.b32.xlu0 %v1531, 127
    %v1564 = vpop.permute.xlu0 %1563
    %1565 = vrot.lane.b32.xlu0 %v1532, 127
    %v1566 = vpop.permute.xlu0 %1565
    %1567 = vrot.lane.b32.xlu0 %v1533, 127
    %v1568 = vpop.permute.xlu0 %1567
    %1569 = vrot.lane.b32.xlu0 %v1534, 127
    %v1570 = vpop.permute.xlu0 %1569
    %v1571 = vsel %vm116, %v1548, %v1550
    %v1572 = vsel %vm116, %v1550, %v1552
    %v1573 = vsel %vm116, %v1552, %v1554
    %v1574 = vsel %vm116, %v1554, %v1556
    %v1575 = vsel %vm116, %v1556, %v1558
    %v1576 = vsel %vm116, %v1560, %v1562
    %v1577 = vsel %vm116, %v1562, %v1564
    %v1578 = vsel %vm116, %v1564, %v1566
    %v1579 = vsel %vm116, %v1566, %v1568
    %v1580 = vsel %vm116, %v1568, %v1570
    %1593 = vrot.lane.b32.xlu0 %v1523, 126
    %v1594 = vpop.permute.xlu0 %1593
    %1595 = vrot.lane.b32.xlu0 %v1524, 126
    %v1596 = vpop.permute.xlu0 %1595
    %1597 = vrot.lane.b32.xlu0 %v1525, 126
    %v1598 = vpop.permute.xlu0 %1597
    %1599 = vrot.lane.b32.xlu0 %v1526, 126
    %v1600 = vpop.permute.xlu0 %1599
    %1601 = vrot.lane.b32.xlu0 %v1527, 126
    %v1602 = vpop.permute.xlu0 %1601
    %1603 = vrot.lane.b32.xlu0 %v1528, 126
    %v1604 = vpop.permute.xlu0 %1603
    %1605 = vrot.lane.b32.xlu0 %v1529, 126
    %v1606 = vpop.permute.xlu0 %1605
    %1607 = vrot.lane.b32.xlu0 %v1530, 126
    %v1608 = vpop.permute.xlu0 %1607
    %1609 = vrot.lane.b32.xlu0 %v1531, 126
    %v1610 = vpop.permute.xlu0 %1609
    %1611 = vrot.lane.b32.xlu0 %v1532, 126
    %v1612 = vpop.permute.xlu0 %1611
    %1613 = vrot.lane.b32.xlu0 %v1533, 126
    %v1614 = vpop.permute.xlu0 %1613
    %1615 = vrot.lane.b32.xlu0 %v1534, 126
    %v1616 = vpop.permute.xlu0 %1615
    %v1617 = vsel %vm163, %v1594, %v1596
    %v1618 = vsel %vm163, %v1596, %v1598
    %v1619 = vsel %vm163, %v1598, %v1600
    %v1620 = vsel %vm163, %v1600, %v1602
    %v1621 = vsel %vm163, %v1602, %v1604
    %v1622 = vsel %vm163, %v1606, %v1608
    %v1623 = vsel %vm163, %v1608, %v1610
    %v1624 = vsel %vm163, %v1610, %v1612
    %v1625 = vsel %vm163, %v1612, %v1614
    %v1626 = vsel %vm163, %v1614, %v1616
    %1639 = vrot.lane.b32.xlu0 %v1523, 100
    %v1640 = vpop.permute.xlu0 %1639
    %1641 = vrot.lane.b32.xlu0 %v1524, 100
    %v1642 = vpop.permute.xlu0 %1641
    %1643 = vrot.lane.b32.xlu0 %v1525, 100
    %v1644 = vpop.permute.xlu0 %1643
    %1645 = vrot.lane.b32.xlu0 %v1526, 100
    %v1646 = vpop.permute.xlu0 %1645
    %1647 = vrot.lane.b32.xlu0 %v1527, 100
    %v1648 = vpop.permute.xlu0 %1647
    %1649 = vrot.lane.b32.xlu0 %v1528, 100
    %v1650 = vpop.permute.xlu0 %1649
    %1651 = vrot.lane.b32.xlu0 %v1529, 100
    %v1652 = vpop.permute.xlu0 %1651
    %1653 = vrot.lane.b32.xlu0 %v1530, 100
    %v1654 = vpop.permute.xlu0 %1653
    %1655 = vrot.lane.b32.xlu0 %v1531, 100
    %v1656 = vpop.permute.xlu0 %1655
    %1657 = vrot.lane.b32.xlu0 %v1532, 100
    %v1658 = vpop.permute.xlu0 %1657
    %1659 = vrot.lane.b32.xlu0 %v1533, 100
    %v1660 = vpop.permute.xlu0 %1659
    %1661 = vrot.lane.b32.xlu0 %v1534, 100
    %v1662 = vpop.permute.xlu0 %1661
    %v1663 = vsel %vm210, %v1640, %v1642
    %v1664 = vsel %vm210, %v1642, %v1644
    %v1665 = vsel %vm210, %v1644, %v1646
    %v1666 = vsel %vm210, %v1646, %v1648
    %v1667 = vsel %vm210, %v1648, %v1650
    %v1668 = vsel %vm210, %v1652, %v1654
    %v1669 = vsel %vm210, %v1654, %v1656
    %v1670 = vsel %vm210, %v1656, %v1658
    %v1671 = vsel %vm210, %v1658, %v1660
    %v1672 = vsel %vm210, %v1660, %v1662
    %1685 = vrot.lane.b32.xlu0 %v1523, 99
    %v1686 = vpop.permute.xlu0 %1685
    %1687 = vrot.lane.b32.xlu0 %v1524, 99
    %v1688 = vpop.permute.xlu0 %1687
    %1689 = vrot.lane.b32.xlu0 %v1525, 99
    %v1690 = vpop.permute.xlu0 %1689
    %1691 = vrot.lane.b32.xlu0 %v1526, 99
    %v1692 = vpop.permute.xlu0 %1691
    %1693 = vrot.lane.b32.xlu0 %v1527, 99
    %v1694 = vpop.permute.xlu0 %1693
    %1695 = vrot.lane.b32.xlu0 %v1528, 99
    %v1696 = vpop.permute.xlu0 %1695
    %1697 = vrot.lane.b32.xlu0 %v1529, 99
    %v1698 = vpop.permute.xlu0 %1697
    %1699 = vrot.lane.b32.xlu0 %v1530, 99
    %v1700 = vpop.permute.xlu0 %1699
    %1701 = vrot.lane.b32.xlu0 %v1531, 99
    %v1702 = vpop.permute.xlu0 %1701
    %1703 = vrot.lane.b32.xlu0 %v1532, 99
    %v1704 = vpop.permute.xlu0 %1703
    %1705 = vrot.lane.b32.xlu0 %v1533, 99
    %v1706 = vpop.permute.xlu0 %1705
    %1707 = vrot.lane.b32.xlu0 %v1534, 99
    %v1708 = vpop.permute.xlu0 %1707
    %v1709 = vsel %vm257, %v1686, %v1688
    %v1710 = vsel %vm257, %v1688, %v1690
    %v1711 = vsel %vm257, %v1690, %v1692
    %v1712 = vsel %vm257, %v1692, %v1694
    %v1713 = vsel %vm257, %v1694, %v1696
    %v1714 = vsel %vm257, %v1698, %v1700
    %v1715 = vsel %vm257, %v1700, %v1702
    %v1716 = vsel %vm257, %v1702, %v1704
    %v1717 = vsel %vm257, %v1704, %v1706
    %v1718 = vsel %vm257, %v1706, %v1708
    %1731 = vrot.lane.b32.xlu0 %v1523, 98
    %v1732 = vpop.permute.xlu0 %1731
    %1733 = vrot.lane.b32.xlu0 %v1524, 98
    %v1734 = vpop.permute.xlu0 %1733
    %1735 = vrot.lane.b32.xlu0 %v1525, 98
    %v1736 = vpop.permute.xlu0 %1735
    %1737 = vrot.lane.b32.xlu0 %v1526, 98
    %v1738 = vpop.permute.xlu0 %1737
    %1739 = vrot.lane.b32.xlu0 %v1527, 98
    %v1740 = vpop.permute.xlu0 %1739
    %1741 = vrot.lane.b32.xlu0 %v1528, 98
    %v1742 = vpop.permute.xlu0 %1741
    %1743 = vrot.lane.b32.xlu0 %v1529, 98
    %v1744 = vpop.permute.xlu0 %1743
    %1745 = vrot.lane.b32.xlu0 %v1530, 98
    %v1746 = vpop.permute.xlu0 %1745
    %1747 = vrot.lane.b32.xlu0 %v1531, 98
    %v1748 = vpop.permute.xlu0 %1747
    %1749 = vrot.lane.b32.xlu0 %v1532, 98
    %v1750 = vpop.permute.xlu0 %1749
    %1751 = vrot.lane.b32.xlu0 %v1533, 98
    %v1752 = vpop.permute.xlu0 %1751
    %1753 = vrot.lane.b32.xlu0 %v1534, 98
    %v1754 = vpop.permute.xlu0 %1753
    %v1755 = vsel %vm304, %v1732, %v1734
    %v1756 = vsel %vm304, %v1734, %v1736
    %v1757 = vsel %vm304, %v1736, %v1738
    %v1758 = vsel %vm304, %v1738, %v1740
    %v1759 = vsel %vm304, %v1740, %v1742
    %v1760 = vsel %vm304, %v1744, %v1746
    %v1761 = vsel %vm304, %v1746, %v1748
    %v1762 = vsel %vm304, %v1748, %v1750
    %v1763 = vsel %vm304, %v1750, %v1752
    %v1764 = vsel %vm304, %v1752, %v1754
    %1777 = vrot.lane.b32.xlu0 %v1523, 72
    %v1778 = vpop.permute.xlu0 %1777
    %1779 = vrot.lane.b32.xlu0 %v1524, 72
    %v1780 = vpop.permute.xlu0 %1779
    %1781 = vrot.lane.b32.xlu0 %v1525, 72
    %v1782 = vpop.permute.xlu0 %1781
    %1783 = vrot.lane.b32.xlu0 %v1526, 72
    %v1784 = vpop.permute.xlu0 %1783
    %1785 = vrot.lane.b32.xlu0 %v1527, 72
    %v1786 = vpop.permute.xlu0 %1785
    %1787 = vrot.lane.b32.xlu0 %v1528, 72
    %v1788 = vpop.permute.xlu0 %1787
    %1789 = vrot.lane.b32.xlu0 %v1529, 72
    %v1790 = vpop.permute.xlu0 %1789
    %1791 = vrot.lane.b32.xlu0 %v1530, 72
    %v1792 = vpop.permute.xlu0 %1791
    %1793 = vrot.lane.b32.xlu0 %v1531, 72
    %v1794 = vpop.permute.xlu0 %1793
    %1795 = vrot.lane.b32.xlu0 %v1532, 72
    %v1796 = vpop.permute.xlu0 %1795
    %1797 = vrot.lane.b32.xlu0 %v1533, 72
    %v1798 = vpop.permute.xlu0 %1797
    %1799 = vrot.lane.b32.xlu0 %v1534, 72
    %v1800 = vpop.permute.xlu0 %1799
    %v1801 = vsel %vm357, %v1778, %v1780
    %v1802 = vsel %vm357, %v1780, %v1782
    %v1803 = vsel %vm357, %v1782, %v1784
    %v1804 = vsel %vm357, %v1784, %v1786
    %v1805 = vsel %vm357, %v1786, %v1788
    %v1806 = vsel %vm357, %v1790, %v1792
    %v1807 = vsel %vm357, %v1792, %v1794
    %v1808 = vsel %vm357, %v1794, %v1796
    %v1809 = vsel %vm357, %v1796, %v1798
    %v1810 = vsel %vm357, %v1798, %v1800
    %1823 = vrot.lane.b32.xlu0 %v1523, 71
    %v1824 = vpop.permute.xlu0 %1823
    %1825 = vrot.lane.b32.xlu0 %v1524, 71
    %v1826 = vpop.permute.xlu0 %1825
    %1827 = vrot.lane.b32.xlu0 %v1525, 71
    %v1828 = vpop.permute.xlu0 %1827
    %1829 = vrot.lane.b32.xlu0 %v1526, 71
    %v1830 = vpop.permute.xlu0 %1829
    %1831 = vrot.lane.b32.xlu0 %v1527, 71
    %v1832 = vpop.permute.xlu0 %1831
    %1833 = vrot.lane.b32.xlu0 %v1528, 71
    %v1834 = vpop.permute.xlu0 %1833
    %1835 = vrot.lane.b32.xlu0 %v1529, 71
    %v1836 = vpop.permute.xlu0 %1835
    %1837 = vrot.lane.b32.xlu0 %v1530, 71
    %v1838 = vpop.permute.xlu0 %1837
    %1839 = vrot.lane.b32.xlu0 %v1531, 71
    %v1840 = vpop.permute.xlu0 %1839
    %1841 = vrot.lane.b32.xlu0 %v1532, 71
    %v1842 = vpop.permute.xlu0 %1841
    %1843 = vrot.lane.b32.xlu0 %v1533, 71
    %v1844 = vpop.permute.xlu0 %1843
    %1845 = vrot.lane.b32.xlu0 %v1534, 71
    %v1846 = vpop.permute.xlu0 %1845
    %v1847 = vsel %vm410, %v1824, %v1826
    %v1848 = vsel %vm410, %v1826, %v1828
    %v1849 = vsel %vm410, %v1828, %v1830
    %v1850 = vsel %vm410, %v1830, %v1832
    %v1851 = vsel %vm410, %v1832, %v1834
    %v1852 = vsel %vm410, %v1836, %v1838
    %v1853 = vsel %vm410, %v1838, %v1840
    %v1854 = vsel %vm410, %v1840, %v1842
    %v1855 = vsel %vm410, %v1842, %v1844
    %v1856 = vsel %vm410, %v1844, %v1846
    %1869 = vrot.lane.b32.xlu0 %v1523, 70
    %v1870 = vpop.permute.xlu0 %1869
    %1871 = vrot.lane.b32.xlu0 %v1524, 70
    %v1872 = vpop.permute.xlu0 %1871
    %1873 = vrot.lane.b32.xlu0 %v1525, 70
    %v1874 = vpop.permute.xlu0 %1873
    %1875 = vrot.lane.b32.xlu0 %v1526, 70
    %v1876 = vpop.permute.xlu0 %1875
    %1877 = vrot.lane.b32.xlu0 %v1527, 70
    %v1878 = vpop.permute.xlu0 %1877
    %1879 = vrot.lane.b32.xlu0 %v1528, 70
    %v1880 = vpop.permute.xlu0 %1879
    %1881 = vrot.lane.b32.xlu0 %v1529, 70
    %v1882 = vpop.permute.xlu0 %1881
    %1883 = vrot.lane.b32.xlu0 %v1530, 70
    %v1884 = vpop.permute.xlu0 %1883
    %1885 = vrot.lane.b32.xlu0 %v1531, 70
    %v1886 = vpop.permute.xlu0 %1885
    %1887 = vrot.lane.b32.xlu0 %v1532, 70
    %v1888 = vpop.permute.xlu0 %1887
    %1889 = vrot.lane.b32.xlu0 %v1533, 70
    %v1890 = vpop.permute.xlu0 %1889
    %1891 = vrot.lane.b32.xlu0 %v1534, 70
    %v1892 = vpop.permute.xlu0 %1891
    %v1893 = vsel %vm463, %v1870, %v1872
    %v1894 = vsel %vm463, %v1872, %v1874
    %v1895 = vsel %vm463, %v1874, %v1876
    %v1896 = vsel %vm463, %v1876, %v1878
    %v1897 = vsel %vm463, %v1878, %v1880
    %v1898 = vsel %vm463, %v1882, %v1884
    %v1899 = vsel %vm463, %v1884, %v1886
    %v1900 = vsel %vm463, %v1886, %v1888
    %v1901 = vsel %vm463, %v1888, %v1890
    %v1902 = vsel %vm463, %v1890, %v1892
    %1916 = vset.pattern.permute.xlu0 0
    %1917 = vperm.xlu0 %1916, %v1521
    %v1918 = vpop.permute.xlu0 %1917
    %1921 = vset.pattern.permute.xlu0 0
    %1922 = vperm.xlu0 %1921, %v1522
    %v1923 = vpop.permute.xlu0 %1922
    %v1926 = vsel %vm71, %v1518, 0
    %v1929 = vsel %vm71, %v1520, 0
    %1931 = vmatprep.subr.mxu0 %v1524
    %1932 = vmatpush1.msra.mxu0 %v1523
    %1933 = vmatprep.subr.mxu0 %v1530
    %1934 = vmatpush1.msra.mxu0 %v1529
    %1935 = vmatprep.subr.mxu0 %v1572
    %1936 = vmatpush1.msra.mxu0 %v1571
    %1937 = vmatprep.subr.mxu0 %v1577
    %1938 = vmatpush1.msra.mxu0 %v1576
    %1939 = vmatprep.subr.mxu0 %v1618
    %1940 = vmatpush1.msra.mxu0 %v1617
    %1941 = vmatprep.subr.mxu0 %v1623
    %1942 = vmatpush1.msra.mxu0 %v1622
    %1943 = vmatprep.subr.mxu0 %v1664
    %1944 = vmatpush1.msra.mxu0 %v1663
    %1945 = vmatprep.subr.mxu0 %v1669
    %1946 = vmatpush1.msra.mxu0 %v1668
    %1947 = vmatprep.subr.mxu0 %v1710
    %1948 = vmatpush1.msra.mxu0 %v1709
    %1949 = vmatprep.subr.mxu0 %v1715
    %1950 = vmatpush1.msra.mxu0 %v1714
    %1951 = vmatprep.subr.mxu0 %v1756
    %1952 = vmatpush1.msra.mxu0 %v1755
    %1953 = vmatprep.subr.mxu0 %v1761
    %1954 = vmatpush1.msra.mxu0 %v1760
    %1955 = vmatprep.subr.mxu0 %v1802
    %1956 = vmatpush1.msra.mxu0 %v1801
    %1957 = vmatprep.subr.mxu0 %v1807
    %1958 = vmatpush1.msra.mxu0 %v1806
    %1959 = vmatprep.subr.mxu0 %v1848
    %1960 = vmatpush1.msra.mxu0 %v1847
    %1961 = vmatprep.subr.mxu0 %v1853
    %1962 = vmatpush1.msra.mxu0 %v1852
    %1963 = vmatprep.subr.mxu0 %v1894
    %1964 = vmatpush1.msra.mxu0 %v1893
    %1965 = vmatprep.subr.mxu0 %v1899
    %1966 = vmatpush1.msra.mxu0 %v1898
    %1967 = vmatprep.subr.mxu0 0.0
    %1968 = vmatpush1.msra.mxu0 0.0
    %1969 = vmatprep.subr.mxu0 0.0
    %1970 = vmatpush1.msra.mxu0 0.0
    %1971 = vmatprep.subr.mxu0 0.0
    %1972 = vmatpush1.msra.mxu0 0.0
    %1973 = vmatprep.subr.mxu0 0.0
    %1974 = vmatpush1.msra.mxu0 0.0
    %1975 = vmatprep.subr.mxu0 0.0
    %1976 = vmatpush1.msra.mxu0 0.0
    %1977 = vmatprep.subr.mxu0 0.0
    %1978 = vmatpush1.msra.mxu0 0.0
    %1979 = vmatprep.subr.mxu0 0.0
    %1980 = vmatpush1.msra.mxu0 0.0
    %1981 = vmatprep.subr.mxu0 0.0
    %1982 = vmatpush1.msra.mxu0 0.0
    %1983 = vmatprep.subr.mxu0 0.0
    %1984 = vmatpush1.msra.mxu0 0.0
    %1985 = vmatprep.subr.mxu0 0.0
    %1986 = vmatpush1.msra.mxu0 0.0
    %1987 = vmatprep.subr.mxu0 0.0
    %1988 = vmatpush1.msra.mxu0 0.0
    %1989 = vmatprep.subr.mxu0 0.0
    %1990 = vmatpush1.msra.mxu0 0.0
    %1991 = vmatprep.subr.mxu0 0.0
    %1992 = vmatpush1.msra.mxu0 0.0
    %1993 = vmatprep.subr.mxu0 0.0
    %1994 = vmatpush1.msra.mxu0 0.0
    %1995 = vmatprep.mubr.f32.mxu0 %v1926
    %1996 = vmatmul.mubr.f32.gmra.mrb[0].mxu0 %v1517
    %v1997 = vpop.f32.mrb[0].mxu0
    %v1998 = vadd.f32 %v1918, %v1997
    %v1999 = vpop.f32.mrb[0].mxu0
    %v2000 = vadd.f32 %v1918, %v1999
    %2001 = vmatprep.mubr.f32.mxu0 %v1929
    %2002 = vmatmul.mubr.f32.gmra.mrb[0].mxu0 %v1519
    %v2003 = vpop.f32.mrb[0].mxu0
    %v2004 = vadd.f32 %v1923, %v2003
    %v2005 = vpop.f32.mrb[0].mxu0
    %v2006 = vadd.f32 %v1923, %v2005
    %2007 = vdwg.mxu0
    %2008 = vmatprep.subr.mxu0 %v1526
    %2009 = vmatpush1.msra.mxu0 %v1525
    %2010 = vmatprep.subr.mxu0 %v1532
    %2011 = vmatpush1.msra.mxu0 %v1531
    %2012 = vmatprep.subr.mxu0 %v1574
    %2013 = vmatpush1.msra.mxu0 %v1573
    %2014 = vmatprep.subr.mxu0 %v1579
    %2015 = vmatpush1.msra.mxu0 %v1578
    %2016 = vmatprep.subr.mxu0 %v1620
    %2017 = vmatpush1.msra.mxu0 %v1619
    %2018 = vmatprep.subr.mxu0 %v1625
    %2019 = vmatpush1.msra.mxu0 %v1624
    %2020 = vmatprep.subr.mxu0 %v1666
    %2021 = vmatpush1.msra.mxu0 %v1665
    %2022 = vmatprep.subr.mxu0 %v1671
    %2023 = vmatpush1.msra.mxu0 %v1670
    %2024 = vmatprep.subr.mxu0 %v1712
    %2025 = vmatpush1.msra.mxu0 %v1711
    %2026 = vmatprep.subr.mxu0 %v1717
    %2027 = vmatpush1.msra.mxu0 %v1716
    %2028 = vmatprep.subr.mxu0 %v1758
    %2029 = vmatpush1.msra.mxu0 %v1757
    %2030 = vmatprep.subr.mxu0 %v1763
    %2031 = vmatpush1.msra.mxu0 %v1762
    %2032 = vmatprep.subr.mxu0 %v1804
    %2033 = vmatpush1.msra.mxu0 %v1803
    %2034 = vmatprep.subr.mxu0 %v1809
    %2035 = vmatpush1.msra.mxu0 %v1808
    %2036 = vmatprep.subr.mxu0 %v1850
    %2037 = vmatpush1.msra.mxu0 %v1849
    %2038 = vmatprep.subr.mxu0 %v1855
    %2039 = vmatpush1.msra.mxu0 %v1854
    %2040 = vmatprep.subr.mxu0 %v1896
    %2041 = vmatpush1.msra.mxu0 %v1895
    %2042 = vmatprep.subr.mxu0 %v1901
    %2043 = vmatpush1.msra.mxu0 %v1900
    %2044 = vmatprep.subr.mxu0 0.0
    %2045 = vmatpush1.msra.mxu0 0.0
    %2046 = vmatprep.subr.mxu0 0.0
    %2047 = vmatpush1.msra.mxu0 0.0
    %2048 = vmatprep.subr.mxu0 0.0
    %2049 = vmatpush1.msra.mxu0 0.0
    %2050 = vmatprep.subr.mxu0 0.0
    %2051 = vmatpush1.msra.mxu0 0.0
    %2052 = vmatprep.subr.mxu0 0.0
    %2053 = vmatpush1.msra.mxu0 0.0
    %2054 = vmatprep.subr.mxu0 0.0
    %2055 = vmatpush1.msra.mxu0 0.0
    %2056 = vmatprep.subr.mxu0 0.0
    %2057 = vmatpush1.msra.mxu0 0.0
    %2058 = vmatprep.subr.mxu0 0.0
    %2059 = vmatpush1.msra.mxu0 0.0
    %2060 = vmatprep.subr.mxu0 0.0
    %2061 = vmatpush1.msra.mxu0 0.0
    %2062 = vmatprep.subr.mxu0 0.0
    %2063 = vmatpush1.msra.mxu0 0.0
    %2064 = vmatprep.subr.mxu0 0.0
    %2065 = vmatpush1.msra.mxu0 0.0
    %2066 = vmatprep.subr.mxu0 0.0
    %2067 = vmatpush1.msra.mxu0 0.0
    %2068 = vmatprep.subr.mxu0 0.0
    %2069 = vmatpush1.msra.mxu0 0.0
    %2070 = vmatprep.subr.mxu0 0.0
    %2071 = vmatpush1.msra.mxu0 0.0
    %2072 = vmatprep.mubr.f32.mxu0 %v1926
    %2073 = vmatmul.mubr.f32.gmra.mrb[0].mxu0 %v1517
    %v2074 = vpop.f32.mrb[0].mxu0
    %v2075 = vadd.f32 %v1918, %v2074
    %v2076 = vpop.f32.mrb[0].mxu0
    %v2077 = vadd.f32 %v1918, %v2076
    %2078 = vmatprep.mubr.f32.mxu0 %v1929
    %2079 = vmatmul.mubr.f32.gmra.mrb[0].mxu0 %v1519
    %v2080 = vpop.f32.mrb[0].mxu0
    %v2081 = vadd.f32 %v1923, %v2080
    %v2082 = vpop.f32.mrb[0].mxu0
    %v2083 = vadd.f32 %v1923, %v2082
    %2084 = vdwg.mxu0
    %2085 = vmatprep.subr.mxu0 %v1528
    %2086 = vmatpush1.msra.mxu0 %v1527
    %2087 = vmatprep.subr.mxu0 %v1534
    %2088 = vmatpush1.msra.mxu0 %v1533
    %2089 = vmatprep.subr.mxu0 %v1558
    %2090 = vmatpush1.msra.mxu0 %v1575
    %2091 = vmatprep.subr.mxu0 %v1570
    %2092 = vmatpush1.msra.mxu0 %v1580
    %2093 = vmatprep.subr.mxu0 %v1604
    %2094 = vmatpush1.msra.mxu0 %v1621
    %2095 = vmatprep.subr.mxu0 %v1616
    %2096 = vmatpush1.msra.mxu0 %v1626
    %2097 = vmatprep.subr.mxu0 %v1650
    %2098 = vmatpush1.msra.mxu0 %v1667
    %2099 = vmatprep.subr.mxu0 %v1662
    %2100 = vmatpush1.msra.mxu0 %v1672
    %2101 = vmatprep.subr.mxu0 %v1696
    %2102 = vmatpush1.msra.mxu0 %v1713
    %2103 = vmatprep.subr.mxu0 %v1708
    %2104 = vmatpush1.msra.mxu0 %v1718
    %2105 = vmatprep.subr.mxu0 %v1742
    %2106 = vmatpush1.msra.mxu0 %v1759
    %2107 = vmatprep.subr.mxu0 %v1754
    %2108 = vmatpush1.msra.mxu0 %v1764
    %2109 = vmatprep.subr.mxu0 %v1788
    %2110 = vmatpush1.msra.mxu0 %v1805
    %2111 = vmatprep.subr.mxu0 %v1800
    %2112 = vmatpush1.msra.mxu0 %v1810
    %2113 = vmatprep.subr.mxu0 %v1834
    %2114 = vmatpush1.msra.mxu0 %v1851
    %2115 = vmatprep.subr.mxu0 %v1846
    %2116 = vmatpush1.msra.mxu0 %v1856
    %2117 = vmatprep.subr.mxu0 %v1880
    %2118 = vmatpush1.msra.mxu0 %v1897
    %2119 = vmatprep.subr.mxu0 %v1892
    %2120 = vmatpush1.msra.mxu0 %v1902
    %2121 = vmatprep.subr.mxu0 0.0
    %2122 = vmatpush1.msra.mxu0 0.0
    %2123 = vmatprep.subr.mxu0 0.0
    %2124 = vmatpush1.msra.mxu0 0.0
    %2125 = vmatprep.subr.mxu0 0.0
    %2126 = vmatpush1.msra.mxu0 0.0
    %2127 = vmatprep.subr.mxu0 0.0
    %2128 = vmatpush1.msra.mxu0 0.0
    %2129 = vmatprep.subr.mxu0 0.0
    %2130 = vmatpush1.msra.mxu0 0.0
    %2131 = vmatprep.subr.mxu0 0.0
    %2132 = vmatpush1.msra.mxu0 0.0
    %2133 = vmatprep.subr.mxu0 0.0
    %2134 = vmatpush1.msra.mxu0 0.0
    %2135 = vmatprep.subr.mxu0 0.0
    %2136 = vmatpush1.msra.mxu0 0.0
    %2137 = vmatprep.subr.mxu0 0.0
    %2138 = vmatpush1.msra.mxu0 0.0
    %2139 = vmatprep.subr.mxu0 0.0
    %2140 = vmatpush1.msra.mxu0 0.0
    %2141 = vmatprep.subr.mxu0 0.0
    %2142 = vmatpush1.msra.mxu0 0.0
    %2143 = vmatprep.subr.mxu0 0.0
    %2144 = vmatpush1.msra.mxu0 0.0
    %2145 = vmatprep.subr.mxu0 0.0
    %2146 = vmatpush1.msra.mxu0 0.0
    %2147 = vmatprep.subr.mxu0 0.0
    %2148 = vmatpush1.msra.mxu0 0.0
    %2149 = vmatprep.mubr.f32.mxu0 %v1926
    %2150 = vmatmul.mubr.f32.gmra.mrb[0].mxu0 %v1517
    %v2151 = vpop.f32.mrb[0].mxu0
    %v2152 = vadd.f32 %v1918, %v2151
    %v2153 = vpop.f32.mrb[0].mxu0
    %v2154 = vadd.f32 %v1918, %v2153
    %2155 = vmatprep.mubr.f32.mxu0 %v1929
    %2156 = vmatmul.mubr.f32.gmra.mrb[0].mxu0 %v1519
    %v2157 = vpop.f32.mrb[0].mxu0
    %v2158 = vadd.f32 %v1923, %v2157
    %v2159 = vpop.f32.mrb[0].mxu0
    %v2160 = vadd.f32 %v1923, %v2159
    %2161 = vdwg.mxu0
    %v2162 = vmax.f32 %v1998, 0.0
    %v2163 = vmax.f32 %v2000, 0.0
    %v2164 = vmax.f32 %v2075, 0.0
    %v2165 = vmax.f32 %v2077, 0.0
    %v2166 = vmax.f32 %v2152, 0.0
    %v2167 = vmax.f32 %v2154, 0.0
    %v2168 = vmax.f32 %v2004, 0.0
    %v2169 = vmax.f32 %v2006, 0.0
    %v2170 = vmax.f32 %v2081, 0.0
    %v2171 = vmax.f32 %v2083, 0.0
    %v2172 = vmax.f32 %v2158, 0.0
    %v2173 = vmax.f32 %v2160, 0.0
    %vm2174 = vcmask 261120
    %v2175 = vsel %vm2174, %v2167, 0.0
    %v2176 = vsel %vm2174, %v2173, 0.0
    %v2177 = vld [vmem:[%s10] sm:$0xff]
    %v2178 = vld [vmem:[%s10 + $0x8] sm:$0xff]
    %v2179 = vld [vmem:[%s10 + $0x10] sm:$0xff]
    %v2180 = vld [vmem:[%s10 + $0x18] sm:$0xff]
    %v2181 = vld [vmem:[%s10 + $0x20] sm:$0xff]
    %v2182 = vld [vmem:[%s10 + $0x28] sm:$0xff]
    %v2183 = vld [vmem:[%s10 + $0x30] sm:$0xff]
    %v2184 = vld [vmem:[%s10 + $0x38] sm:$0xff]
    %v2185 = vld [vmem:[%s10 + $0x40] sm:$0xff]
    %v2186 = vld [vmem:[%s10 + $0x48] sm:$0xff]
    %v2187 = vld [vmem:[%s10 + $0x50] sm:$0xff]
    %v2188 = vld [vmem:[%s10 + $0x58] sm:$0xff]
    %v2189 = vld [vmem:[%s10 + $0x60] sm:$0xff]
    %v2190 = vld [vmem:[%s10 + $0x68] sm:$0xff]
    %v2191 = vld [vmem:[%s10 + $0x70] sm:$0xff]
    %v2192 = vld [vmem:[%s10 + $0x78] sm:$0xff]
    %v2193 = vld [vmem:[%s10 + $0x80] sm:$0xff]
    %v2194 = vld [vmem:[%s10 + $0x88] sm:$0xff]
    %v2195 = vld [vmem:[%s10 + $0x90] sm:$0xff]
    %v2196 = vld [vmem:[%s10 + $0x98] sm:$0xff]
    %v2197 = vld [vmem:[%s10 + $0xa0] sm:$0xff]
    %v2198 = vld [vmem:[%s10 + $0xa8] sm:$0xff]
    %v2199 = vld [vmem:[%s10 + $0xb0] sm:$0xff]
    %v2200 = vld [vmem:[%s10 + $0xb8] sm:$0xff]
    %v2201 = vld [vmem:[%s10 + $0xc0] sm:$0xff]
    %v2202 = vld [vmem:[%s10 + $0xc8] sm:$0xff]
    %v2203 = vld [vmem:[%s10 + $0xd0] sm:$0xff]
    %v2204 = vld [vmem:[%s10 + $0xd8] sm:$0xff]
    %v2205 = vld [vmem:[%s10 + $0xe0] sm:$0xff]
    %v2206 = vld [vmem:[%s10 + $0xe8] sm:$0xff]
    %v2207 = vld [vmem:[%s10 + $0xf0] sm:$0xff]
    %v2208 = vld [vmem:[%s10 + $0xf8] sm:$0xff]
    %v2209 = vld [vmem:[%s10 + $0x100] sm:$0xff]
    %v2210 = vld [vmem:[%s10 + $0x108] sm:$0xff]
    %v2211 = vld [vmem:[%s10 + $0x110] sm:$0xff]
    %v2212 = vld [vmem:[%s10 + $0x118] sm:$0xff]
    %v2213 = vld [vmem:[%s10 + $0x120] sm:$0xff]
    %v2214 = vld [vmem:[%s10 + $0x128] sm:$0xff]
    %v2215 = vld [vmem:[%s10 + $0x130] sm:$0xff]
    %v2216 = vld [vmem:[%s10 + $0x138] sm:$0xff]
    %v2217 = vld [vmem:[%s10 + $0x140] sm:$0xff]
    %v2218 = vld [vmem:[%s10 + $0x148] sm:$0xff]
    %v2219 = vld [vmem:[%s10 + $0x150] sm:$0xff]
    %v2220 = vld [vmem:[%s10 + $0x158] sm:$0xff]
    %v2221 = vld [vmem:[%s10 + $0x160] sm:$0xff]
    %v2222 = vld [vmem:[%s10 + $0x168] sm:$0xff]
    %v2223 = vld [vmem:[%s10 + $0x170] sm:$0xff]
    %v2224 = vld [vmem:[%s10 + $0x178] sm:$0xff]
    %v2225 = vld [vmem:[%s10 + $0x180] sm:$0xff]
    %v2226 = vld [vmem:[%s10 + $0x188] sm:$0xff]
    %v2227 = vld [vmem:[%s10 + $0x190] sm:$0xff]
    %v2228 = vld [vmem:[%s10 + $0x198] sm:$0xff]
    %v2229 = vld [vmem:[%s10 + $0x1a0] sm:$0xff]
    %v2230 = vld [vmem:[%s10 + $0x1a8] sm:$0xff]
    %v2231 = vld [vmem:[%s10 + $0x1b0] sm:$0xff]
    %v2232 = vld [vmem:[%s10 + $0x1b8] sm:$0xff]
    %v2233 = vld [vmem:[%s10 + $0x1c0] sm:$0xff]
    %v2234 = vld [vmem:[%s10 + $0x1c8] sm:$0xff]
    %v2235 = vld [vmem:[%s10 + $0x1d0] sm:$0xff]
    %v2236 = vld [vmem:[%s10 + $0x1d8] sm:$0xff]
    %v2237 = vld [vmem:[%s10 + $0x1e0] sm:$0xff]
    %v2238 = vld [vmem:[%s10 + $0x1e8] sm:$0xff]
    %v2239 = vld [vmem:[%s10 + $0x1f0] sm:$0xff]
    %v2240 = vld [vmem:[%s10 + $0x1f8] sm:$0xff]
    %v2241 = vld [vmem:[%s10 + $0x200] sm:$0xff]
    %v2242 = vld [vmem:[%s10 + $0x208] sm:$0xff]
    %v2243 = vld [vmem:[%s10 + $0x210] sm:$0xff]
    %v2244 = vld [vmem:[%s10 + $0x218] sm:$0xff]
    %v2245 = vld [vmem:[%s10 + $0x220] sm:$0xff]
    %v2246 = vld [vmem:[%s10 + $0x228] sm:$0xff]
    %v2247 = vld [vmem:[%s10 + $0x230] sm:$0xff]
    %v2248 = vld [vmem:[%s10 + $0x238] sm:$0xff]
    %v2249 = vld [vmem:[%s10 + $0x240] sm:$0xff]
    %v2250 = vld [vmem:[%s10 + $0x248] sm:$0xff]
    %v2251 = vld [vmem:[%s10 + $0x250] sm:$0xff]
    %v2252 = vld [vmem:[%s10 + $0x258] sm:$0xff]
    %v2253 = vld [vmem:[%s10 + $0x260] sm:$0xff]
    %2266 = vrot.lane.b32.xlu0 %v2162, 127
    %v2267 = vpop.permute.xlu0 %2266
    %2268 = vrot.lane.b32.xlu0 %v2163, 127
    %v2269 = vpop.permute.xlu0 %2268
    %2270 = vrot.lane.b32.xlu0 %v2164, 127
    %v2271 = vpop.permute.xlu0 %2270
    %2272 = vrot.lane.b32.xlu0 %v2165, 127
    %v2273 = vpop.permute.xlu0 %2272
    %2274 = vrot.lane.b32.xlu0 %v2166, 127
    %v2275 = vpop.permute.xlu0 %2274
    %2276 = vrot.lane.b32.xlu0 %v2175, 127
    %v2277 = vpop.permute.xlu0 %2276
    %2278 = vrot.lane.b32.xlu0 %v2168, 127
    %v2279 = vpop.permute.xlu0 %2278
    %2280 = vrot.lane.b32.xlu0 %v2169, 127
    %v2281 = vpop.permute.xlu0 %2280
    %2282 = vrot.lane.b32.xlu0 %v2170, 127
    %v2283 = vpop.permute.xlu0 %2282
    %2284 = vrot.lane.b32.xlu0 %v2171, 127
    %v2285 = vpop.permute.xlu0 %2284
    %2286 = vrot.lane.b32.xlu0 %v2172, 127
    %v2287 = vpop.permute.xlu0 %2286
    %2288 = vrot.lane.b32.xlu0 %v2176, 127
    %v2289 = vpop.permute.xlu0 %2288
    %v2290 = vsel %vm116, %v2267, %v2269
    %v2291 = vsel %vm116, %v2269, %v2271
    %v2292 = vsel %vm116, %v2271, %v2273
    %v2293 = vsel %vm116, %v2273, %v2275
    %v2294 = vsel %vm116, %v2275, %v2277
    %v2295 = vsel %vm116, %v2279, %v2281
    %v2296 = vsel %vm116, %v2281, %v2283
    %v2297 = vsel %vm116, %v2283, %v2285
    %v2298 = vsel %vm116, %v2285, %v2287
    %v2299 = vsel %vm116, %v2287, %v2289
    %v2312 = vmax.f32 %v2162, %v2290
    %v2313 = vmax.f32 %v2163, %v2291
    %v2314 = vmax.f32 %v2164, %v2292
    %v2315 = vmax.f32 %v2165, %v2293
    %v2316 = vmax.f32 %v2166, %v2294
    %v2317 = vmax.f32 %v2175, %v2277
    %v2318 = vmax.f32 %v2168, %v2295
    %v2319 = vmax.f32 %v2169, %v2296
    %v2320 = vmax.f32 %v2170, %v2297
    %v2321 = vmax.f32 %v2171, %v2298
    %v2322 = vmax.f32 %v2172, %v2299
    %v2323 = vmax.f32 %v2176, %v2289
    %2324 = vrot.lane.b32.xlu0 %v2162, 126
    %v2325 = vpop.permute.xlu0 %2324
    %2326 = vrot.lane.b32.xlu0 %v2163, 126
    %v2327 = vpop.permute.xlu0 %2326
    %2328 = vrot.lane.b32.xlu0 %v2164, 126
    %v2329 = vpop.permute.xlu0 %2328
    %2330 = vrot.lane.b32.xlu0 %v2165, 126
    %v2331 = vpop.permute.xlu0 %2330
    %2332 = vrot.lane.b32.xlu0 %v2166, 126
    %v2333 = vpop.permute.xlu0 %2332
    %2334 = vrot.lane.b32.xlu0 %v2175, 126
    %v2335 = vpop.permute.xlu0 %2334
    %2336 = vrot.lane.b32.xlu0 %v2168, 126
    %v2337 = vpop.permute.xlu0 %2336
    %2338 = vrot.lane.b32.xlu0 %v2169, 126
    %v2339 = vpop.permute.xlu0 %2338
    %2340 = vrot.lane.b32.xlu0 %v2170, 126
    %v2341 = vpop.permute.xlu0 %2340
    %2342 = vrot.lane.b32.xlu0 %v2171, 126
    %v2343 = vpop.permute.xlu0 %2342
    %2344 = vrot.lane.b32.xlu0 %v2172, 126
    %v2345 = vpop.permute.xlu0 %2344
    %2346 = vrot.lane.b32.xlu0 %v2176, 126
    %v2347 = vpop.permute.xlu0 %2346
    %v2348 = vsel %vm163, %v2325, %v2327
    %v2349 = vsel %vm163, %v2327, %v2329
    %v2350 = vsel %vm163, %v2329, %v2331
    %v2351 = vsel %vm163, %v2331, %v2333
    %v2352 = vsel %vm163, %v2333, %v2335
    %v2353 = vsel %vm163, %v2337, %v2339
    %v2354 = vsel %vm163, %v2339, %v2341
    %v2355 = vsel %vm163, %v2341, %v2343
    %v2356 = vsel %vm163, %v2343, %v2345
    %v2357 = vsel %vm163, %v2345, %v2347
    %v2370 = vmax.f32 %v2312, %v2348
    %v2371 = vmax.f32 %v2313, %v2349
    %v2372 = vmax.f32 %v2314, %v2350
    %v2373 = vmax.f32 %v2315, %v2351
    %v2374 = vmax.f32 %v2316, %v2352
    %v2375 = vmax.f32 %v2317, %v2335
    %v2376 = vmax.f32 %v2318, %v2353
    %v2377 = vmax.f32 %v2319, %v2354
    %v2378 = vmax.f32 %v2320, %v2355
    %v2379 = vmax.f32 %v2321, %v2356
    %v2380 = vmax.f32 %v2322, %v2357
    %v2381 = vmax.f32 %v2323, %v2347
    %2394 = vrot.lane.b32.xlu0 %v2370, 100
    %v2395 = vpop.permute.xlu0 %2394
    %2396 = vrot.lane.b32.xlu0 %v2371, 100
    %v2397 = vpop.permute.xlu0 %2396
    %2398 = vrot.lane.b32.xlu0 %v2372, 100
    %v2399 = vpop.permute.xlu0 %2398
    %2400 = vrot.lane.b32.xlu0 %v2373, 100
    %v2401 = vpop.permute.xlu0 %2400
    %2402 = vrot.lane.b32.xlu0 %v2374, 100
    %v2403 = vpop.permute.xlu0 %2402
    %2404 = vrot.lane.b32.xlu0 %v2375, 100
    %v2405 = vpop.permute.xlu0 %2404
    %2406 = vrot.lane.b32.xlu0 %v2376, 100
    %v2407 = vpop.permute.xlu0 %2406
    %2408 = vrot.lane.b32.xlu0 %v2377, 100
    %v2409 = vpop.permute.xlu0 %2408
    %2410 = vrot.lane.b32.xlu0 %v2378, 100
    %v2411 = vpop.permute.xlu0 %2410
    %2412 = vrot.lane.b32.xlu0 %v2379, 100
    %v2413 = vpop.permute.xlu0 %2412
    %2414 = vrot.lane.b32.xlu0 %v2380, 100
    %v2415 = vpop.permute.xlu0 %2414
    %2416 = vrot.lane.b32.xlu0 %v2381, 100
    %v2417 = vpop.permute.xlu0 %2416
    %v2418 = vsel %vm210, %v2395, %v2397
    %v2419 = vsel %vm210, %v2397, %v2399
    %v2420 = vsel %vm210, %v2399, %v2401
    %v2421 = vsel %vm210, %v2401, %v2403
    %v2422 = vsel %vm210, %v2403, %v2405
    %v2423 = vsel %vm210, %v2407, %v2409
    %v2424 = vsel %vm210, %v2409, %v2411
    %v2425 = vsel %vm210, %v2411, %v2413
    %v2426 = vsel %vm210, %v2413, %v2415
    %v2427 = vsel %vm210, %v2415, %v2417
    %v2438 = vmax.f32 %v2370, %v2418
    %v2439 = vmax.f32 %v2371, %v2419
    %v2440 = vmax.f32 %v2372, %v2420
    %v2441 = vmax.f32 %v2373, %v2421
    %v2442 = vmax.f32 %v2374, %v2422
    %v2443 = vmax.f32 %v2376, %v2423
    %v2444 = vmax.f32 %v2377, %v2424
    %v2445 = vmax.f32 %v2378, %v2425
    %v2446 = vmax.f32 %v2379, %v2426
    %v2447 = vmax.f32 %v2380, %v2427
    %2448 = vrot.lane.b32.xlu0 %v2370, 72
    %v2449 = vpop.permute.xlu0 %2448
    %2450 = vrot.lane.b32.xlu0 %v2371, 72
    %v2451 = vpop.permute.xlu0 %2450
    %2452 = vrot.lane.b32.xlu0 %v2372, 72
    %v2453 = vpop.permute.xlu0 %2452
    %2454 = vrot.lane.b32.xlu0 %v2373, 72
    %v2455 = vpop.permute.xlu0 %2454
    %2456 = vrot.lane.b32.xlu0 %v2374, 72
    %v2457 = vpop.permute.xlu0 %2456
    %2458 = vrot.lane.b32.xlu0 %v2375, 72
    %v2459 = vpop.permute.xlu0 %2458
    %2460 = vrot.lane.b32.xlu0 %v2376, 72
    %v2461 = vpop.permute.xlu0 %2460
    %2462 = vrot.lane.b32.xlu0 %v2377, 72
    %v2463 = vpop.permute.xlu0 %2462
    %2464 = vrot.lane.b32.xlu0 %v2378, 72
    %v2465 = vpop.permute.xlu0 %2464
    %2466 = vrot.lane.b32.xlu0 %v2379, 72
    %v2467 = vpop.permute.xlu0 %2466
    %2468 = vrot.lane.b32.xlu0 %v2380, 72
    %v2469 = vpop.permute.xlu0 %2468
    %2470 = vrot.lane.b32.xlu0 %v2381, 72
    %v2471 = vpop.permute.xlu0 %2470
    %v2472 = vsel %vm357, %v2449, %v2451
    %v2473 = vsel %vm357, %v2451, %v2453
    %v2474 = vsel %vm357, %v2453, %v2455
    %v2475 = vsel %vm357, %v2455, %v2457
    %v2476 = vsel %vm357, %v2457, %v2459
    %v2477 = vsel %vm357, %v2461, %v2463
    %v2478 = vsel %vm357, %v2463, %v2465
    %v2479 = vsel %vm357, %v2465, %v2467
    %v2480 = vsel %vm357, %v2467, %v2469
    %v2481 = vsel %vm357, %v2469, %v2471
    %v2492 = vmax.f32 %v2438, %v2472
    %v2493 = vmax.f32 %v2439, %v2473
    %v2494 = vmax.f32 %v2440, %v2474
    %v2495 = vmax.f32 %v2441, %v2475
    %v2496 = vmax.f32 %v2442, %v2476
    %v2497 = vmax.f32 %v2443, %v2477
    %v2498 = vmax.f32 %v2444, %v2478
    %v2499 = vmax.f32 %v2445, %v2479
    %v2500 = vmax.f32 %v2446, %v2480
    %v2501 = vmax.f32 %v2447, %v2481
    %vm2502 = vcmask 850944
    %v2504 = vsel %vm2502, %v2496, 0
    %v2507 = vsel %vm2502, %v2501, 0
    %2509 = vmatprep.subr.mxu0 0.0
    %2510 = vmatpush1.msra.mxu0 %v2177
    %2511 = vmatprep.subr.mxu0 0.0
    %2512 = vmatpush1.msra.mxu0 %v2178
    %2513 = vmatprep.subr.mxu0 0.0
    %2514 = vmatpush1.msra.mxu0 %v2179
    %2515 = vmatprep.subr.mxu0 0.0
    %2516 = vmatpush1.msra.mxu0 %v2180
    %2517 = vmatprep.subr.mxu0 0.0
    %2518 = vmatpush1.msra.mxu0 %v2181
    %2519 = vmatprep.subr.mxu0 0.0
    %2520 = vmatpush1.msra.mxu0 %v2182
    %2521 = vmatprep.subr.mxu0 0.0
    %2522 = vmatpush1.msra.mxu0 %v2183
    %2523 = vmatprep.subr.mxu0 0.0
    %2524 = vmatpush1.msra.mxu0 %v2184
    %2525 = vmatprep.subr.mxu0 0.0
    %2526 = vmatpush1.msra.mxu0 %v2185
    %2527 = vmatprep.subr.mxu0 0.0
    %2528 = vmatpush1.msra.mxu0 %v2186
    %2529 = vmatprep.subr.mxu0 0.0
    %2530 = vmatpush1.msra.mxu0 %v2187
    %2531 = vmatprep.subr.mxu0 0.0
    %2532 = vmatpush1.msra.mxu0 %v2188
    %2533 = vmatprep.subr.mxu0 0.0
    %2534 = vmatpush1.msra.mxu0 %v2189
    %2535 = vmatprep.subr.mxu0 0.0
    %2536 = vmatpush1.msra.mxu0 %v2190
    %2537 = vmatprep.subr.mxu0 0.0
    %2538 = vmatpush1.msra.mxu0 %v2191
    %2539 = vmatprep.subr.mxu0 0.0
    %2540 = vmatpush1.msra.mxu0 %v2192
    %2541 = vmatprep.subr.mxu0 0.0
    %2542 = vmatpush1.msra.mxu0 %v2193
    %2543 = vmatprep.subr.mxu0 0.0
    %2544 = vmatpush1.msra.mxu0 %v2194
    %2545 = vmatprep.subr.mxu0 0.0
    %2546 = vmatpush1.msra.mxu0 %v2195
    %2547 = vmatprep.subr.mxu0 0.0
    %2548 = vmatpush1.msra.mxu0 %v2196
    %2549 = vmatprep.subr.mxu0 0.0
    %2550 = vmatpush1.msra.mxu0 %v2197
    %2551 = vmatprep.subr.mxu0 0.0
    %2552 = vmatpush1.msra.mxu0 %v2198
    %2553 = vmatprep.subr.mxu0 0.0
    %2554 = vmatpush1.msra.mxu0 %v2199
    %2555 = vmatprep.subr.mxu0 0.0
    %2556 = vmatpush1.msra.mxu0 %v2200
    %2557 = vmatprep.subr.mxu0 0.0
    %2558 = vmatpush1.msra.mxu0 %v2201
    %2559 = vmatprep.subr.mxu0 0.0
    %2560 = vmatpush1.msra.mxu0 %v2202
    %2561 = vmatprep.subr.mxu0 0.0
    %2562 = vmatpush1.msra.mxu0 %v2203
    %2563 = vmatprep.subr.mxu0 0.0
    %2564 = vmatpush1.msra.mxu0 %v2204
    %2565 = vmatprep.subr.mxu0 0.0
    %2566 = vmatpush1.msra.mxu0 %v2205
    %2567 = vmatprep.subr.mxu0 0.0
    %2568 = vmatpush1.msra.mxu0 %v2206
    %2569 = vmatprep.subr.mxu0 0.0
    %2570 = vmatpush1.msra.mxu0 %v2207
    %2571 = vmatprep.subr.mxu0 0.0
    %2572 = vmatpush1.msra.mxu0 %v2208
    %2573 = vmatprep.mubr.f32.mxu0 %v2493
    %2574 = vmatmul.mubr.f32.gmra.mrb[0].mxu0 %v2492
    %v2575 = vpop.f32.mrb[0].mxu0
    %v2576 = vadd.f32 0.0, %v2575
    %v2577 = vpop.f32.mrb[0].mxu0
    %2578 = vmatprep.mubr.f32.mxu0 %v2498
    %2579 = vmatmul.mubr.f32.gmra.mrb[0].mxu0 %v2497
    %v2580 = vpop.f32.mrb[0].mxu0
    %v2581 = vadd.f32 0.0, %v2580
    %v2582 = vpop.f32.mrb[0].mxu0
    %2583 = vdwg.mxu0
    %2584 = vmatprep.subr.mxu0 0.0
    %2585 = vmatpush1.msra.mxu0 %v2209
    %2586 = vmatprep.subr.mxu0 0.0
    %2587 = vmatpush1.msra.mxu0 %v2210
    %2588 = vmatprep.subr.mxu0 0.0
    %2589 = vmatpush1.msra.mxu0 %v2211
    %2590 = vmatprep.subr.mxu0 0.0
    %2591 = vmatpush1.msra.mxu0 %v2212
    %2592 = vmatprep.subr.mxu0 0.0
    %2593 = vmatpush1.msra.mxu0 %v2213
    %2594 = vmatprep.subr.mxu0 0.0
    %2595 = vmatpush1.msra.mxu0 %v2214
    %2596 = vmatprep.subr.mxu0 0.0
    %2597 = vmatpush1.msra.mxu0 %v2215
    %2598 = vmatprep.subr.mxu0 0.0
    %2599 = vmatpush1.msra.mxu0 %v2216
    %2600 = vmatprep.subr.mxu0 0.0
    %2601 = vmatpush1.msra.mxu0 %v2217
    %2602 = vmatprep.subr.mxu0 0.0
    %2603 = vmatpush1.msra.mxu0 %v2218
    %2604 = vmatprep.subr.mxu0 0.0
    %2605 = vmatpush1.msra.mxu0 %v2219
    %2606 = vmatprep.subr.mxu0 0.0
    %2607 = vmatpush1.msra.mxu0 %v2220
    %2608 = vmatprep.subr.mxu0 0.0
    %2609 = vmatpush1.msra.mxu0 %v2221
    %2610 = vmatprep.subr.mxu0 0.0
    %2611 = vmatpush1.msra.mxu0 %v2222
    %2612 = vmatprep.subr.mxu0 0.0
    %2613 = vmatpush1.msra.mxu0 %v2223
    %2614 = vmatprep.subr.mxu0 0.0
    %2615 = vmatpush1.msra.mxu0 %v2224
    %2616 = vmatprep.subr.mxu0 0.0
    %2617 = vmatpush1.msra.mxu0 %v2225
    %2618 = vmatprep.subr.mxu0 0.0
    %2619 = vmatpush1.msra.mxu0 %v2226
    %2620 = vmatprep.subr.mxu0 0.0
    %2621 = vmatpush1.msra.mxu0 %v2227
    %2622 = vmatprep.subr.mxu0 0.0
    %2623 = vmatpush1.msra.mxu0 %v2228
    %2624 = vmatprep.subr.mxu0 0.0
    %2625 = vmatpush1.msra.mxu0 %v2229
    %2626 = vmatprep.subr.mxu0 0.0
    %2627 = vmatpush1.msra.mxu0 %v2230
    %2628 = vmatprep.subr.mxu0 0.0
    %2629 = vmatpush1.msra.mxu0 %v2231
    %2630 = vmatprep.subr.mxu0 0.0
    %2631 = vmatpush1.msra.mxu0 %v2232
    %2632 = vmatprep.subr.mxu0 0.0
    %2633 = vmatpush1.msra.mxu0 %v2233
    %2634 = vmatprep.subr.mxu0 0.0
    %2635 = vmatpush1.msra.mxu0 %v2234
    %2636 = vmatprep.subr.mxu0 0.0
    %2637 = vmatpush1.msra.mxu0 %v2235
    %2638 = vmatprep.subr.mxu0 0.0
    %2639 = vmatpush1.msra.mxu0 %v2236
    %2640 = vmatprep.subr.mxu0 0.0
    %2641 = vmatpush1.msra.mxu0 %v2237
    %2642 = vmatprep.subr.mxu0 0.0
    %2643 = vmatpush1.msra.mxu0 %v2238
    %2644 = vmatprep.subr.mxu0 0.0
    %2645 = vmatpush1.msra.mxu0 %v2239
    %2646 = vmatprep.subr.mxu0 0.0
    %2647 = vmatpush1.msra.mxu0 %v2240
    %2648 = vmatprep.mubr.f32.mxu0 %v2495
    %2649 = vmatmul.mubr.f32.gmra.mrb[0].mxu0 %v2494
    %v2650 = vpop.f32.mrb[0].mxu0
    %v2651 = vadd.f32 %v2576, %v2650
    %v2652 = vpop.f32.mrb[0].mxu0
    %2653 = vmatprep.mubr.f32.mxu0 %v2500
    %2654 = vmatmul.mubr.f32.gmra.mrb[0].mxu0 %v2499
    %v2655 = vpop.f32.mrb[0].mxu0
    %v2656 = vadd.f32 %v2581, %v2655
    %v2657 = vpop.f32.mrb[0].mxu0
    %2658 = vdwg.mxu0
    %2659 = vmatprep.subr.mxu0 0.0
    %2660 = vmatpush1.msra.mxu0 %v2241
    %2661 = vmatprep.subr.mxu0 0.0
    %2662 = vmatpush1.msra.mxu0 %v2242
    %2663 = vmatprep.subr.mxu0 0.0
    %2664 = vmatpush1.msra.mxu0 %v2243
    %2665 = vmatprep.subr.mxu0 0.0
    %2666 = vmatpush1.msra.mxu0 %v2244
    %2667 = vmatprep.subr.mxu0 0.0
    %2668 = vmatpush1.msra.mxu0 %v2245
    %2669 = vmatprep.subr.mxu0 0.0
    %2670 = vmatpush1.msra.mxu0 %v2246
    %2671 = vmatprep.subr.mxu0 0.0
    %2672 = vmatpush1.msra.mxu0 %v2247
    %2673 = vmatprep.subr.mxu0 0.0
    %2674 = vmatpush1.msra.mxu0 %v2248
    %2675 = vmatprep.subr.mxu0 0.0
    %2676 = vmatpush1.msra.mxu0 %v2249
    %2677 = vmatprep.subr.mxu0 0.0
    %2678 = vmatpush1.msra.mxu0 %v2250
    %2679 = vmatprep.subr.mxu0 0.0
    %2680 = vmatpush1.msra.mxu0 %v2251
    %2681 = vmatprep.subr.mxu0 0.0
    %2682 = vmatpush1.msra.mxu0 %v2252
    %2683 = vmatprep.subr.mxu0 0.0
    %2684 = vmatpush1.msra.mxu0 %v2253
    %2685 = vmatprep.subr.mxu0 0.0
    %2686 = vmatpush1.msra.mxu0 0.0
    %2687 = vmatprep.subr.mxu0 0.0
    %2688 = vmatpush1.msra.mxu0 0.0
    %2689 = vmatprep.subr.mxu0 0.0
    %2690 = vmatpush1.msra.mxu0 0.0
    %2691 = vmatprep.subr.mxu0 0.0
    %2692 = vmatpush1.msra.mxu0 0.0
    %2693 = vmatprep.subr.mxu0 0.0
    %2694 = vmatpush1.msra.mxu0 0.0
    %2695 = vmatprep.subr.mxu0 0.0
    %2696 = vmatpush1.msra.mxu0 0.0
    %2697 = vmatprep.subr.mxu0 0.0
    %2698 = vmatpush1.msra.mxu0 0.0
    %2699 = vmatprep.subr.mxu0 0.0
    %2700 = vmatpush1.msra.mxu0 0.0
    %2701 = vmatprep.subr.mxu0 0.0
    %2702 = vmatpush1.msra.mxu0 0.0
    %2703 = vmatprep.subr.mxu0 0.0
    %2704 = vmatpush1.msra.mxu0 0.0
    %2705 = vmatprep.subr.mxu0 0.0
    %2706 = vmatpush1.msra.mxu0 0.0
    %2707 = vmatprep.subr.mxu0 0.0
    %2708 = vmatpush1.msra.mxu0 0.0
    %2709 = vmatprep.subr.mxu0 0.0
    %2710 = vmatpush1.msra.mxu0 0.0
    %2711 = vmatprep.subr.mxu0 0.0
    %2712 = vmatpush1.msra.mxu0 0.0
    %2713 = vmatprep.subr.mxu0 0.0
    %2714 = vmatpush1.msra.mxu0 0.0
    %2715 = vmatprep.subr.mxu0 0.0
    %2716 = vmatpush1.msra.mxu0 0.0
    %2717 = vmatprep.subr.mxu0 0.0
    %2718 = vmatpush1.msra.mxu0 0.0
    %2719 = vmatprep.subr.mxu0 0.0
    %2720 = vmatpush1.msra.mxu0 0.0
    %2721 = vmatprep.subr.mxu0 0.0
    %2722 = vmatpush1.msra.mxu0 0.0
    %2723 = vmatprep.mubr.f32.mxu0 0.0
    %2724 = vmatmul.mubr.f32.gmra.mrb[0].mxu0 %v2504
    %v2725 = vpop.f32.mrb[0].mxu0
    %v2726 = vadd.f32 %v2651, %v2725
    %v2727 = vpop.f32.mrb[0].mxu0
    %2728 = vmatprep.mubr.f32.mxu0 0.0
    %2729 = vmatmul.mubr.f32.gmra.mrb[0].mxu0 %v2507
    %v2730 = vpop.f32.mrb[0].mxu0
    %v2731 = vadd.f32 %v2656, %v2730
    %v2732 = vpop.f32.mrb[0].mxu0
    %2733 = vdwg.mxu0
    %vm2734 = vcmask 523264
    %v2735 = vsel %vm2734, %v2726, 0.0
    %v2736 = vsel %vm2734, %v2731, 0.0
    %v2737 = vld [vmem:[%s7] sm:$0xff]
    %v2738 = vld [vmem:[%s7 + $0x8] sm:$0xff]
    %v2739 = vld [vmem:[%s7 + $0x10] sm:$0xff]
    %v2740 = vld [vmem:[%s7 + $0x18] sm:$0xff]
    %v2741 = vld [vmem:[%s7 + $0x20] sm:$0xff]
    %v2742 = vld [vmem:[%s7 + $0x28] sm:$0xff]
    %v2743 = vld [vmem:[%s7 + $0x30] sm:$0xff]
    %v2744 = vld [vmem:[%s7 + $0x38] sm:$0xff]
    %v2745 = vld [vmem:[%s8] sm:$0xff]
    %v2746 = vld [vmem:[%s8 + $0x8] sm:$0xff]
    %v2747 = vld [vmem:[%s8 + $0x10] sm:$0xff]
    %v2748 = vld [vmem:[%s8 + $0x18] sm:$0xff]
    %2751 = vrot.lane.b32.xlu0 %v2735, 127
    %v2752 = vpop.permute.xlu0 %2751
    %2753 = vrot.lane.b32.xlu0 %v2736, 127
    %v2754 = vpop.permute.xlu0 %2753
    %2757 = vrot.lane.b32.xlu0 %v2735, 126
    %v2758 = vpop.permute.xlu0 %2757
    %2759 = vrot.lane.b32.xlu0 %v2736, 126
    %v2760 = vpop.permute.xlu0 %2759
    %2763 = vrot.lane.b32.xlu0 %v2735, 120
    %v2764 = vpop.permute.xlu0 %2763
    %2765 = vrot.lane.b32.xlu0 %v2736, 120
    %v2766 = vpop.permute.xlu0 %2765
    %2769 = vrot.lane.b32.xlu0 %v2735, 119
    %v2770 = vpop.permute.xlu0 %2769
    %2771 = vrot.lane.b32.xlu0 %v2736, 119
    %v2772 = vpop.permute.xlu0 %2771
    %2775 = vrot.lane.b32.xlu0 %v2735, 118
    %v2776 = vpop.permute.xlu0 %2775
    %2777 = vrot.lane.b32.xlu0 %v2736, 118
    %v2778 = vpop.permute.xlu0 %2777
    %2781 = vrot.lane.b32.xlu0 %v2735, 112
    %v2782 = vpop.permute.xlu0 %2781
    %2783 = vrot.lane.b32.xlu0 %v2736, 112
    %v2784 = vpop.permute.xlu0 %2783
    %2787 = vrot.lane.b32.xlu0 %v2735, 111
    %v2788 = vpop.permute.xlu0 %2787
    %2789 = vrot.lane.b32.xlu0 %v2736, 111
    %v2790 = vpop.permute.xlu0 %2789
    %2793 = vrot.lane.b32.xlu0 %v2735, 110
    %v2794 = vpop.permute.xlu0 %2793
    %2795 = vrot.lane.b32.xlu0 %v2736, 110
    %v2796 = vpop.permute.xlu0 %2795
    %2800 = vset.pattern.permute.xlu0 0
    %2801 = vperm.xlu0 %2800, %v2745
    %v2802 = vpop.permute.xlu0 %2801
    %2805 = vset.pattern.permute.xlu0 0
    %2806 = vperm.xlu0 %2805, %v2746
    %v2807 = vpop.permute.xlu0 %2806
    %2810 = vset.pattern.permute.xlu0 0
    %2811 = vperm.xlu0 %2810, %v2747
    %v2812 = vpop.permute.xlu0 %2811
    %2815 = vset.pattern.permute.xlu0 0
    %2816 = vperm.xlu0 %2815, %v2748
    %v2817 = vpop.permute.xlu0 %2816
    %v2820 = vsel %vm71, %v2738, 0
    %v2823 = vsel %vm71, %v2740, 0
    %v2826 = vsel %vm71, %v2742, 0
    %v2829 = vsel %vm71, %v2744, 0
    %2831 = vmatprep.subr.mxu0 0.0
    %2832 = vmatpush1.msra.mxu0 %v2735
    %2833 = vmatprep.subr.mxu0 0.0
    %2834 = vmatpush1.msra.mxu0 %v2736
    %2835 = vmatprep.subr.mxu0 0.0
    %2836 = vmatpush1.msra.mxu0 %v2752
    %2837 = vmatprep.subr.mxu0 0.0
    %2838 = vmatpush1.msra.mxu0 %v2754
    %2839 = vmatprep.subr.mxu0 0.0
    %2840 = vmatpush1.msra.mxu0 %v2758
    %2841 = vmatprep.subr.mxu0 0.0
    %2842 = vmatpush1.msra.mxu0 %v2760
    %2843 = vmatprep.subr.mxu0 0.0
    %2844 = vmatpush1.msra.mxu0 %v2764
    %2845 = vmatprep.subr.mxu0 0.0
    %2846 = vmatpush1.msra.mxu0 %v2766
    %2847 = vmatprep.subr.mxu0 0.0
    %2848 = vmatpush1.msra.mxu0 %v2770
    %2849 = vmatprep.subr.mxu0 0.0
    %2850 = vmatpush1.msra.mxu0 %v2772
    %2851 = vmatprep.subr.mxu0 0.0
    %2852 = vmatpush1.msra.mxu0 %v2776
    %2853 = vmatprep.subr.mxu0 0.0
    %2854 = vmatpush1.msra.mxu0 %v2778
    %2855 = vmatprep.subr.mxu0 0.0
    %2856 = vmatpush1.msra.mxu0 %v2782
    %2857 = vmatprep.subr.mxu0 0.0
    %2858 = vmatpush1.msra.mxu0 %v2784
    %2859 = vmatprep.subr.mxu0 0.0
    %2860 = vmatpush1.msra.mxu0 %v2788
    %2861 = vmatprep.subr.mxu0 0.0
    %2862 = vmatpush1.msra.mxu0 %v2790
    %2863 = vmatprep.subr.mxu0 0.0
    %2864 = vmatpush1.msra.mxu0 %v2794
    %2865 = vmatprep.subr.mxu0 0.0
    %2866 = vmatpush1.msra.mxu0 %v2796
    %2867 = vmatprep.subr.mxu0 0.0
    %2868 = vmatpush1.msra.mxu0 0.0
    %2869 = vmatprep.subr.mxu0 0.0
    %2870 = vmatpush1.msra.mxu0 0.0
    %2871 = vmatprep.subr.mxu0 0.0
    %2872 = vmatpush1.msra.mxu0 0.0
    %2873 = vmatprep.subr.mxu0 0.0
    %2874 = vmatpush1.msra.mxu0 0.0
    %2875 = vmatprep.subr.mxu0 0.0
    %2876 = vmatpush1.msra.mxu0 0.0
    %2877 = vmatprep.subr.mxu0 0.0
    %2878 = vmatpush1.msra.mxu0 0.0
    %2879 = vmatprep.subr.mxu0 0.0
    %2880 = vmatpush1.msra.mxu0 0.0
    %2881 = vmatprep.subr.mxu0 0.0
    %2882 = vmatpush1.msra.mxu0 0.0
    %2883 = vmatprep.subr.mxu0 0.0
    %2884 = vmatpush1.msra.mxu0 0.0
    %2885 = vmatprep.subr.mxu0 0.0
    %2886 = vmatpush1.msra.mxu0 0.0
    %2887 = vmatprep.subr.mxu0 0.0
    %2888 = vmatpush1.msra.mxu0 0.0
    %2889 = vmatprep.subr.mxu0 0.0
    %2890 = vmatpush1.msra.mxu0 0.0
    %2891 = vmatprep.subr.mxu0 0.0
    %2892 = vmatpush1.msra.mxu0 0.0
    %2893 = vmatprep.subr.mxu0 0.0
    %2894 = vmatpush1.msra.mxu0 0.0
    %2895 = vmatprep.mubr.f32.mxu0 %v2820
    %2896 = vmatmul.mubr.f32.gmra.mrb[0].mxu0 %v2737
    %v2897 = vpop.f32.mrb[0].mxu0
    %v2898 = vadd.f32 %v2802, %v2897
    %v2899 = vpop.f32.mrb[0].mxu0
    %2900 = vmatprep.mubr.f32.mxu0 %v2823
    %2901 = vmatmul.mubr.f32.gmra.mrb[0].mxu0 %v2739
    %v2902 = vpop.f32.mrb[0].mxu0
    %v2903 = vadd.f32 %v2807, %v2902
    %v2904 = vpop.f32.mrb[0].mxu0
    %2905 = vmatprep.mubr.f32.mxu0 %v2826
    %2906 = vmatmul.mubr.f32.gmra.mrb[0].mxu0 %v2741
    %v2907 = vpop.f32.mrb[0].mxu0
    %v2908 = vadd.f32 %v2812, %v2907
    %v2909 = vpop.f32.mrb[0].mxu0
    %2910 = vmatprep.mubr.f32.mxu0 %v2829
    %2911 = vmatmul.mubr.f32.gmra.mrb[0].mxu0 %v2743
    %v2912 = vpop.f32.mrb[0].mxu0
    %v2913 = vadd.f32 %v2817, %v2912
    %v2914 = vpop.f32.mrb[0].mxu0
    %2915 = vdwg.mxu0
    %v2916 = vmax.f32 %v2898, 0.0
    %v2917 = vmax.f32 %v2903, 0.0
    %v2918 = vmax.f32 %v2908, 0.0
    %v2919 = vmax.f32 %v2913, 0.0
    %vm2920 = vcmask 392192
    %v2921 = vsel %vm2920, %v2916, 0.0
    %v2922 = vsel %vm2920, %v2917, 0.0
    %v2923 = vsel %vm2920, %v2918, 0.0
    %v2924 = vsel %vm2920, %v2919, 0.0
    %v2925 = vld [vmem:[%s11] sm:$0xff]
    %v2926 = vld [vmem:[%s11 + $0x8] sm:$0xff]
    %v2927 = vld [vmem:[%s11 + $0x10] sm:$0xff]
    %v2928 = vld [vmem:[%s11 + $0x18] sm:$0xff]
    %2933 = vrot.lane.b32.xlu0 %v2921, 127
    %v2934 = vpop.permute.xlu0 %2933
    %2935 = vrot.lane.b32.xlu0 %v2922, 127
    %v2936 = vpop.permute.xlu0 %2935
    %2937 = vrot.lane.b32.xlu0 %v2923, 127
    %v2938 = vpop.permute.xlu0 %2937
    %2939 = vrot.lane.b32.xlu0 %v2924, 127
    %v2940 = vpop.permute.xlu0 %2939
    %v2945 = vmax.f32 %v2921, %v2934
    %v2946 = vmax.f32 %v2922, %v2936
    %v2947 = vmax.f32 %v2923, %v2938
    %v2948 = vmax.f32 %v2924, %v2940
    %2949 = vrot.lane.b32.xlu0 %v2921, 126
    %v2950 = vpop.permute.xlu0 %2949
    %2951 = vrot.lane.b32.xlu0 %v2922, 126
    %v2952 = vpop.permute.xlu0 %2951
    %2953 = vrot.lane.b32.xlu0 %v2923, 126
    %v2954 = vpop.permute.xlu0 %2953
    %2955 = vrot.lane.b32.xlu0 %v2924, 126
    %v2956 = vpop.permute.xlu0 %2955
    %v2961 = vmax.f32 %v2945, %v2950
    %v2962 = vmax.f32 %v2946, %v2952
    %v2963 = vmax.f32 %v2947, %v2954
    %v2964 = vmax.f32 %v2948, %v2956
    %2969 = vrot.lane.b32.xlu0 %v2961, 120
    %v2970 = vpop.permute.xlu0 %2969
    %2971 = vrot.lane.b32.xlu0 %v2962, 120
    %v2972 = vpop.permute.xlu0 %2971
    %2973 = vrot.lane.b32.xlu0 %v2963, 120
    %v2974 = vpop.permute.xlu0 %2973
    %2975 = vrot.lane.b32.xlu0 %v2964, 120
    %v2976 = vpop.permute.xlu0 %2975
    %v2981 = vmax.f32 %v2961, %v2970
    %v2982 = vmax.f32 %v2962, %v2972
    %v2983 = vmax.f32 %v2963, %v2974
    %v2984 = vmax.f32 %v2964, %v2976
    %2985 = vrot.lane.b32.xlu0 %v2961, 112
    %v2986 = vpop.permute.xlu0 %2985
    %2987 = vrot.lane.b32.xlu0 %v2962, 112
    %v2988 = vpop.permute.xlu0 %2987
    %2989 = vrot.lane.b32.xlu0 %v2963, 112
    %v2990 = vpop.permute.xlu0 %2989
    %2991 = vrot.lane.b32.xlu0 %v2964, 112
    %v2992 = vpop.permute.xlu0 %2991
    %v2997 = vmax.f32 %v2981, %v2986
    %v2998 = vmax.f32 %v2982, %v2988
    %v2999 = vmax.f32 %v2983, %v2990
    %v3000 = vmax.f32 %v2984, %v2992
    %v3002 = vsel %vm2174, %v2997, 0
    %v3005 = vsel %vm2174, %v2998, 0
    %v3008 = vsel %vm2174, %v2999, 0
    %v3011 = vsel %vm2174, %v3000, 0
    %3013 = vmatprep.subr.mxu0 0.0
    %3014 = vmatpush1.msra.mxu0 %v2925
    %3015 = vmatprep.subr.mxu0 0.0
    %3016 = vmatpush1.msra.mxu0 %v2926
    %3017 = vmatprep.subr.mxu0 0.0
    %3018 = vmatpush1.msra.mxu0 %v2927
    %3019 = vmatprep.subr.mxu0 0.0
    %3020 = vmatpush1.msra.mxu0 %v2928
    %3021 = vmatprep.subr.mxu0 0.0
    %3022 = vmatpush1.msra.mxu0 0.0
    %3023 = vmatprep.subr.mxu0 0.0
    %3024 = vmatpush1.msra.mxu0 0.0
    %3025 = vmatprep.subr.mxu0 0.0
    %3026 = vmatpush1.msra.mxu0 0.0
    %3027 = vmatprep.subr.mxu0 0.0
    %3028 = vmatpush1.msra.mxu0 0.0
    %3029 = vmatprep.subr.mxu0 0.0
    %3030 = vmatpush1.msra.mxu0 0.0
    %3031 = vmatprep.subr.mxu0 0.0
    %3032 = vmatpush1.msra.mxu0 0.0
    %3033 = vmatprep.subr.mxu0 0.0
    %3034 = vmatpush1.msra.mxu0 0.0
    %3035 = vmatprep.subr.mxu0 0.0
    %3036 = vmatpush1.msra.mxu0 0.0
    %3037 = vmatprep.subr.mxu0 0.0
    %3038 = vmatpush1.msra.mxu0 0.0
    %3039 = vmatprep.subr.mxu0 0.0
    %3040 = vmatpush1.msra.mxu0 0.0
    %3041 = vmatprep.subr.mxu0 0.0
    %3042 = vmatpush1.msra.mxu0 0.0
    %3043 = vmatprep.subr.mxu0 0.0
    %3044 = vmatpush1.msra.mxu0 0.0
    %3045 = vmatprep.subr.mxu0 0.0
    %3046 = vmatpush1.msra.mxu0 0.0
    %3047 = vmatprep.subr.mxu0 0.0
    %3048 = vmatpush1.msra.mxu0 0.0
    %3049 = vmatprep.subr.mxu0 0.0
    %3050 = vmatpush1.msra.mxu0 0.0
    %3051 = vmatprep.subr.mxu0 0.0
    %3052 = vmatpush1.msra.mxu0 0.0
    %3053 = vmatprep.subr.mxu0 0.0
    %3054 = vmatpush1.msra.mxu0 0.0
    %3055 = vmatprep.subr.mxu0 0.0
    %3056 = vmatpush1.msra.mxu0 0.0
    %3057 = vmatprep.subr.mxu0 0.0
    %3058 = vmatpush1.msra.mxu0 0.0
    %3059 = vmatprep.subr.mxu0 0.0
    %3060 = vmatpush1.msra.mxu0 0.0
    %3061 = vmatprep.subr.mxu0 0.0
    %3062 = vmatpush1.msra.mxu0 0.0
    %3063 = vmatprep.subr.mxu0 0.0
    %3064 = vmatpush1.msra.mxu0 0.0
    %3065 = vmatprep.subr.mxu0 0.0
    %3066 = vmatpush1.msra.mxu0 0.0
    %3067 = vmatprep.subr.mxu0 0.0
    %3068 = vmatpush1.msra.mxu0 0.0
    %3069 = vmatprep.subr.mxu0 0.0
    %3070 = vmatpush1.msra.mxu0 0.0
    %3071 = vmatprep.subr.mxu0 0.0
    %3072 = vmatpush1.msra.mxu0 0.0
    %3073 = vmatprep.subr.mxu0 0.0
    %3074 = vmatpush1.msra.mxu0 0.0
    %3075 = vmatprep.subr.mxu0 0.0
    %3076 = vmatpush1.msra.mxu0 0.0
    %3077 = vmatprep.mubr.f32.mxu0 0.0
    %3078 = vmatmul.mubr.f32.gmra.mrb[0].mxu0 %v3002
    %v3079 = vpop.f32.mrb[0].mxu0
    %v3080 = vadd.f32 0.0, %v3079
    %v3081 = vpop.f32.mrb[0].mxu0
    %3082 = vmatprep.mubr.f32.mxu0 0.0
    %3083 = vmatmul.mubr.f32.gmra.mrb[0].mxu0 %v3005
    %v3084 = vpop.f32.mrb[0].mxu0
    %v3085 = vadd.f32 0.0, %v3084
    %v3086 = vpop.f32.mrb[0].mxu0
    %3087 = vmatprep.mubr.f32.mxu0 0.0
    %3088 = vmatmul.mubr.f32.gmra.mrb[0].mxu0 %v3008
    %v3089 = vpop.f32.mrb[0].mxu0
    %v3090 = vadd.f32 0.0, %v3089
    %v3091 = vpop.f32.mrb[0].mxu0
    %3092 = vmatprep.mubr.f32.mxu0 0.0
    %3093 = vmatmul.mubr.f32.gmra.mrb[0].mxu0 %v3011
    %v3094 = vpop.f32.mrb[0].mxu0
    %v3095 = vadd.f32 0.0, %v3094
    %v3096 = vpop.f32.mrb[0].mxu0
    %3097 = vdwg.mxu0
    %v3098 = vld [vmem:[%s12] sm:$0xff]
    %v3100 = vcombine.high %v3098, %v3098
    %vm3101 = vcmask 31744
    %v3103 = vsel %vm3101, %v3080, 0
    %v3106 = vsel %vm3101, %v3085, 0
    %v3109 = vsel %vm3101, %v3090, 0
    %v3112 = vsel %vm3101, %v3095, 0
    %vm3114 = vcmask 1043456
    %v3115 = vsel %vm3114, %v3098, 0
    %v3117 = vsel %vm3114, %v3100, 0
    %3119 = vmatprep.subr.mxu0 %v3117
    %3120 = vmatpush1.msra.mxu0 %v3115
    %3121 = vmatprep.subr.mxu0 0.0
    %3122 = vmatpush1.msra.mxu0 0.0
    %3123 = vmatprep.subr.mxu0 0.0
    %3124 = vmatpush1.msra.mxu0 0.0
    %3125 = vmatprep.subr.mxu0 0.0
    %3126 = vmatpush1.msra.mxu0 0.0
    %3127 = vmatprep.subr.mxu0 0.0
    %3128 = vmatpush1.msra.mxu0 0.0
    %3129 = vmatprep.subr.mxu0 0.0
    %3130 = vmatpush1.msra.mxu0 0.0
    %3131 = vmatprep.subr.mxu0 0.0
    %3132 = vmatpush1.msra.mxu0 0.0
    %3133 = vmatprep.subr.mxu0 0.0
    %3134 = vmatpush1.msra.mxu0 0.0
    %3135 = vmatprep.subr.mxu0 0.0
    %3136 = vmatpush1.msra.mxu0 0.0
    %3137 = vmatprep.subr.mxu0 0.0
    %3138 = vmatpush1.msra.mxu0 0.0
    %3139 = vmatprep.subr.mxu0 0.0
    %3140 = vmatpush1.msra.mxu0 0.0
    %3141 = vmatprep.subr.mxu0 0.0
    %3142 = vmatpush1.msra.mxu0 0.0
    %3143 = vmatprep.subr.mxu0 0.0
    %3144 = vmatpush1.msra.mxu0 0.0
    %3145 = vmatprep.subr.mxu0 0.0
    %3146 = vmatpush1.msra.mxu0 0.0
    %3147 = vmatprep.subr.mxu0 0.0
    %3148 = vmatpush1.msra.mxu0 0.0
    %3149 = vmatprep.subr.mxu0 0.0
    %3150 = vmatpush1.msra.mxu0 0.0
    %3151 = vmatprep.subr.mxu0 0.0
    %3152 = vmatpush1.msra.mxu0 0.0
    %3153 = vmatprep.subr.mxu0 0.0
    %3154 = vmatpush1.msra.mxu0 0.0
    %3155 = vmatprep.subr.mxu0 0.0
    %3156 = vmatpush1.msra.mxu0 0.0
    %3157 = vmatprep.subr.mxu0 0.0
    %3158 = vmatpush1.msra.mxu0 0.0
    %3159 = vmatprep.subr.mxu0 0.0
    %3160 = vmatpush1.msra.mxu0 0.0
    %3161 = vmatprep.subr.mxu0 0.0
    %3162 = vmatpush1.msra.mxu0 0.0
    %3163 = vmatprep.subr.mxu0 0.0
    %3164 = vmatpush1.msra.mxu0 0.0
    %3165 = vmatprep.subr.mxu0 0.0
    %3166 = vmatpush1.msra.mxu0 0.0
    %3167 = vmatprep.subr.mxu0 0.0
    %3168 = vmatpush1.msra.mxu0 0.0
    %3169 = vmatprep.subr.mxu0 0.0
    %3170 = vmatpush1.msra.mxu0 0.0
    %3171 = vmatprep.subr.mxu0 0.0
    %3172 = vmatpush1.msra.mxu0 0.0
    %3173 = vmatprep.subr.mxu0 0.0
    %3174 = vmatpush1.msra.mxu0 0.0
    %3175 = vmatprep.subr.mxu0 0.0
    %3176 = vmatpush1.msra.mxu0 0.0
    %3177 = vmatprep.subr.mxu0 0.0
    %3178 = vmatpush1.msra.mxu0 0.0
    %3179 = vmatprep.subr.mxu0 0.0
    %3180 = vmatpush1.msra.mxu0 0.0
    %3181 = vmatprep.subr.mxu0 0.0
    %3182 = vmatpush1.msra.mxu0 0.0
    %3183 = vmatprep.mubr.f32.mxu0 0.0
    %3184 = vmatmul.mubr.f32.gmra.mrb[0].mxu0 %v3103
    %v3185 = vpop.f32.mrb[0].mxu0
    %v3186 = vadd.f32 0.0, %v3185
    %v3187 = vpop.f32.mrb[0].mxu0
    %v3188 = vadd.f32 0.0, %v3187
    %3189 = vmatprep.mubr.f32.mxu0 0.0
    %3190 = vmatmul.mubr.f32.gmra.mrb[0].mxu0 %v3106
    %v3191 = vpop.f32.mrb[0].mxu0
    %v3192 = vadd.f32 0.0, %v3191
    %v3193 = vpop.f32.mrb[0].mxu0
    %v3194 = vadd.f32 0.0, %v3193
    %3195 = vmatprep.mubr.f32.mxu0 0.0
    %3196 = vmatmul.mubr.f32.gmra.mrb[0].mxu0 %v3109
    %v3197 = vpop.f32.mrb[0].mxu0
    %v3198 = vadd.f32 0.0, %v3197
    %v3199 = vpop.f32.mrb[0].mxu0
    %v3200 = vadd.f32 0.0, %v3199
    %3201 = vmatprep.mubr.f32.mxu0 0.0
    %3202 = vmatmul.mubr.f32.gmra.mrb[0].mxu0 %v3112
    %v3203 = vpop.f32.mrb[0].mxu0
    %v3204 = vadd.f32 0.0, %v3203
    %v3205 = vpop.f32.mrb[0].mxu0
    %v3206 = vadd.f32 0.0, %v3205
    %3207 = vdwg.mxu0
    %v3208 = vld [vmem:[%s15] sm:$0x3]
    %v3209 = vld [vmem:[%s13] sm:$0xff]
    %v3210 = vld [vmem:[%s13 + $0x8] sm:$0xff]
    %v3211 = vld [vmem:[%s13 + $0x10] sm:$0xff]
    %v3212 = vld [vmem:[%s13 + $0x18] sm:$0xff]
    %v3213 = vld [vmem:[%s13 + $0x20] sm:$0xff]
    %v3214 = vld [vmem:[%s13 + $0x28] sm:$0xff]
    %v3215 = vld [vmem:[%s13 + $0x30] sm:$0xff]
    %v3216 = vld [vmem:[%s13 + $0x38] sm:$0xff]
    %v3217 = vmul.f32 %v3186, %v3209
    %v3218 = vmul.f32 %v3188, %v3210
    %v3219 = vmul.f32 %v3192, %v3211
    %v3220 = vmul.f32 %v3194, %v3212
    %v3221 = vmul.f32 %v3198, %v3213
    %v3222 = vmul.f32 %v3200, %v3214
    %v3223 = vmul.f32 %v3204, %v3215
    %v3224 = vmul.f32 %v3206, %v3216
    %v3226 = vsel %vm2174, %v3208, 0
    %3228 = vmatprep.subr.mxu0 %v3218
    %3229 = vmatpush1.msra.mxu0 %v3217
    %3230 = vmatprep.subr.mxu0 %v3220
    %3231 = vmatpush1.msra.mxu0 %v3219
    %3232 = vmatprep.subr.mxu0 %v3222
    %3233 = vmatpush1.msra.mxu0 %v3221
    %3234 = vmatprep.subr.mxu0 %v3224
    %3235 = vmatpush1.msra.mxu0 %v3223
    %3236 = vmatprep.subr.mxu0 0.0
    %3237 = vmatpush1.msra.mxu0 0.0
    %3238 = vmatprep.subr.mxu0 0.0
    %3239 = vmatpush1.msra.mxu0 0.0
    %3240 = vmatprep.subr.mxu0 0.0
    %3241 = vmatpush1.msra.mxu0 0.0
    %3242 = vmatprep.subr.mxu0 0.0
    %3243 = vmatpush1.msra.mxu0 0.0
    %3244 = vmatprep.subr.mxu0 0.0
    %3245 = vmatpush1.msra.mxu0 0.0
    %3246 = vmatprep.subr.mxu0 0.0
    %3247 = vmatpush1.msra.mxu0 0.0
    %3248 = vmatprep.subr.mxu0 0.0
    %3249 = vmatpush1.msra.mxu0 0.0
    %3250 = vmatprep.subr.mxu0 0.0
    %3251 = vmatpush1.msra.mxu0 0.0
    %3252 = vmatprep.subr.mxu0 0.0
    %3253 = vmatpush1.msra.mxu0 0.0
    %3254 = vmatprep.subr.mxu0 0.0
    %3255 = vmatpush1.msra.mxu0 0.0
    %3256 = vmatprep.subr.mxu0 0.0
    %3257 = vmatpush1.msra.mxu0 0.0
    %3258 = vmatprep.subr.mxu0 0.0
    %3259 = vmatpush1.msra.mxu0 0.0
    %3260 = vmatprep.subr.mxu0 0.0
    %3261 = vmatpush1.msra.mxu0 0.0
    %3262 = vmatprep.subr.mxu0 0.0
    %3263 = vmatpush1.msra.mxu0 0.0
    %3264 = vmatprep.subr.mxu0 0.0
    %3265 = vmatpush1.msra.mxu0 0.0
    %3266 = vmatprep.subr.mxu0 0.0
    %3267 = vmatpush1.msra.mxu0 0.0
    %3268 = vmatprep.subr.mxu0 0.0
    %3269 = vmatpush1.msra.mxu0 0.0
    %3270 = vmatprep.subr.mxu0 0.0
    %3271 = vmatpush1.msra.mxu0 0.0
    %3272 = vmatprep.subr.mxu0 0.0
    %3273 = vmatpush1.msra.mxu0 0.0
    %3274 = vmatprep.subr.mxu0 0.0
    %3275 = vmatpush1.msra.mxu0 0.0
    %3276 = vmatprep.subr.mxu0 0.0
    %3277 = vmatpush1.msra.mxu0 0.0
    %3278 = vmatprep.subr.mxu0 0.0
    %3279 = vmatpush1.msra.mxu0 0.0
    %3280 = vmatprep.subr.mxu0 0.0
    %3281 = vmatpush1.msra.mxu0 0.0
    %3282 = vmatprep.subr.mxu0 0.0
    %3283 = vmatpush1.msra.mxu0 0.0
    %3284 = vmatprep.subr.mxu0 0.0
    %3285 = vmatpush1.msra.mxu0 0.0
    %3286 = vmatprep.subr.mxu0 0.0
    %3287 = vmatpush1.msra.mxu0 0.0
    %3288 = vmatprep.subr.mxu0 0.0
    %3289 = vmatpush1.msra.mxu0 0.0
    %3290 = vmatprep.subr.mxu0 0.0
    %3291 = vmatpush1.msra.mxu0 0.0
    %3292 = vmatprep.mubr.f32.mxu0 0.0
    %3293 = vmatmul.mubr.f32.gmra.mrb[0].mxu0 %v3226
    %v3294 = vpop.f32.mrb[0].mxu0
    %v3295 = vadd.f32 0.0, %v3294
    %v3296 = vpop.f32.mrb[0].mxu0
    %v3297 = vadd.f32 0.0, %v3296
    %3298 = vdwg.mxu0
    %v3299 = vld [vmem:[%s14] sm:$0xff]
    %v3300 = vld [vmem:[%s14 + $0x8] sm:$0xff]
    %v3301 = vld [vmem:[%s14 + $0x10] sm:$0xff]
    %v3302 = vld [vmem:[%s14 + $0x18] sm:$0xff]
    %v3303 = vld [vmem:[%s14 + $0x20] sm:$0xff]
    %v3304 = vld [vmem:[%s14 + $0x28] sm:$0xff]
    %v3305 = vld [vmem:[%s14 + $0x30] sm:$0xff]
    %v3306 = vld [vmem:[%s14 + $0x38] sm:$0xff]
    %v3307 = vld [vmem:[%s14 + $0x40] sm:$0xff]
    %v3308 = vld [vmem:[%s14 + $0x48] sm:$0xff]
    %v3309 = vld [vmem:[%s14 + $0x50] sm:$0xff]
    %v3310 = vld [vmem:[%s14 + $0x58] sm:$0xff]
    %v3311 = vld [vmem:[%s14 + $0x60] sm:$0xff]
    %v3312 = vld [vmem:[%s14 + $0x68] sm:$0xff]
    %v3313 = vld [vmem:[%s14 + $0x70] sm:$0xff]
    %v3314 = vld [vmem:[%s14 + $0x78] sm:$0xff]
    %v3315 = vld [vmem:[%s14 + $0x80] sm:$0xff]
    %v3316 = vld [vmem:[%s14 + $0x88] sm:$0xff]
    %v3317 = vld [vmem:[%s14 + $0x90] sm:$0xff]
    %v3318 = vld [vmem:[%s14 + $0x98] sm:$0xff]
    %v3319 = vld [vmem:[%s16] sm:$0x1]
    %v3321 = vlaneseq
    %v3322 = vshrl.u32 %v3321, 7
    %v3323 = vsub.s32 0, %v3322
    %v3324 = vrot.slane %v3319, %v3323
    %v3327 = vsel %vm2174, %v3297, 0
    %3329 = vmatprep.subr.mxu0 0.0
    %3330 = vmatpush1.msra.mxu0 %v3299
    %3331 = vmatprep.subr.mxu0 0.0
    %3332 = vmatpush1.msra.mxu0 %v3300
    %3333 = vmatprep.subr.mxu0 0.0
    %3334 = vmatpush1.msra.mxu0 %v3301
    %3335 = vmatprep.subr.mxu0 0.0
    %3336 = vmatpush1.msra.mxu0 %v3302
    %3337 = vmatprep.subr.mxu0 0.0
    %3338 = vmatpush1.msra.mxu0 %v3303
    %3339 = vmatprep.subr.mxu0 0.0
    %3340 = vmatpush1.msra.mxu0 %v3304
    %3341 = vmatprep.subr.mxu0 0.0
    %3342 = vmatpush1.msra.mxu0 %v3305
    %3343 = vmatprep.subr.mxu0 0.0
    %3344 = vmatpush1.msra.mxu0 %v3306
    %3345 = vmatprep.subr.mxu0 0.0
    %3346 = vmatpush1.msra.mxu0 %v3307
    %3347 = vmatprep.subr.mxu0 0.0
    %3348 = vmatpush1.msra.mxu0 %v3308
    %3349 = vmatprep.subr.mxu0 0.0
    %3350 = vmatpush1.msra.mxu0 %v3309
    %3351 = vmatprep.subr.mxu0 0.0
    %3352 = vmatpush1.msra.mxu0 %v3310
    %3353 = vmatprep.subr.mxu0 0.0
    %3354 = vmatpush1.msra.mxu0 %v3311
    %3355 = vmatprep.subr.mxu0 0.0
    %3356 = vmatpush1.msra.mxu0 %v3312
    %3357 = vmatprep.subr.mxu0 0.0
    %3358 = vmatpush1.msra.mxu0 %v3313
    %3359 = vmatprep.subr.mxu0 0.0
    %3360 = vmatpush1.msra.mxu0 %v3314
    %3361 = vmatprep.subr.mxu0 0.0
    %3362 = vmatpush1.msra.mxu0 %v3315
    %3363 = vmatprep.subr.mxu0 0.0
    %3364 = vmatpush1.msra.mxu0 %v3316
    %3365 = vmatprep.subr.mxu0 0.0
    %3366 = vmatpush1.msra.mxu0 %v3317
    %3367 = vmatprep.subr.mxu0 0.0
    %3368 = vmatpush1.msra.mxu0 %v3318
    %3369 = vmatprep.subr.mxu0 0.0
    %3370 = vmatpush1.msra.mxu0 0.0
    %3371 = vmatprep.subr.mxu0 0.0
    %3372 = vmatpush1.msra.mxu0 0.0
    %3373 = vmatprep.subr.mxu0 0.0
    %3374 = vmatpush1.msra.mxu0 0.0
    %3375 = vmatprep.subr.mxu0 0.0
    %3376 = vmatpush1.msra.mxu0 0.0
    %3377 = vmatprep.subr.mxu0 0.0
    %3378 = vmatpush1.msra.mxu0 0.0
    %3379 = vmatprep.subr.mxu0 0.0
    %3380 = vmatpush1.msra.mxu0 0.0
    %3381 = vmatprep.subr.mxu0 0.0
    %3382 = vmatpush1.msra.mxu0 0.0
    %3383 = vmatprep.subr.mxu0 0.0
    %3384 = vmatpush1.msra.mxu0 0.0
    %3385 = vmatprep.subr.mxu0 0.0
    %3386 = vmatpush1.msra.mxu0 0.0
    %3387 = vmatprep.subr.mxu0 0.0
    %3388 = vmatpush1.msra.mxu0 0.0
    %3389 = vmatprep.subr.mxu0 0.0
    %3390 = vmatpush1.msra.mxu0 0.0
    %3391 = vmatprep.subr.mxu0 0.0
    %3392 = vmatpush1.msra.mxu0 0.0
    %3393 = vmatprep.mubr.f32.mxu0 %v3327
    %3394 = vmatmul.mubr.f32.gmra.mrb[0].mxu0 %v3295
    %v3395 = vpop.f32.mrb[0].mxu0
    %v3396 = vadd.f32 %v3324, %v3395
    %v3397 = vpop.f32.mrb[0].mxu0
    %3398 = vdwg.mxu0
    %vm3399 = vcmask 74752
    %3400 = vst.msk [vmem:[#allocation3] sm:$0x3] %vm3399, %v3396
    // Predicated region
    $region70: #{cnn_forward_pallas.1} parent=1 // pred_check
      _
    $region71: #{cnn_forward_pallas.1} parent=1 // pred_check_branch
      %3402 = sbr.rel (0) target = $region73
    $region72: #{cnn_forward_pallas.1} parent=1 // pred_region
      %s3404 = ssub.s32 32, 32
      %3405 = vsyncadd [#allocation4], %s3404
      %s3407 = sshll.u32 [#allocation3], 4
      %s3408 = int_to_ptr.vmem [resolvable:$true] %s3407
      %3410 = dma.vmem_to_hbm [thread:$0]  %s3408, 32, %s17, [#allocation4]
    $region73: #{cnn_forward_pallas.1} parent=1 // pred_fallthru
      _
    // Predicated region
    $region74: #{cnn_forward_pallas.1} parent=1 // pred_check
      _
    $region75: #{cnn_forward_pallas.1} parent=1 // pred_check_branch
      %3412 = sbr.rel (0) target = $region77
    $region76: #{cnn_forward_pallas.1} parent=1 // pred_region
      %3413 = dma.done [#allocation4], 32
    $region77: #{cnn_forward_pallas.1} parent=1 // pred_fallthru
      _
    %3414 = vsyncpa [#allocation4], 1

</llo_original>
